<compile_context>
chip_gen: v7x
topology: tpu7x:2x2x1
jax: 0.10.0
libtpu: 0.0.40
codegen_flags: <defaults>
</compile_context>

<pallas_src>
import functools

import numpy as np
import jax
import jax.numpy as jnp
from jax.experimental import pallas as pl
from jax.experimental.pallas import tpu as pltpu


# --------------------------------------------------------------------------
# Kernel 1: light-space projection of every camera pixel, all lights at once.
# Layout: [R, L*R] slabs (camera row on sublanes, light-major lanes) so every
# load/store is 128-lane dense; one grid step per batch item.
# --------------------------------------------------------------------------
def _proj_kernel(tw_ref, cmap_ref, depth_ref, mask_ref,
                 gid_ref, d_ref, dsc_ref, *, tan_half_fov, res):
    dep = depth_ref[0]                       # [R, L*R]
    msk = mask_ref[0]
    xm = cmap_ref[0]                         # [-1,1] along u, tiled per light
    ym = cmap_ref[1]                         # [-1,1] along v
    loff = cmap_ref[2]                       # l * R * R (as float)
    tw = tw_ref[0]                           # [16, L*R] per-light 4x4 (row-major)

    px = -dep * tan_half_fov * xm
    py = dep * tan_half_fov * ym
    pz = dep

    def lin(c):
        return (tw[4 * c + 0:4 * c + 1, :] * px +
                tw[4 * c + 1:4 * c + 2, :] * py +
                tw[4 * c + 2:4 * c + 3, :] * pz +
                tw[4 * c + 3:4 * c + 4, :])

    x = lin(0)
    y = lin(1)
    z = lin(2)
    w = lin(3)
    u = jnp.clip((res * (x + 1.0) * 0.5).astype(jnp.int32), 0, res - 1)
    v = jnp.clip((res * (y + 1.0) * 0.5).astype(jnp.int32), 0, res - 1)
    d = jnp.clip(0.5 * (1.0 + z / w), 0.0, 1.0)

    gid_ref[0] = loff.astype(jnp.int32) + v * res + u    # packed flat light-space index
    d_ref[0] = d
    # pixels outside the mask must not contribute to the point-splat z-buffer
    dsc_ref[0] = jnp.where(msk > 0, d, 1.0)


# --------------------------------------------------------------------------
# Kernel 2: fused Fourier basis + separable gaussian blur, grid = (B*L,).
# Harmonics come from an angle-addition recurrence held in vregs (only 2
# transcendental maps per light); the reflect-padded per-light blur is applied
# as two batched MXU dots.  Output is a lane-dense [R, N*R] slab per light.
# --------------------------------------------------------------------------
def _basis_blur_kernel(z_ref, w_ref, wt_ref, out_ref, *, n_harm, res):
    zt = z_ref[0]                                 # [R, R] light-space z map
    theta = jnp.float32(np.pi) * zt
    c1 = jnp.cos(theta)
    s1 = jnp.sin(theta)
    c2 = 2.0 * c1 * c1 - 1.0
    s2 = 2.0 * s1 * c1
    ck, sk = c1, s1
    pieces = []
    for k in range(n_harm):
        pieces.append(ck)                         # cos((2k+1) * pi * z)
        pieces.append(sk)                         # sin((2k+1) * pi * z)
        if k + 1 < n_harm:
            ck, sk = ck * c2 - sk * s2, sk * c2 + ck * s2
    n_ch = 2 * n_harm

    bstack = jnp.concatenate(pieces, axis=0)      # [N*R, R]   (sublane stack)
    # column blur (along u) for all channels in one MXU dot
    sstack = jnp.dot(bstack, wt_ref[0], preferred_element_type=jnp.float32)
    # relayout: sublane-stacked channels -> lane-concatenated channels
    scat = jnp.concatenate(
        [sstack[k * res:(k + 1) * res, :] for k in range(n_ch)], axis=1)  # [R, N*R]
    # row blur (along v) for all channels in one MXU dot, lane-dense output
    out_ref[0] = jnp.dot(w_ref[0], scat, preferred_element_type=jnp.float32)


# --------------------------------------------------------------------------
# Kernel 3: hard shadow test + Fourier reconstruction, grid = (B,), [R, L*R]
# lane-dense slabs; the cos/sin recurrence is carried in vregs.
# --------------------------------------------------------------------------
def _shadow_kernel(d_ref, g_ref, f_ref, sf_ref, *, n_harm, offset,
                   clamp_value, shadow_threshold):
    d = d_ref[0]                                  # [R, L*R]
    z = g_ref[0, 2 * n_harm]                      # bundled z channel
    phi = jnp.float32(np.pi) * (d + offset)
    c1 = jnp.cos(phi)
    s1 = jnp.sin(phi)
    c2 = 2.0 * c1 * c1 - 1.0
    s2 = 2.0 * s1 * c1
    ck_c, ck_s = c1, s1
    q = jnp.zeros_like(d)
    for k in range(n_harm):
        ck = float(np.pi * (2 * k + 1))
        q = q + (-2.0 / ck) * ck_s * g_ref[0, 2 * k] \
              + (2.0 / ck) * ck_c * g_ref[0, 2 * k + 1]
        if k + 1 < n_harm:
            ck_c, ck_s = ck_c * c2 - ck_s * s2, ck_s * c2 + ck_c * s2
    q = jnp.clip(q, -clamp_value, clamp_value) * (1.0 / clamp_value)
    sf_ref[0] = 0.5 * (q + 1.0)
    fz = jnp.maximum(d - z, 0.0)
    f_ref[0] = jnp.where(fz > shadow_threshold, 0.0, 1.0)


# --------------------------------------------------------------------------
# Module
# --------------------------------------------------------------------------
class ShadowMappingPallas:
    def __init__(self, opts, resolution):
        self.opts = opts
        self.R = int(resolution)
        self.L = int(opts.n_light)
        self.fov = 2 * np.arctan(0.5 * 36 / opts.focal_length)
        self.tan_half_fov = float(np.tan(self.fov / 2))
        self.cot = float(np.tan(0.5 * (np.pi - self.fov)))

        c, s = np.cos(np.pi), np.sin(np.pi)
        self.rot_pi_origin_mat = np.array(
            [[c, 0, s, 0], [0, 1, 0, 0], [-s, 0, c, 0], [0, 0, 0, 1]], np.float32)
        self.m_dist_mat = np.array(
            [[1, 0, 0, 0], [0, 1, 0, 0], [0, 0, 1, -opts.camera_distance],
             [0, 0, 0, 1]], np.float32)
        self.local_mat = (self.rot_pi_origin_mat @ self.m_dist_mat).astype(np.float32)

        M = 4
        self.M = M
        self.N = 2 * M

        self.near = opts.camera_distance - np.sqrt(2) * opts.camera_distance * np.tan(self.fov / 2)
        self.far = opts.camera_distance + np.sqrt(2) * opts.camera_distance * np.tan(self.fov / 2)
        self.orth_proj = np.array(
            [[1.0 / opts.window, 0, 0, 0],
             [0, 1.0 / opts.window, 0, 0],
             [0, 0, -2.0 / (self.far - self.near),
              -(self.far + self.near) / (self.far - self.near)],
             [0, 0, 0, 1]], np.float32)

        self.offset = -0.0642233295781
        self.clamp_value = 0.4458709375254

        # TODO(synk): the reference gaussian kernel size is data dependent;
        # here it is capped at a static ks_max (assumes als[:,3] <= 1, larger
        # sigmas are truncated) so one compiled kernel serves all lights/batches.
        sig_max = (self.R / opts.resolution_optimize * 7.0 - 1.0) / 6.0
        self.ks_max = max(int(2 * np.ceil(3 * max(sig_max, 0.0)) + 1), 1)

        # Hoisted constant maps for the projection kernel: [-1,1] pixel centre
        # coordinates (tiled per light along lanes) + per-light flat offsets.
        R, L = self.R, self.L
        m1p1 = (2.0 * (np.arange(R) / R + 0.5 / R) - 1.0).astype(np.float32)
        xm_w = np.tile(np.tile(m1p1[None, :], (R, 1)), (1, L))        # varies along u
        ym_w = np.tile(np.tile(m1p1[:, None], (1, R)), (1, L))        # varies along v
        loff_w = np.tile(np.repeat(np.arange(L) * R * R, R)[None, :].astype(np.float32),
                         (R, 1))
        self._cmap = jnp.asarray(np.stack([xm_w, ym_w, loff_w], axis=0))  # [3, R, L*R]

        # whole-batch pipeline, single jit, no host syncs
        self._run = jax.jit(self._forward_impl)

    # -- helpers -----------------------------------------------------------
    def _rotate_xyz_light(self, directions):
        # directions: [B, L, 3]
        x, y, z = directions[..., 0], directions[..., 1], directions[..., 2]
        cosp = jnp.sqrt(x * x + z * z)
        cosp = jnp.maximum(cosp, 1e-8)     # guard: light along +/- y
        cost = z / cosp
        sint = x / cosp
        B, L = x.shape
        Rn = jnp.zeros((B, L, 4, 4), jnp.float32)
        Rn = Rn.at[..., 0, 0].set(cost).at[..., 0, 1].set(-sint * y).at[..., 0, 2].set(cosp * sint)
        Rn = Rn.at[..., 1, 1].set(cosp).at[..., 1, 2].set(y)
        Rn = Rn.at[..., 2, 0].set(-sint).at[..., 2, 1].set(-cost * y).at[..., 2, 2].set(cosp * cost)
        Rn = Rn.at[..., 3, 3].set(1.0)
        return jnp.swapaxes(Rn, -1, -2)

    def _blur_matrices(self, sig):
        """Per-(batch,light) [R,R] separable-blur matrices (reflect pad + taps).

        Built with a static ks_max so a single compiled blur kernel handles all
        lights; the gaussian tap positions replicate the reference linspace.
        """
        R, K = self.R, self.ks_max
        n = sig.shape[0]
        ks = jnp.clip(2.0 * jnp.ceil(3.0 * sig) + 1.0, 1.0, float(K)).astype(jnp.int32)
        ks_f = ks.astype(jnp.float32)
        j = jnp.arange(K, dtype=jnp.float32)[None, :]
        lo = jnp.floor(-ks_f / 2.0)[:, None]
        hi = (jnp.floor(ks_f / 2.0) + 1.0)[:, None]
        denom = jnp.maximum(ks_f[:, None] - 1.0, 1.0)
        ts = lo + j * (hi - lo) / denom
        valid = (j < ks_f[:, None]).astype(jnp.float32)
        sig_safe = jnp.maximum(sig[:, None], 1e-12)
        gauss = jnp.exp(-0.5 * (ts / sig_safe) ** 2) * valid
        w = gauss / jnp.maximum(jnp.sum(gauss, axis=1, keepdims=True), 1e-30)
        w = jnp.where(ks[:, None] == 1,
                      (jnp.arange(K)[None, :] == 0).astype(jnp.float32), w)

        pad = ks // 2
        r = jnp.arange(R)[None, :, None]                     # [1,R,1]
        t = jnp.arange(K)[None, None, :]                     # [1,1,K]
        src = r + t - pad[:, None, None]                     # [n,R,K]
        src = jnp.where(src < 0, -src, src)                  # reflect (no edge repeat)
        src = jnp.where(src >= R, 2 * (R - 1) - src, src)
        src = jnp.clip(src, 0, R - 1)                        # safety for pad >= R
        Wm = jnp.zeros((n, R, R), jnp.float32)
        Wm = Wm.at[jnp.arange(n)[:, None, None], r, src].add(
            jnp.broadcast_to(w[:, None, :], (n, R, K)))
        return Wm

    # -- core (jitted once for the whole batch) ----------------------------
    def _forward_impl(self, depth, als, mask):
        R, L, M, N = self.R, self.L, self.M, self.N
        B = depth.shape[0]
        BL = B * L
        LR = L * R
        RR = R * R
        NR = N * R

        depth2d = depth[:, 0].astype(jnp.float32)            # [B,R,R]
        mask2d = mask[:, 0].astype(jnp.float32)

        # per-(batch,light) combined projection matrices: orth_proj @ mv @ local
        Rn_T = self._rotate_xyz_light(als[..., 0:3])                          # [B,L,4,4]
        mv = jnp.einsum('xy,blyz->blxz', jnp.asarray(self.m_dist_mat), Rn_T)
        T = jnp.einsum('xy,blyz,zw->blxw', jnp.asarray(self.orth_proj), mv,
                       jnp.asarray(self.local_mat)).astype(jnp.float32)       # [B,L,4,4]
        Tw = jnp.repeat(T.reshape(B, L, 16).transpose(0, 2, 1), R, axis=2)    # [B,16,L*R]

        depth_w = jnp.tile(depth2d, (1, 1, L))                                # [B,R,L*R]
        mask_w = jnp.tile(mask2d, (1, 1, L))

        # TODO(synk): at large R the blur/shadow blocks need an extra row-tile
        # grid axis to fit v7x's 64 MiB VMEM; trivially small at R=32.
        par = pltpu.CompilerParams(dimension_semantics=("parallel",),
                                   vmem_limit_bytes=48 * 1024 * 1024)

        gid_w, d_w, dsc_w = pl.pallas_call(
            functools.partial(_proj_kernel, tan_half_fov=self.tan_half_fov, res=R),
            grid=(B,),
            in_specs=[
                pl.BlockSpec((1, 16, LR), lambda b: (b, 0, 0)),   # per-light matrices
                pl.BlockSpec((3, R, LR), lambda b: (0, 0, 0)),    # hoisted const maps
                pl.BlockSpec((1, R, LR), lambda b: (b, 0, 0)),    # depth (tiled per light)
                pl.BlockSpec((1, R, LR), lambda b: (b, 0, 0)),    # mask
            ],
            out_specs=(
                pl.BlockSpec((1, R, LR), lambda b: (b, 0, 0)),
                pl.BlockSpec((1, R, LR), lambda b: (b, 0, 0)),
                pl.BlockSpec((1, R, LR), lambda b: (b, 0, 0)),
            ),
            out_shape=(
                jax.ShapeDtypeStruct((B, R, LR), jnp.int32),      # packed flat index
                jax.ShapeDtypeStruct((B, R, LR), jnp.float32),    # d
                jax.ShapeDtypeStruct((B, R, LR), jnp.float32),    # d (masked splat)
            ),
            compiler_params=par,
        )(Tw, self._cmap, depth_w, mask_w)

        # TODO(synk): point-splat scatter-min z-buffer stands in for dr.rasterize
        # (light view); plain XLA scatter, only masked pixels contribute.
        z_cat = jnp.ones((B, L * RR), jnp.float32).at[
            jnp.arange(B)[:, None], gid_w.reshape(B, L * RR)
        ].min(dsc_w.reshape(B, L * RR))
        z_maps = z_cat.reshape(BL, R, R)

        sig = (R / self.opts.resolution_optimize * (6.0 * als[..., 3] + 1.0) - 1.0) / 6.0
        Wb = self._blur_matrices(sig.reshape(BL))                              # [BL,R,R]
        WbT = jnp.transpose(Wb, (0, 2, 1))

        D_map = pl.pallas_call(
            functools.partial(_basis_blur_kernel, n_harm=M, res=R),
            grid=(BL,),
            in_specs=[
                pl.BlockSpec((1, R, R), lambda i: (i, 0, 0)),     # z_map
                pl.BlockSpec((1, R, R), lambda i: (i, 0, 0)),     # blur matrix
                pl.BlockSpec((1, R, R), lambda i: (i, 0, 0)),     # its transpose
            ],
            out_specs=pl.BlockSpec((1, R, NR), lambda i: (i, 0, 0)),
            out_shape=jax.ShapeDtypeStruct((BL, R, NR), jnp.float32),
            compiler_params=par,
        )(z_maps, Wb, WbT)

        # Channels-last table with z bundled so the footprint gather fetches one
        # contiguous (N+1)-vector per pixel using the packed flat index.
        D_cl = D_map.reshape(BL, R, N, R).transpose(0, 1, 3, 2)                # [BL,R,R,N]
        D_all = jnp.concatenate([D_cl, z_maps[..., None]], axis=-1)            # [BL,R,R,N+1]
        D_all_flat = D_all.reshape(BL * RR, N + 1)
        gidx = gid_w + (jnp.arange(B, dtype=jnp.int32) * (L * RR))[:, None, None]
        # TODO(synk): this footprint lookup remains an XLA gather; the next step
        # is an in-kernel DMA gather (PrefetchScalarGridSpec / make_async_copy).
        g = jnp.take(D_all_flat, gidx.reshape(-1), axis=0).reshape(B, R, LR, N + 1)
        g_t = jnp.transpose(g, (0, 3, 1, 2))                                   # [B,N+1,R,L*R]

        f_w, sf_w = pl.pallas_call(
            functools.partial(_shadow_kernel, n_harm=M, offset=self.offset,
                              clamp_value=self.clamp_value,
                              shadow_threshold=float(self.opts.shadow_threshold)),
            grid=(B,),
            in_specs=[
                pl.BlockSpec((1, R, LR), lambda b: (b, 0, 0)),            # d
                pl.BlockSpec((1, N + 1, R, LR), lambda b: (b, 0, 0, 0)),  # gathered D + z
            ],
            out_specs=(
                pl.BlockSpec((1, R, LR), lambda b: (b, 0, 0)),
                pl.BlockSpec((1, R, LR), lambda b: (b, 0, 0)),
            ),
            out_shape=(
                jax.ShapeDtypeStruct((B, R, LR), jnp.float32),
                jax.ShapeDtypeStruct((B, R, LR), jnp.float32),
            ),
            compiler_params=par,
        )(d_w, g_t)

        # wide [B, R, L*R] -> [B, L, R, R]
        hard = jnp.clip(f_w.reshape(B, R, L, R).transpose(0, 2, 1, 3), 0.0, 1.0)
        soft = jnp.clip(sf_w.reshape(B, R, L, R).transpose(0, 2, 1, 3), 0.0, 1.0)
        # TODO(synk): dr.rasterize/interpolate/antialias from the camera view have no
        # Pallas equivalent; values are computed densely per source pixel and the
        # final mask multiply restricts them to the mesh vertices (masked pixels).
        soft = mask * soft
        return mask * hard, mask * soft

    # -- public ------------------------------------------------------------
    def forward(self, depth, als, mask, train=True):
        if depth.shape[0] != als.shape[0] or als.shape[0] != mask.shape[0]:
            raise ValueError('depth, als, mask shape mismatch')
        # TODO(synk): `train` only gates dr.antialias in the reference; no equivalent here.
        hard, soft = self._run(depth, als, mask)
        return hard, soft


# --------------------------------------------------------------------------
if __name__ == "__main__":
    class Opts:
        focal_length = 50.0
        camera_distance = 2.0
        n_light = 4
        window = 1.0
        shadow_threshold = 0.001
        depth_threshold = 0.05
        resolution_optimize = 32
        device = None

    R = 32
    B = 2
    opts = Opts()
    sm = ShadowMappingPallas(opts, R)

    key = jax.random.PRNGKey(0)
    k_depth, k_dir, k_sig, k_int = jax.random.split(key, 4)
    depth = opts.camera_distance * (
        1.0 + 0.05 * jax.random.uniform(k_depth, (B, 1, R, R), jnp.float32))
    mask = jnp.zeros((B, 1, R, R), jnp.float32).at[:, :, 8:24, 8:24].set(1.0)
    dirs = jax.random.normal(k_dir, (B, opts.n_light, 3), jnp.float32)
    dirs = dirs.at[..., 2].set(jnp.abs(dirs[..., 2]) + 0.5)
    dirs = dirs / jnp.linalg.norm(dirs, axis=-1, keepdims=True)
    sigma = 0.3 + 0.6 * jax.random.uniform(k_sig, (B, opts.n_light, 1), jnp.float32)
    intensity = jax.random.uniform(k_int, (B, opts.n_light, 3), jnp.float32)
    als = jnp.concatenate([dirs, sigma, intensity], axis=-1)   # [B, n_light, 7]

    hard, soft = sm.forward(depth, als, mask, train=True)
    jax.block_until_ready((hard, soft))
    assert hard.shape == (B, opts.n_light, R, R)
    assert soft.shape == (B, opts.n_light, R, R)
    assert bool(jnp.all(jnp.isfinite(hard))) and bool(jnp.all(jnp.isfinite(soft)))
    print("KERNEL_OK")
</pallas_src>

<mosaic_0001>
module attributes {stable_mosaic.version = 11 : i64} {
  func.func private @main(%arg0: i32) attributes {dimension_semantics = [#tpu.dimension_semantics<core_parallel>], iteration_bounds = array<i64: 2>, tpu.core_type = #tpu.core_type<sc_scalar_subcore>, window_params = []} {
    return
  }
}

module attributes {stable_mosaic.version = 11 : i64} {
  func.func private @main(%arg0: i32) attributes {dimension_semantics = [#tpu.dimension_semantics<core_parallel>], iteration_bounds = array<i64: 2>, tpu.core_type = #tpu.core_type<sc_scalar_subcore>, window_params = []} {
    return
  }
}

module attributes {stable_mosaic.version = 11 : i64} {
  func.func @_proj_kernel(%arg0: i32, %arg1: memref<1x16x128xf32, #tpu.memory_space<vmem>>, %arg2: memref<3x32x128xf32, #tpu.memory_space<vmem>>, %arg3: memref<1x32x128xf32, #tpu.memory_space<vmem>>, %arg4: memref<1x32x128xf32, #tpu.memory_space<vmem>>, %arg5: memref<1x32x128xi32, #tpu.memory_space<vmem>>, %arg6: memref<1x32x128xf32, #tpu.memory_space<vmem>>, %arg7: memref<1x32x128xf32, #tpu.memory_space<vmem>>) attributes {dimension_semantics = [#tpu.dimension_semantics<parallel>], iteration_bounds = array<i64: 2>, scalar_prefetch = 0 : i64, scratch_operands = 0 : i64, tpu.core_type = #tpu.core_type<tc>, window_params = [{transform_indices = @transform_0, window_bounds = array<i64: 1, 16, 128>}, {pipeline_mode = #tpu.pipeline_mode<synchronous>, transform_indices = @transform_1, window_bounds = array<i64: 3, 32, 128>}, {transform_indices = @transform_2, window_bounds = array<i64: 1, 32, 128>}, {transform_indices = @transform_3, window_bounds = array<i64: 1, 32, 128>}, {transform_indices = @transform_4, window_bounds = array<i64: 1, 32, 128>}, {transform_indices = @transform_5, window_bounds = array<i64: 1, 32, 128>}, {transform_indices = @transform_6, window_bounds = array<i64: 1, 32, 128>}]} {
    %c0 = arith.constant 0 : index
    %c0_0 = arith.constant 0 : index
    %c0_1 = arith.constant 0 : index
    %0 = vector.load %arg3[%c0, %c0_0, %c0_1] : memref<1x32x128xf32, #tpu.memory_space<vmem>>, vector<1x32x128xf32>
    %1 = vector.shape_cast %0 : vector<1x32x128xf32> to vector<32x128xf32>
    %c0_2 = arith.constant 0 : index
    %c0_3 = arith.constant 0 : index
    %c0_4 = arith.constant 0 : index
    %2 = vector.load %arg4[%c0_2, %c0_3, %c0_4] : memref<1x32x128xf32, #tpu.memory_space<vmem>>, vector<1x32x128xf32>
    %3 = vector.shape_cast %2 : vector<1x32x128xf32> to vector<32x128xf32>
    %c0_5 = arith.constant 0 : index
    %c0_6 = arith.constant 0 : index
    %c0_7 = arith.constant 0 : index
    %4 = vector.load %arg2[%c0_5, %c0_6, %c0_7] : memref<3x32x128xf32, #tpu.memory_space<vmem>>, vector<1x32x128xf32>
    %5 = vector.shape_cast %4 : vector<1x32x128xf32> to vector<32x128xf32>
    %c1 = arith.constant 1 : index
    %c0_8 = arith.constant 0 : index
    %c0_9 = arith.constant 0 : index
    %6 = vector.load %arg2[%c1, %c0_8, %c0_9] : memref<3x32x128xf32, #tpu.memory_space<vmem>>, vector<1x32x128xf32>
    %7 = vector.shape_cast %6 : vector<1x32x128xf32> to vector<32x128xf32>
    %c2 = arith.constant 2 : index
    %c0_10 = arith.constant 0 : index
    %c0_11 = arith.constant 0 : index
    %8 = vector.load %arg2[%c2, %c0_10, %c0_11] : memref<3x32x128xf32, #tpu.memory_space<vmem>>, vector<1x32x128xf32>
    %9 = vector.shape_cast %8 : vector<1x32x128xf32> to vector<32x128xf32>
    %c0_12 = arith.constant 0 : index
    %c0_13 = arith.constant 0 : index
    %c0_14 = arith.constant 0 : index
    %10 = vector.load %arg1[%c0_12, %c0_13, %c0_14] : memref<1x16x128xf32, #tpu.memory_space<vmem>>, vector<1x16x128xf32>
    %11 = vector.shape_cast %10 : vector<1x16x128xf32> to vector<16x128xf32>
    %cst = arith.constant 0.000000e+00 : f32
    %12 = vector.broadcast %cst : f32 to vector<32x128xf32>
    %13 = arith.subf %12, %1 : vector<32x128xf32>
    %cst_15 = arith.constant 3.600000e-01 : f32
    %14 = vector.broadcast %cst_15 : f32 to vector<32x128xf32>
    %15 = arith.mulf %13, %14 : vector<32x128xf32>
    %16 = arith.mulf %15, %5 : vector<32x128xf32>
    %cst_16 = arith.constant 3.600000e-01 : f32
    %17 = vector.broadcast %cst_16 : f32 to vector<32x128xf32>
    %18 = arith.mulf %1, %17 : vector<32x128xf32>
    %19 = arith.mulf %18, %7 : vector<32x128xf32>
    %20 = vector.extract_strided_slice %11 {offsets = [0, 0], sizes = [1, 128], strides = [1, 1]} : vector<16x128xf32> to vector<1x128xf32>
    %21 = vector.broadcast %20 : vector<1x128xf32> to vector<32x128xf32>
    %22 = arith.mulf %21, %16 : vector<32x128xf32>
    %23 = vector.extract_strided_slice %11 {offsets = [1, 0], sizes = [1, 128], strides = [1, 1]} : vector<16x128xf32> to vector<1x128xf32>
    %24 = vector.broadcast %23 : vector<1x128xf32> to vector<32x128xf32>
    %25 = arith.mulf %24, %19 : vector<32x128xf32>
    %26 = arith.addf %22, %25 : vector<32x128xf32>
    %27 = vector.extract_strided_slice %11 {offsets = [2, 0], sizes = [1, 128], strides = [1, 1]} : vector<16x128xf32> to vector<1x128xf32>
    %28 = vector.broadcast %27 : vector<1x128xf32> to vector<32x128xf32>
    %29 = arith.mulf %28, %1 : vector<32x128xf32>
    %30 = arith.addf %26, %29 : vector<32x128xf32>
    %31 = vector.extract_strided_slice %11 {offsets = [3, 0], sizes = [1, 128], strides = [1, 1]} : vector<16x128xf32> to vector<1x128xf32>
    %32 = vector.broadcast %31 : vector<1x128xf32> to vector<32x128xf32>
    %33 = arith.addf %30, %32 : vector<32x128xf32>
    %34 = vector.extract_strided_slice %11 {offsets = [4, 0], sizes = [1, 128], strides = [1, 1]} : vector<16x128xf32> to vector<1x128xf32>
    %35 = vector.broadcast %34 : vector<1x128xf32> to vector<32x128xf32>
    %36 = arith.mulf %35, %16 : vector<32x128xf32>
    %37 = vector.extract_strided_slice %11 {offsets = [5, 0], sizes = [1, 128], strides = [1, 1]} : vector<16x128xf32> to vector<1x128xf32>
    %38 = vector.broadcast %37 : vector<1x128xf32> to vector<32x128xf32>
    %39 = arith.mulf %38, %19 : vector<32x128xf32>
    %40 = arith.addf %36, %39 : vector<32x128xf32>
    %41 = vector.extract_strided_slice %11 {offsets = [6, 0], sizes = [1, 128], strides = [1, 1]} : vector<16x128xf32> to vector<1x128xf32>
    %42 = vector.broadcast %41 : vector<1x128xf32> to vector<32x128xf32>
    %43 = arith.mulf %42, %1 : vector<32x128xf32>
    %44 = arith.addf %40, %43 : vector<32x128xf32>
    %45 = vector.extract_strided_slice %11 {offsets = [7, 0], sizes = [1, 128], strides = [1, 1]} : vector<16x128xf32> to vector<1x128xf32>
    %46 = vector.broadcast %45 : vector<1x128xf32> to vector<32x128xf32>
    %47 = arith.addf %44, %46 : vector<32x128xf32>
    %48 = vector.extract_strided_slice %11 {offsets = [8, 0], sizes = [1, 128], strides = [1, 1]} : vector<16x128xf32> to vector<1x128xf32>
    %49 = vector.broadcast %48 : vector<1x128xf32> to vector<32x128xf32>
    %50 = arith.mulf %49, %16 : vector<32x128xf32>
    %51 = vector.extract_strided_slice %11 {offsets = [9, 0], sizes = [1, 128], strides = [1, 1]} : vector<16x128xf32> to vector<1x128xf32>
    %52 = vector.broadcast %51 : vector<1x128xf32> to vector<32x128xf32>
    %53 = arith.mulf %52, %19 : vector<32x128xf32>
    %54 = arith.addf %50, %53 : vector<32x128xf32>
    %55 = vector.extract_strided_slice %11 {offsets = [10, 0], sizes = [1, 128], strides = [1, 1]} : vector<16x128xf32> to vector<1x128xf32>
    %56 = vector.broadcast %55 : vector<1x128xf32> to vector<32x128xf32>
    %57 = arith.mulf %56, %1 : vector<32x128xf32>
    %58 = arith.addf %54, %57 : vector<32x128xf32>
    %59 = vector.extract_strided_slice %11 {offsets = [11, 0], sizes = [1, 128], strides = [1, 1]} : vector<16x128xf32> to vector<1x128xf32>
    %60 = vector.broadcast %59 : vector<1x128xf32> to vector<32x128xf32>
    %61 = arith.addf %58, %60 : vector<32x128xf32>
    %62 = vector.extract_strided_slice %11 {offsets = [12, 0], sizes = [1, 128], strides = [1, 1]} : vector<16x128xf32> to vector<1x128xf32>
    %63 = vector.broadcast %62 : vector<1x128xf32> to vector<32x128xf32>
    %64 = arith.mulf %63, %16 : vector<32x128xf32>
    %65 = vector.extract_strided_slice %11 {offsets = [13, 0], sizes = [1, 128], strides = [1, 1]} : vector<16x128xf32> to vector<1x128xf32>
    %66 = vector.broadcast %65 : vector<1x128xf32> to vector<32x128xf32>
    %67 = arith.mulf %66, %19 : vector<32x128xf32>
    %68 = arith.addf %64, %67 : vector<32x128xf32>
    %69 = vector.extract_strided_slice %11 {offsets = [14, 0], sizes = [1, 128], strides = [1, 1]} : vector<16x128xf32> to vector<1x128xf32>
    %70 = vector.broadcast %69 : vector<1x128xf32> to vector<32x128xf32>
    %71 = arith.mulf %70, %1 : vector<32x128xf32>
    %72 = arith.addf %68, %71 : vector<32x128xf32>
    %73 = vector.extract_strided_slice %11 {offsets = [15, 0], sizes = [1, 128], strides = [1, 1]} : vector<16x128xf32> to vector<1x128xf32>
    %74 = vector.broadcast %73 : vector<1x128xf32> to vector<32x128xf32>
    %75 = arith.addf %72, %74 : vector<32x128xf32>
    %cst_17 = arith.constant 1.000000e+00 : f32
    %76 = vector.broadcast %cst_17 : f32 to vector<32x128xf32>
    %77 = arith.addf %33, %76 : vector<32x128xf32>
    %cst_18 = arith.constant 3.200000e+01 : f32
    %78 = vector.broadcast %cst_18 : f32 to vector<32x128xf32>
    %79 = arith.mulf %78, %77 : vector<32x128xf32>
    %cst_19 = arith.constant 5.000000e-01 : f32
    %80 = vector.broadcast %cst_19 : f32 to vector<32x128xf32>
    %81 = arith.mulf %79, %80 : vector<32x128xf32>
    %82 = arith.fptosi %81 : vector<32x128xf32> to vector<32x128xi32>
    %c0_i32 = arith.constant 0 : i32
    %c31_i32 = arith.constant 31 : i32
    %83 = vector.broadcast %c0_i32 : i32 to vector<32x128xi32>
    %84 = arith.maxsi %83, %82 : vector<32x128xi32>
    %85 = vector.broadcast %c31_i32 : i32 to vector<32x128xi32>
    %86 = arith.minsi %85, %84 : vector<32x128xi32>
    %cst_20 = arith.constant 1.000000e+00 : f32
    %87 = vector.broadcast %cst_20 : f32 to vector<32x128xf32>
    %88 = arith.addf %47, %87 : vector<32x128xf32>
    %cst_21 = arith.constant 3.200000e+01 : f32
    %89 = vector.broadcast %cst_21 : f32 to vector<32x128xf32>
    %90 = arith.mulf %89, %88 : vector<32x128xf32>
    %cst_22 = arith.constant 5.000000e-01 : f32
    %91 = vector.broadcast %cst_22 : f32 to vector<32x128xf32>
    %92 = arith.mulf %90, %91 : vector<32x128xf32>
    %93 = arith.fptosi %92 : vector<32x128xf32> to vector<32x128xi32>
    %c0_i32_23 = arith.constant 0 : i32
    %c31_i32_24 = arith.constant 31 : i32
    %94 = vector.broadcast %c0_i32_23 : i32 to vector<32x128xi32>
    %95 = arith.maxsi %94, %93 : vector<32x128xi32>
    %96 = vector.broadcast %c31_i32_24 : i32 to vector<32x128xi32>
    %97 = arith.minsi %96, %95 : vector<32x128xi32>
    %98 = arith.divf %61, %75 : vector<32x128xf32>
    %cst_25 = arith.constant 1.000000e+00 : f32
    %99 = vector.broadcast %cst_25 : f32 to vector<32x128xf32>
    %100 = arith.addf %99, %98 : vector<32x128xf32>
    %cst_26 = arith.constant 5.000000e-01 : f32
    %101 = vector.broadcast %cst_26 : f32 to vector<32x128xf32>
    %102 = arith.mulf %101, %100 : vector<32x128xf32>
    %cst_27 = arith.constant 0.000000e+00 : f32
    %cst_28 = arith.constant 1.000000e+00 : f32
    %103 = vector.broadcast %cst_27 : f32 to vector<32x128xf32>
    %104 = arith.maximumf %103, %102 : vector<32x128xf32>
    %105 = vector.broadcast %cst_28 : f32 to vector<32x128xf32>
    %106 = arith.minimumf %105, %104 : vector<32x128xf32>
    %107 = arith.fptosi %9 : vector<32x128xf32> to vector<32x128xi32>
    %c32_i32 = arith.constant 32 : i32
    %108 = vector.broadcast %c32_i32 : i32 to vector<32x128xi32>
    %109 = arith.muli %97, %108 : vector<32x128xi32>
    %110 = arith.addi %107, %109 : vector<32x128xi32>
    %111 = arith.addi %110, %86 : vector<32x128xi32>
    %c0_29 = arith.constant 0 : index
    %c0_30 = arith.constant 0 : index
    %c0_31 = arith.constant 0 : index
    %112 = vector.load %arg5[%c0_29, %c0_30, %c0_31] : memref<1x32x128xi32, #tpu.memory_space<vmem>>, vector<1x32x128xi32>
    %113 = vector.shape_cast %112 : vector<1x32x128xi32> to vector<32x128xi32>
    %114 = vector.shape_cast %111 : vector<32x128xi32> to vector<1x32x128xi32>
    tpu.vector_store %arg5[%c0_29, %c0_30, %c0_31], %114 {strides = array<i32>} : memref<1x32x128xi32, #tpu.memory_space<vmem>>, vector<1x32x128xi32>,
    %c0_32 = arith.constant 0 : index
    %c0_33 = arith.constant 0 : index
    %c0_34 = arith.constant 0 : index
    %115 = vector.load %arg6[%c0_32, %c0_33, %c0_34] : memref<1x32x128xf32, #tpu.memory_space<vmem>>, vector<1x32x128xf32>
    %116 = vector.shape_cast %115 : vector<1x32x128xf32> to vector<32x128xf32>
    %117 = vector.shape_cast %106 : vector<32x128xf32> to vector<1x32x128xf32>
    tpu.vector_store %arg6[%c0_32, %c0_33, %c0_34], %117 {strides = array<i32>} : memref<1x32x128xf32, #tpu.memory_space<vmem>>, vector<1x32x128xf32>,
    %cst_35 = arith.constant 0.000000e+00 : f32
    %118 = vector.broadcast %cst_35 : f32 to vector<32x128xf32>
    %119 = arith.cmpf ogt, %3, %118 : vector<32x128xf32>
    %cst_36 = arith.constant 1.000000e+00 : f32
    %120 = vector.broadcast %cst_36 : f32 to vector<32x128xf32>
    %121 = arith.select %119, %106, %120 : vector<32x128xi1>, vector<32x128xf32>
    %c0_37 = arith.constant 0 : index
    %c0_38 = arith.constant 0 : index
    %c0_39 = arith.constant 0 : index
    %122 = vector.load %arg7[%c0_37, %c0_38, %c0_39] : memref<1x32x128xf32, #tpu.memory_space<vmem>>, vector<1x32x128xf32>
    %123 = vector.shape_cast %122 : vector<1x32x128xf32> to vector<32x128xf32>
    %124 = vector.shape_cast %121 : vector<32x128xf32> to vector<1x32x128xf32>
    tpu.vector_store %arg7[%c0_37, %c0_38, %c0_39], %124 {strides = array<i32>} : memref<1x32x128xf32, #tpu.memory_space<vmem>>, vector<1x32x128xf32>,
    return
  }
  func.func @transform_0(%arg0: i32) -> (i32, i32, i32) {
    %c0_i32 = arith.constant 0 : i32
    %c0_i32_0 = arith.constant 0 : i32
    %c0_i32_1 = arith.constant 0 : i32
    return %arg0, %c0_i32, %c0_i32_0 : i32, i32, i32
  }
  func.func @transform_1(%arg0: i32) -> (i32, i32, i32) {
    %c0_i32 = arith.constant 0 : i32
    %c0_i32_0 = arith.constant 0 : i32
    %c0_i32_1 = arith.constant 0 : i32
    %c0_i32_2 = arith.constant 0 : i32
    return %c0_i32, %c0_i32_0, %c0_i32_1 : i32, i32, i32
  }
  func.func @transform_2(%arg0: i32) -> (i32, i32, i32) {
    %c0_i32 = arith.constant 0 : i32
    %c0_i32_0 = arith.constant 0 : i32
    %c0_i32_1 = arith.constant 0 : i32
    return %arg0, %c0_i32, %c0_i32_0 : i32, i32, i32
  }
  func.func @transform_3(%arg0: i32) -> (i32, i32, i32) {
    %c0_i32 = arith.constant 0 : i32
    %c0_i32_0 = arith.constant 0 : i32
    %c0_i32_1 = arith.constant 0 : i32
    return %arg0, %c0_i32, %c0_i32_0 : i32, i32, i32
  }
  func.func @transform_4(%arg0: i32) -> (i32, i32, i32) {
    %c0_i32 = arith.constant 0 : i32
    %c0_i32_0 = arith.constant 0 : i32
    %c0_i32_1 = arith.constant 0 : i32
    return %arg0, %c0_i32, %c0_i32_0 : i32, i32, i32
  }
  func.func @transform_5(%arg0: i32) -> (i32, i32, i32) {
    %c0_i32 = arith.constant 0 : i32
    %c0_i32_0 = arith.constant 0 : i32
    %c0_i32_1 = arith.constant 0 : i32
    return %arg0, %c0_i32, %c0_i32_0 : i32, i32, i32
  }
  func.func @transform_6(%arg0: i32) -> (i32, i32, i32) {
    %c0_i32 = arith.constant 0 : i32
    %c0_i32_0 = arith.constant 0 : i32
    %c0_i32_1 = arith.constant 0 : i32
    return %arg0, %c0_i32, %c0_i32_0 : i32, i32, i32
  }
}

module attributes {stable_mosaic.version = 11 : i64} {
  func.func @_basis_blur_kernel(%arg0: i32, %arg1: memref<1x32x32xf32, #tpu.memory_space<vmem>>, %arg2: memref<1x32x32xf32, #tpu.memory_space<vmem>>, %arg3: memref<1x32x32xf32, #tpu.memory_space<vmem>>, %arg4: memref<1x32x256xf32, #tpu.memory_space<vmem>>) attributes {dimension_semantics = [#tpu.dimension_semantics<parallel>], iteration_bounds = array<i64: 8>, scalar_prefetch = 0 : i64, scratch_operands = 0 : i64, tpu.core_type = #tpu.core_type<tc>, window_params = [{transform_indices = @transform_0, window_bounds = array<i64: 1, 32, 32>}, {transform_indices = @transform_1, window_bounds = array<i64: 1, 32, 32>}, {transform_indices = @transform_2, window_bounds = array<i64: 1, 32, 32>}, {transform_indices = @transform_3, window_bounds = array<i64: 1, 32, 256>}]} {
    %c0 = arith.constant 0 : index
    %c0_0 = arith.constant 0 : index
    %c0_1 = arith.constant 0 : index
    %0 = vector.load %arg1[%c0, %c0_0, %c0_1] : memref<1x32x32xf32, #tpu.memory_space<vmem>>, vector<1x32x32xf32>
    %1 = vector.shape_cast %0 : vector<1x32x32xf32> to vector<32x32xf32>
    %cst = arith.constant 3.14159274 : f32
    %2 = vector.broadcast %cst : f32 to vector<32x32xf32>
    %3 = arith.mulf %2, %1 : vector<32x32xf32>
    %4 = math.cos %3 : vector<32x32xf32>
    %5 = math.sin %3 : vector<32x32xf32>
    %cst_2 = arith.constant 2.000000e+00 : f32
    %6 = vector.broadcast %cst_2 : f32 to vector<32x32xf32>
    %7 = arith.mulf %6, %4 : vector<32x32xf32>
    %8 = arith.mulf %7, %4 : vector<32x32xf32>
    %cst_3 = arith.constant 1.000000e+00 : f32
    %9 = vector.broadcast %cst_3 : f32 to vector<32x32xf32>
    %10 = arith.subf %8, %9 : vector<32x32xf32>
    %cst_4 = arith.constant 2.000000e+00 : f32
    %11 = vector.broadcast %cst_4 : f32 to vector<32x32xf32>
    %12 = arith.mulf %11, %5 : vector<32x32xf32>
    %13 = arith.mulf %12, %4 : vector<32x32xf32>
    %14 = arith.mulf %4, %10 : vector<32x32xf32>
    %15 = arith.mulf %5, %13 : vector<32x32xf32>
    %16 = arith.subf %14, %15 : vector<32x32xf32>
    %17 = arith.mulf %5, %10 : vector<32x32xf32>
    %18 = arith.mulf %4, %13 : vector<32x32xf32>
    %19 = arith.addf %17, %18 : vector<32x32xf32>
    %20 = arith.mulf %16, %10 : vector<32x32xf32>
    %21 = arith.mulf %19, %13 : vector<32x32xf32>
    %22 = arith.subf %20, %21 : vector<32x32xf32>
    %23 = arith.mulf %19, %10 : vector<32x32xf32>
    %24 = arith.mulf %16, %13 : vector<32x32xf32>
    %25 = arith.addf %23, %24 : vector<32x32xf32>
    %26 = arith.mulf %22, %10 : vector<32x32xf32>
    %27 = arith.mulf %25, %13 : vector<32x32xf32>
    %28 = arith.subf %26, %27 : vector<32x32xf32>
    %29 = arith.mulf %25, %10 : vector<32x32xf32>
    %30 = arith.mulf %22, %13 : vector<32x32xf32>
    %31 = arith.addf %29, %30 : vector<32x32xf32>
    %32 = tpu.concatenate %4, %5, %16, %19, %22, %25, %28, %31 in 0 : vector<32x32xf32>, vector<32x32xf32>, vector<32x32xf32>, vector<32x32xf32>, vector<32x32xf32>, vector<32x32xf32>, vector<32x32xf32>, vector<32x32xf32> -> vector<256x32xf32>
    %c0_5 = arith.constant 0 : index
    %c0_6 = arith.constant 0 : index
    %c0_7 = arith.constant 0 : index
    %33 = vector.load %arg3[%c0_5, %c0_6, %c0_7] : memref<1x32x32xf32, #tpu.memory_space<vmem>>, vector<1x32x32xf32>
    %34 = vector.shape_cast %33 : vector<1x32x32xf32> to vector<32x32xf32>
    %cst_8 = arith.constant dense<0.000000e+00> : vector<256x32xf32>
    %35 = tpu.matmul %32, %34, %cst_8 {dimension_numbers = #tpu.dot_dimension_numbers<[1], [0], [0], [1], [0, 0, 1, 1], [], []>} : vector<256x32xf32>, vector<32x32xf32>, vector<256x32xf32> -> vector<256x32xf32>
    %36 = vector.extract_strided_slice %35 {offsets = [0, 0], sizes = [32, 32], strides = [1, 1]} : vector<256x32xf32> to vector<32x32xf32>
    %37 = vector.extract_strided_slice %35 {offsets = [32, 0], sizes = [32, 32], strides = [1, 1]} : vector<256x32xf32> to vector<32x32xf32>
    %38 = vector.extract_strided_slice %35 {offsets = [64, 0], sizes = [32, 32], strides = [1, 1]} : vector<256x32xf32> to vector<32x32xf32>
    %39 = vector.extract_strided_slice %35 {offsets = [96, 0], sizes = [32, 32], strides = [1, 1]} : vector<256x32xf32> to vector<32x32xf32>
    %40 = vector.extract_strided_slice %35 {offsets = [128, 0], sizes = [32, 32], strides = [1, 1]} : vector<256x32xf32> to vector<32x32xf32>
    %41 = vector.extract_strided_slice %35 {offsets = [160, 0], sizes = [32, 32], strides = [1, 1]} : vector<256x32xf32> to vector<32x32xf32>
    %42 = vector.extract_strided_slice %35 {offsets = [192, 0], sizes = [32, 32], strides = [1, 1]} : vector<256x32xf32> to vector<32x32xf32>
    %43 = vector.extract_strided_slice %35 {offsets = [224, 0], sizes = [32, 32], strides = [1, 1]} : vector<256x32xf32> to vector<32x32xf32>
    %44 = tpu.concatenate %36, %37, %38, %39, %40, %41, %42, %43 in 1 : vector<32x32xf32>, vector<32x32xf32>, vector<32x32xf32>, vector<32x32xf32>, vector<32x32xf32>, vector<32x32xf32>, vector<32x32xf32>, vector<32x32xf32> -> vector<32x256xf32>
    %c0_9 = arith.constant 0 : index
    %c0_10 = arith.constant 0 : index
    %c0_11 = arith.constant 0 : index
    %45 = vector.load %arg2[%c0_9, %c0_10, %c0_11] : memref<1x32x32xf32, #tpu.memory_space<vmem>>, vector<1x32x32xf32>
    %46 = vector.shape_cast %45 : vector<1x32x32xf32> to vector<32x32xf32>
    %cst_12 = arith.constant dense<0.000000e+00> : vector<32x256xf32>
    %47 = tpu.matmul %46, %44, %cst_12 {dimension_numbers = #tpu.dot_dimension_numbers<[1], [0], [0], [1], [0, 0, 1, 1], [], []>} : vector<32x32xf32>, vector<32x256xf32>, vector<32x256xf32> -> vector<32x256xf32>
    %c0_13 = arith.constant 0 : index
    %c0_14 = arith.constant 0 : index
    %c0_15 = arith.constant 0 : index
    %48 = vector.load %arg4[%c0_13, %c0_14, %c0_15] : memref<1x32x256xf32, #tpu.memory_space<vmem>>, vector<1x32x256xf32>
    %49 = vector.shape_cast %48 : vector<1x32x256xf32> to vector<32x256xf32>
    %50 = vector.shape_cast %47 : vector<32x256xf32> to vector<1x32x256xf32>
    tpu.vector_store %arg4[%c0_13, %c0_14, %c0_15], %50 {strides = array<i32>} : memref<1x32x256xf32, #tpu.memory_space<vmem>>, vector<1x32x256xf32>,
    return
  }
  func.func @transform_0(%arg0: i32) -> (i32, i32, i32) {
    %c0_i32 = arith.constant 0 : i32
    %c0_i32_0 = arith.constant 0 : i32
    %c0_i32_1 = arith.constant 0 : i32
    return %arg0, %c0_i32, %c0_i32_0 : i32, i32, i32
  }
  func.func @transform_1(%arg0: i32) -> (i32, i32, i32) {
    %c0_i32 = arith.constant 0 : i32
    %c0_i32_0 = arith.constant 0 : i32
    %c0_i32_1 = arith.constant 0 : i32
    return %arg0, %c0_i32, %c0_i32_0 : i32, i32, i32
  }
  func.func @transform_2(%arg0: i32) -> (i32, i32, i32) {
    %c0_i32 = arith.constant 0 : i32
    %c0_i32_0 = arith.constant 0 : i32
    %c0_i32_1 = arith.constant 0 : i32
    return %arg0, %c0_i32, %c0_i32_0 : i32, i32, i32
  }
  func.func @transform_3(%arg0: i32) -> (i32, i32, i32) {
    %c0_i32 = arith.constant 0 : i32
    %c0_i32_0 = arith.constant 0 : i32
    %c0_i32_1 = arith.constant 0 : i32
    return %arg0, %c0_i32, %c0_i32_0 : i32, i32, i32
  }
}

module attributes {stable_mosaic.version = 11 : i64} {
  func.func @_shadow_kernel(%arg0: i32, %arg1: memref<1x32x128xf32, #tpu.memory_space<vmem>>, %arg2: memref<1x9x32x128xf32, #tpu.memory_space<vmem>>, %arg3: memref<1x32x128xf32, #tpu.memory_space<vmem>>, %arg4: memref<1x32x128xf32, #tpu.memory_space<vmem>>) attributes {dimension_semantics = [#tpu.dimension_semantics<parallel>], iteration_bounds = array<i64: 2>, scalar_prefetch = 0 : i64, scratch_operands = 0 : i64, tpu.core_type = #tpu.core_type<tc>, window_params = [{transform_indices = @transform_0, window_bounds = array<i64: 1, 32, 128>}, {transform_indices = @transform_1, window_bounds = array<i64: 1, 9, 32, 128>}, {transform_indices = @transform_2, window_bounds = array<i64: 1, 32, 128>}, {transform_indices = @transform_3, window_bounds = array<i64: 1, 32, 128>}]} {
    %c0 = arith.constant 0 : index
    %c0_0 = arith.constant 0 : index
    %c0_1 = arith.constant 0 : index
    %0 = vector.load %arg1[%c0, %c0_0, %c0_1] : memref<1x32x128xf32, #tpu.memory_space<vmem>>, vector<1x32x128xf32>
    %1 = vector.shape_cast %0 : vector<1x32x128xf32> to vector<32x128xf32>
    %c0_2 = arith.constant 0 : index
    %c8 = arith.constant 8 : index
    %c0_3 = arith.constant 0 : index
    %c0_4 = arith.constant 0 : index
    %2 = vector.load %arg2[%c0_2, %c8, %c0_3, %c0_4] : memref<1x9x32x128xf32, #tpu.memory_space<vmem>>, vector<1x1x32x128xf32>
    %3 = vector.shape_cast %2 : vector<1x1x32x128xf32> to vector<32x128xf32>
    %cst = arith.constant -0.0642233267 : f32
    %4 = vector.broadcast %cst : f32 to vector<32x128xf32>
    %5 = arith.addf %1, %4 : vector<32x128xf32>
    %cst_5 = arith.constant 3.14159274 : f32
    %6 = vector.broadcast %cst_5 : f32 to vector<32x128xf32>
    %7 = arith.mulf %6, %5 : vector<32x128xf32>
    %8 = math.cos %7 : vector<32x128xf32>
    %9 = math.sin %7 : vector<32x128xf32>
    %cst_6 = arith.constant 2.000000e+00 : f32
    %10 = vector.broadcast %cst_6 : f32 to vector<32x128xf32>
    %11 = arith.mulf %10, %8 : vector<32x128xf32>
    %12 = arith.mulf %11, %8 : vector<32x128xf32>
    %cst_7 = arith.constant 1.000000e+00 : f32
    %13 = vector.broadcast %cst_7 : f32 to vector<32x128xf32>
    %14 = arith.subf %12, %13 : vector<32x128xf32>
    %cst_8 = arith.constant 2.000000e+00 : f32
    %15 = vector.broadcast %cst_8 : f32 to vector<32x128xf32>
    %16 = arith.mulf %15, %9 : vector<32x128xf32>
    %17 = arith.mulf %16, %8 : vector<32x128xf32>
    %cst_9 = arith.constant 0.000000e+00 : f32
    %18 = vector.broadcast %cst_9 : f32 to vector<32x128xf32>
    %cst_10 = arith.constant -0.636619746 : f32
    %19 = vector.broadcast %cst_10 : f32 to vector<32x128xf32>
    %20 = arith.mulf %19, %9 : vector<32x128xf32>
    %c0_11 = arith.constant 0 : index
    %c0_12 = arith.constant 0 : index
    %c0_13 = arith.constant 0 : index
    %c0_14 = arith.constant 0 : index
    %21 = vector.load %arg2[%c0_11, %c0_12, %c0_13, %c0_14] : memref<1x9x32x128xf32, #tpu.memory_space<vmem>>, vector<1x1x32x128xf32>
    %22 = vector.shape_cast %21 : vector<1x1x32x128xf32> to vector<32x128xf32>
    %23 = arith.mulf %20, %22 : vector<32x128xf32>
    %24 = arith.addf %18, %23 : vector<32x128xf32>
    %cst_15 = arith.constant 0.636619746 : f32
    %25 = vector.broadcast %cst_15 : f32 to vector<32x128xf32>
    %26 = arith.mulf %25, %8 : vector<32x128xf32>
    %c0_16 = arith.constant 0 : index
    %c1 = arith.constant 1 : index
    %c0_17 = arith.constant 0 : index
    %c0_18 = arith.constant 0 : index
    %27 = vector.load %arg2[%c0_16, %c1, %c0_17, %c0_18] : memref<1x9x32x128xf32, #tpu.memory_space<vmem>>, vector<1x1x32x128xf32>
    %28 = vector.shape_cast %27 : vector<1x1x32x128xf32> to vector<32x128xf32>
    %29 = arith.mulf %26, %28 : vector<32x128xf32>
    %30 = arith.addf %24, %29 : vector<32x128xf32>
    %31 = arith.mulf %8, %14 : vector<32x128xf32>
    %32 = arith.mulf %9, %17 : vector<32x128xf32>
    %33 = arith.subf %31, %32 : vector<32x128xf32>
    %34 = arith.mulf %9, %14 : vector<32x128xf32>
    %35 = arith.mulf %8, %17 : vector<32x128xf32>
    %36 = arith.addf %34, %35 : vector<32x128xf32>
    %cst_19 = arith.constant -0.212206587 : f32
    %37 = vector.broadcast %cst_19 : f32 to vector<32x128xf32>
    %38 = arith.mulf %37, %36 : vector<32x128xf32>
    %c0_20 = arith.constant 0 : index
    %c2 = arith.constant 2 : index
    %c0_21 = arith.constant 0 : index
    %c0_22 = arith.constant 0 : index
    %39 = vector.load %arg2[%c0_20, %c2, %c0_21, %c0_22] : memref<1x9x32x128xf32, #tpu.memory_space<vmem>>, vector<1x1x32x128xf32>
    %40 = vector.shape_cast %39 : vector<1x1x32x128xf32> to vector<32x128xf32>
    %41 = arith.mulf %38, %40 : vector<32x128xf32>
    %42 = arith.addf %30, %41 : vector<32x128xf32>
    %cst_23 = arith.constant 0.212206587 : f32
    %43 = vector.broadcast %cst_23 : f32 to vector<32x128xf32>
    %44 = arith.mulf %43, %33 : vector<32x128xf32>
    %c0_24 = arith.constant 0 : index
    %c3 = arith.constant 3 : index
    %c0_25 = arith.constant 0 : index
    %c0_26 = arith.constant 0 : index
    %45 = vector.load %arg2[%c0_24, %c3, %c0_25, %c0_26] : memref<1x9x32x128xf32, #tpu.memory_space<vmem>>, vector<1x1x32x128xf32>
    %46 = vector.shape_cast %45 : vector<1x1x32x128xf32> to vector<32x128xf32>
    %47 = arith.mulf %44, %46 : vector<32x128xf32>
    %48 = arith.addf %42, %47 : vector<32x128xf32>
    %49 = arith.mulf %33, %14 : vector<32x128xf32>
    %50 = arith.mulf %36, %17 : vector<32x128xf32>
    %51 = arith.subf %49, %50 : vector<32x128xf32>
    %52 = arith.mulf %36, %14 : vector<32x128xf32>
    %53 = arith.mulf %33, %17 : vector<32x128xf32>
    %54 = arith.addf %52, %53 : vector<32x128xf32>
    %cst_27 = arith.constant -0.127323955 : f32
    %55 = vector.broadcast %cst_27 : f32 to vector<32x128xf32>
    %56 = arith.mulf %55, %54 : vector<32x128xf32>
    %c0_28 = arith.constant 0 : index
    %c4 = arith.constant 4 : index
    %c0_29 = arith.constant 0 : index
    %c0_30 = arith.constant 0 : index
    %57 = vector.load %arg2[%c0_28, %c4, %c0_29, %c0_30] : memref<1x9x32x128xf32, #tpu.memory_space<vmem>>, vector<1x1x32x128xf32>
    %58 = vector.shape_cast %57 : vector<1x1x32x128xf32> to vector<32x128xf32>
    %59 = arith.mulf %56, %58 : vector<32x128xf32>
    %60 = arith.addf %48, %59 : vector<32x128xf32>
    %cst_31 = arith.constant 0.127323955 : f32
    %61 = vector.broadcast %cst_31 : f32 to vector<32x128xf32>
    %62 = arith.mulf %61, %51 : vector<32x128xf32>
    %c0_32 = arith.constant 0 : index
    %c5 = arith.constant 5 : index
    %c0_33 = arith.constant 0 : index
    %c0_34 = arith.constant 0 : index
    %63 = vector.load %arg2[%c0_32, %c5, %c0_33, %c0_34] : memref<1x9x32x128xf32, #tpu.memory_space<vmem>>, vector<1x1x32x128xf32>
    %64 = vector.shape_cast %63 : vector<1x1x32x128xf32> to vector<32x128xf32>
    %65 = arith.mulf %62, %64 : vector<32x128xf32>
    %66 = arith.addf %60, %65 : vector<32x128xf32>
    %67 = arith.mulf %51, %14 : vector<32x128xf32>
    %68 = arith.mulf %54, %17 : vector<32x128xf32>
    %69 = arith.subf %67, %68 : vector<32x128xf32>
    %70 = arith.mulf %54, %14 : vector<32x128xf32>
    %71 = arith.mulf %51, %17 : vector<32x128xf32>
    %72 = arith.addf %70, %71 : vector<32x128xf32>
    %cst_35 = arith.constant -0.0909456834 : f32
    %73 = vector.broadcast %cst_35 : f32 to vector<32x128xf32>
    %74 = arith.mulf %73, %72 : vector<32x128xf32>
    %c0_36 = arith.constant 0 : index
    %c6 = arith.constant 6 : index
    %c0_37 = arith.constant 0 : index
    %c0_38 = arith.constant 0 : index
    %75 = vector.load %arg2[%c0_36, %c6, %c0_37, %c0_38] : memref<1x9x32x128xf32, #tpu.memory_space<vmem>>, vector<1x1x32x128xf32>
    %76 = vector.shape_cast %75 : vector<1x1x32x128xf32> to vector<32x128xf32>
    %77 = arith.mulf %74, %76 : vector<32x128xf32>
    %78 = arith.addf %66, %77 : vector<32x128xf32>
    %cst_39 = arith.constant 0.0909456834 : f32
    %79 = vector.broadcast %cst_39 : f32 to vector<32x128xf32>
    %80 = arith.mulf %79, %69 : vector<32x128xf32>
    %c0_40 = arith.constant 0 : index
    %c7 = arith.constant 7 : index
    %c0_41 = arith.constant 0 : index
    %c0_42 = arith.constant 0 : index
    %81 = vector.load %arg2[%c0_40, %c7, %c0_41, %c0_42] : memref<1x9x32x128xf32, #tpu.memory_space<vmem>>, vector<1x1x32x128xf32>
    %82 = vector.shape_cast %81 : vector<1x1x32x128xf32> to vector<32x128xf32>
    %83 = arith.mulf %80, %82 : vector<32x128xf32>
    %84 = arith.addf %78, %83 : vector<32x128xf32>
    %cst_43 = arith.constant -0.445870936 : f32
    %cst_44 = arith.constant 0.445870936 : f32
    %85 = vector.broadcast %cst_43 : f32 to vector<32x128xf32>
    %86 = arith.maximumf %85, %84 : vector<32x128xf32>
    %87 = vector.broadcast %cst_44 : f32 to vector<32x128xf32>
    %88 = arith.minimumf %87, %86 : vector<32x128xf32>
    %cst_45 = arith.constant 2.24280143 : f32
    %89 = vector.broadcast %cst_45 : f32 to vector<32x128xf32>
    %90 = arith.mulf %88, %89 : vector<32x128xf32>
    %cst_46 = arith.constant 1.000000e+00 : f32
    %91 = vector.broadcast %cst_46 : f32 to vector<32x128xf32>
    %92 = arith.addf %90, %91 : vector<32x128xf32>
    %cst_47 = arith.constant 5.000000e-01 : f32
    %93 = vector.broadcast %cst_47 : f32 to vector<32x128xf32>
    %94 = arith.mulf %93, %92 : vector<32x128xf32>
    %c0_48 = arith.constant 0 : index
    %c0_49 = arith.constant 0 : index
    %c0_50 = arith.constant 0 : index
    %95 = vector.load %arg4[%c0_48, %c0_49, %c0_50] : memref<1x32x128xf32, #tpu.memory_space<vmem>>, vector<1x32x128xf32>
    %96 = vector.shape_cast %95 : vector<1x32x128xf32> to vector<32x128xf32>
    %97 = vector.shape_cast %94 : vector<32x128xf32> to vector<1x32x128xf32>
    tpu.vector_store %arg4[%c0_48, %c0_49, %c0_50], %97 {strides = array<i32>} : memref<1x32x128xf32, #tpu.memory_space<vmem>>, vector<1x32x128xf32>,
    %98 = arith.subf %1, %3 : vector<32x128xf32>
    %cst_51 = arith.constant 0.000000e+00 : f32
    %99 = vector.broadcast %cst_51 : f32 to vector<32x128xf32>
    %100 = arith.maximumf %98, %99 : vector<32x128xf32>
    %cst_52 = arith.constant 1.000000e-03 : f32
    %101 = vector.broadcast %cst_52 : f32 to vector<32x128xf32>
    %102 = arith.cmpf ogt, %100, %101 : vector<32x128xf32>
    %cst_53 = arith.constant 0.000000e+00 : f32
    %cst_54 = arith.constant 1.000000e+00 : f32
    %103 = vector.broadcast %cst_53 : f32 to vector<32x128xf32>
    %104 = vector.broadcast %cst_54 : f32 to vector<32x128xf32>
    %105 = arith.select %102, %103, %104 : vector<32x128xi1>, vector<32x128xf32>
    %c0_55 = arith.constant 0 : index
    %c0_56 = arith.constant 0 : index
    %c0_57 = arith.constant 0 : index
    %106 = vector.load %arg3[%c0_55, %c0_56, %c0_57] : memref<1x32x128xf32, #tpu.memory_space<vmem>>, vector<1x32x128xf32>
    %107 = vector.shape_cast %106 : vector<1x32x128xf32> to vector<32x128xf32>
    %108 = vector.shape_cast %105 : vector<32x128xf32> to vector<1x32x128xf32>
    tpu.vector_store %arg3[%c0_55, %c0_56, %c0_57], %108 {strides = array<i32>} : memref<1x32x128xf32, #tpu.memory_space<vmem>>, vector<1x32x128xf32>,
    return
  }
  func.func @transform_0(%arg0: i32) -> (i32, i32, i32) {
    %c0_i32 = arith.constant 0 : i32
    %c0_i32_0 = arith.constant 0 : i32
    %c0_i32_1 = arith.constant 0 : i32
    return %arg0, %c0_i32, %c0_i32_0 : i32, i32, i32
  }
  func.func @transform_1(%arg0: i32) -> (i32, i32, i32, i32) {
    %c0_i32 = arith.constant 0 : i32
    %c0_i32_0 = arith.constant 0 : i32
    %c0_i32_1 = arith.constant 0 : i32
    %c0_i32_2 = arith.constant 0 : i32
    return %arg0, %c0_i32, %c0_i32_0, %c0_i32_1 : i32, i32, i32, i32
  }
  func.func @transform_2(%arg0: i32) -> (i32, i32, i32) {
    %c0_i32 = arith.constant 0 : i32
    %c0_i32_0 = arith.constant 0 : i32
    %c0_i32_1 = arith.constant 0 : i32
    return %arg0, %c0_i32, %c0_i32_0 : i32, i32, i32
  }
  func.func @transform_3(%arg0: i32) -> (i32, i32, i32) {
    %c0_i32 = arith.constant 0 : i32
    %c0_i32_0 = arith.constant 0 : i32
    %c0_i32_1 = arith.constant 0 : i32
    return %arg0, %c0_i32, %c0_i32_0 : i32, i32, i32
  }
}

</mosaic_0001>

<llo_original>
// kernel: tile.11
$region0: #{tile.11}
  %s0 = inlined_call_operand.vmem [shape: f32[2,32,4,32], index: 0, kind: input, shape index: {}]
  %s1 = inlined_call_operand.vmem [shape: f32[2,32,128], index: 1, kind: output, shape index: {}]
  $region1: #{tile.11} parent=0
    #allocation0 [shape = 'u8[262144]{0}', space=vmem, size = 0x40000, scoped, tag = 'scoped mem for input reshape']
    %s3 = sshllo.u32 0, 4
    %s4 = smul.addr 4, 63
    %s5 = scalar_lea.vmem %s0, %s4
    %v6 = vld [vmem:[%s5] sm:%s3]
    %s7 = scalar_lea.vmem [#allocation0], 504
    %8 = vst [vmem:[%s7] sm:%s3] %v6
    %s9 = smul.addr 4, 62
    %s10 = scalar_lea.vmem %s0, %s9
    %v11 = vld [vmem:[%s10] sm:%s3]
    %s12 = scalar_lea.vmem [#allocation0], 496
    %13 = vst [vmem:[%s12] sm:%s3] %v11
    %s14 = smul.addr 4, 61
    %s15 = scalar_lea.vmem %s0, %s14
    %v16 = vld [vmem:[%s15] sm:%s3]
    %s17 = scalar_lea.vmem [#allocation0], 488
    %18 = vst [vmem:[%s17] sm:%s3] %v16
    %s19 = smul.addr 4, 60
    %s20 = scalar_lea.vmem %s0, %s19
    %v21 = vld [vmem:[%s20] sm:%s3]
    %s22 = scalar_lea.vmem [#allocation0], 480
    %23 = vst [vmem:[%s22] sm:%s3] %v21
    %s24 = smul.addr 4, 59
    %s25 = scalar_lea.vmem %s0, %s24
    %v26 = vld [vmem:[%s25] sm:%s3]
    %s27 = scalar_lea.vmem [#allocation0], 472
    %28 = vst [vmem:[%s27] sm:%s3] %v26
    %s29 = smul.addr 4, 58
    %s30 = scalar_lea.vmem %s0, %s29
    %v31 = vld [vmem:[%s30] sm:%s3]
    %s32 = scalar_lea.vmem [#allocation0], 464
    %33 = vst [vmem:[%s32] sm:%s3] %v31
    %s34 = smul.addr 4, 57
    %s35 = scalar_lea.vmem %s0, %s34
    %v36 = vld [vmem:[%s35] sm:%s3]
    %s37 = scalar_lea.vmem [#allocation0], 456
    %38 = vst [vmem:[%s37] sm:%s3] %v36
    %s39 = smul.addr 4, 56
    %s40 = scalar_lea.vmem %s0, %s39
    %v41 = vld [vmem:[%s40] sm:%s3]
    %s42 = scalar_lea.vmem [#allocation0], 448
    %43 = vst [vmem:[%s42] sm:%s3] %v41
    %s44 = smul.addr 4, 55
    %s45 = scalar_lea.vmem %s0, %s44
    %v46 = vld [vmem:[%s45] sm:%s3]
    %s47 = scalar_lea.vmem [#allocation0], 440
    %48 = vst [vmem:[%s47] sm:%s3] %v46
    %s49 = smul.addr 4, 54
    %s50 = scalar_lea.vmem %s0, %s49
    %v51 = vld [vmem:[%s50] sm:%s3]
    %s52 = scalar_lea.vmem [#allocation0], 432
    %53 = vst [vmem:[%s52] sm:%s3] %v51
    %s54 = smul.addr 4, 53
    %s55 = scalar_lea.vmem %s0, %s54
    %v56 = vld [vmem:[%s55] sm:%s3]
    %s57 = scalar_lea.vmem [#allocation0], 424
    %58 = vst [vmem:[%s57] sm:%s3] %v56
    %s59 = smul.addr 4, 52
    %s60 = scalar_lea.vmem %s0, %s59
    %v61 = vld [vmem:[%s60] sm:%s3]
    %s62 = scalar_lea.vmem [#allocation0], 416
    %63 = vst [vmem:[%s62] sm:%s3] %v61
    %s64 = smul.addr 4, 51
    %s65 = scalar_lea.vmem %s0, %s64
    %v66 = vld [vmem:[%s65] sm:%s3]
    %s67 = scalar_lea.vmem [#allocation0], 408
    %68 = vst [vmem:[%s67] sm:%s3] %v66
    %s69 = smul.addr 4, 50
    %s70 = scalar_lea.vmem %s0, %s69
    %v71 = vld [vmem:[%s70] sm:%s3]
    %s72 = scalar_lea.vmem [#allocation0], 400
    %73 = vst [vmem:[%s72] sm:%s3] %v71
    %s74 = smul.addr 4, 49
    %s75 = scalar_lea.vmem %s0, %s74
    %v76 = vld [vmem:[%s75] sm:%s3]
    %s77 = scalar_lea.vmem [#allocation0], 392
    %78 = vst [vmem:[%s77] sm:%s3] %v76
    %s79 = smul.addr 4, 48
    %s80 = scalar_lea.vmem %s0, %s79
    %v81 = vld [vmem:[%s80] sm:%s3]
    %s82 = scalar_lea.vmem [#allocation0], 384
    %83 = vst [vmem:[%s82] sm:%s3] %v81
    %s84 = smul.addr 4, 47
    %s85 = scalar_lea.vmem %s0, %s84
    %v86 = vld [vmem:[%s85] sm:%s3]
    %s87 = scalar_lea.vmem [#allocation0], 376
    %88 = vst [vmem:[%s87] sm:%s3] %v86
    %s89 = smul.addr 4, 46
    %s90 = scalar_lea.vmem %s0, %s89
    %v91 = vld [vmem:[%s90] sm:%s3]
    %s92 = scalar_lea.vmem [#allocation0], 368
    %93 = vst [vmem:[%s92] sm:%s3] %v91
    %s94 = smul.addr 4, 45
    %s95 = scalar_lea.vmem %s0, %s94
    %v96 = vld [vmem:[%s95] sm:%s3]
    %s97 = scalar_lea.vmem [#allocation0], 360
    %98 = vst [vmem:[%s97] sm:%s3] %v96
    %s99 = smul.addr 4, 44
    %s100 = scalar_lea.vmem %s0, %s99
    %v101 = vld [vmem:[%s100] sm:%s3]
    %s102 = scalar_lea.vmem [#allocation0], 352
    %103 = vst [vmem:[%s102] sm:%s3] %v101
    %s104 = smul.addr 4, 43
    %s105 = scalar_lea.vmem %s0, %s104
    %v106 = vld [vmem:[%s105] sm:%s3]
    %s107 = scalar_lea.vmem [#allocation0], 344
    %108 = vst [vmem:[%s107] sm:%s3] %v106
    %s109 = smul.addr 4, 42
    %s110 = scalar_lea.vmem %s0, %s109
    %v111 = vld [vmem:[%s110] sm:%s3]
    %s112 = scalar_lea.vmem [#allocation0], 336
    %113 = vst [vmem:[%s112] sm:%s3] %v111
    %s114 = smul.addr 4, 41
    %s115 = scalar_lea.vmem %s0, %s114
    %v116 = vld [vmem:[%s115] sm:%s3]
    %s117 = scalar_lea.vmem [#allocation0], 328
    %118 = vst [vmem:[%s117] sm:%s3] %v116
    %s119 = smul.addr 4, 40
    %s120 = scalar_lea.vmem %s0, %s119
    %v121 = vld [vmem:[%s120] sm:%s3]
    %s122 = scalar_lea.vmem [#allocation0], 320
    %123 = vst [vmem:[%s122] sm:%s3] %v121
    %s124 = smul.addr 4, 39
    %s125 = scalar_lea.vmem %s0, %s124
    %v126 = vld [vmem:[%s125] sm:%s3]
    %s127 = scalar_lea.vmem [#allocation0], 312
    %128 = vst [vmem:[%s127] sm:%s3] %v126
    %s129 = smul.addr 4, 38
    %s130 = scalar_lea.vmem %s0, %s129
    %v131 = vld [vmem:[%s130] sm:%s3]
    %s132 = scalar_lea.vmem [#allocation0], 304
    %133 = vst [vmem:[%s132] sm:%s3] %v131
    %s134 = smul.addr 4, 37
    %s135 = scalar_lea.vmem %s0, %s134
    %v136 = vld [vmem:[%s135] sm:%s3]
    %s137 = scalar_lea.vmem [#allocation0], 296
    %138 = vst [vmem:[%s137] sm:%s3] %v136
    %s139 = smul.addr 4, 36
    %s140 = scalar_lea.vmem %s0, %s139
    %v141 = vld [vmem:[%s140] sm:%s3]
    %s142 = scalar_lea.vmem [#allocation0], 288
    %143 = vst [vmem:[%s142] sm:%s3] %v141
    %s144 = smul.addr 4, 35
    %s145 = scalar_lea.vmem %s0, %s144
    %v146 = vld [vmem:[%s145] sm:%s3]
    %s147 = scalar_lea.vmem [#allocation0], 280
    %148 = vst [vmem:[%s147] sm:%s3] %v146
    %s149 = smul.addr 4, 34
    %s150 = scalar_lea.vmem %s0, %s149
    %v151 = vld [vmem:[%s150] sm:%s3]
    %s152 = scalar_lea.vmem [#allocation0], 272
    %153 = vst [vmem:[%s152] sm:%s3] %v151
    %s154 = smul.addr 4, 33
    %s155 = scalar_lea.vmem %s0, %s154
    %v156 = vld [vmem:[%s155] sm:%s3]
    %s157 = scalar_lea.vmem [#allocation0], 264
    %158 = vst [vmem:[%s157] sm:%s3] %v156
    %s159 = smul.addr 4, 32
    %s160 = scalar_lea.vmem %s0, %s159
    %v161 = vld [vmem:[%s160] sm:%s3]
    %s162 = scalar_lea.vmem [#allocation0], 256
    %163 = vst [vmem:[%s162] sm:%s3] %v161
    %s164 = smul.addr 4, 31
    %s165 = scalar_lea.vmem %s0, %s164
    %v166 = vld [vmem:[%s165] sm:%s3]
    %s167 = scalar_lea.vmem [#allocation0], 248
    %168 = vst [vmem:[%s167] sm:%s3] %v166
    %s169 = smul.addr 4, 30
    %s170 = scalar_lea.vmem %s0, %s169
    %v171 = vld [vmem:[%s170] sm:%s3]
    %s172 = scalar_lea.vmem [#allocation0], 240
    %173 = vst [vmem:[%s172] sm:%s3] %v171
    %s174 = smul.addr 4, 29
    %s175 = scalar_lea.vmem %s0, %s174
    %v176 = vld [vmem:[%s175] sm:%s3]
    %s177 = scalar_lea.vmem [#allocation0], 232
    %178 = vst [vmem:[%s177] sm:%s3] %v176
    %s179 = smul.addr 4, 28
    %s180 = scalar_lea.vmem %s0, %s179
    %v181 = vld [vmem:[%s180] sm:%s3]
    %s182 = scalar_lea.vmem [#allocation0], 224
    %183 = vst [vmem:[%s182] sm:%s3] %v181
    %s184 = smul.addr 4, 27
    %s185 = scalar_lea.vmem %s0, %s184
    %v186 = vld [vmem:[%s185] sm:%s3]
    %s187 = scalar_lea.vmem [#allocation0], 216
    %188 = vst [vmem:[%s187] sm:%s3] %v186
    %s189 = smul.addr 4, 26
    %s190 = scalar_lea.vmem %s0, %s189
    %v191 = vld [vmem:[%s190] sm:%s3]
    %s192 = scalar_lea.vmem [#allocation0], 208
    %193 = vst [vmem:[%s192] sm:%s3] %v191
    %s194 = smul.addr 4, 25
    %s195 = scalar_lea.vmem %s0, %s194
    %v196 = vld [vmem:[%s195] sm:%s3]
    %s197 = scalar_lea.vmem [#allocation0], 200
    %198 = vst [vmem:[%s197] sm:%s3] %v196
    %s199 = smul.addr 4, 24
    %s200 = scalar_lea.vmem %s0, %s199
    %v201 = vld [vmem:[%s200] sm:%s3]
    %s202 = scalar_lea.vmem [#allocation0], 192
    %203 = vst [vmem:[%s202] sm:%s3] %v201
    %s204 = smul.addr 4, 23
    %s205 = scalar_lea.vmem %s0, %s204
    %v206 = vld [vmem:[%s205] sm:%s3]
    %s207 = scalar_lea.vmem [#allocation0], 184
    %208 = vst [vmem:[%s207] sm:%s3] %v206
    %s209 = smul.addr 4, 22
    %s210 = scalar_lea.vmem %s0, %s209
    %v211 = vld [vmem:[%s210] sm:%s3]
    %s212 = scalar_lea.vmem [#allocation0], 176
    %213 = vst [vmem:[%s212] sm:%s3] %v211
    %s214 = smul.addr 4, 21
    %s215 = scalar_lea.vmem %s0, %s214
    %v216 = vld [vmem:[%s215] sm:%s3]
    %s217 = scalar_lea.vmem [#allocation0], 168
    %218 = vst [vmem:[%s217] sm:%s3] %v216
    %s219 = smul.addr 4, 20
    %s220 = scalar_lea.vmem %s0, %s219
    %v221 = vld [vmem:[%s220] sm:%s3]
    %s222 = scalar_lea.vmem [#allocation0], 160
    %223 = vst [vmem:[%s222] sm:%s3] %v221
    %s224 = smul.addr 4, 19
    %s225 = scalar_lea.vmem %s0, %s224
    %v226 = vld [vmem:[%s225] sm:%s3]
    %s227 = scalar_lea.vmem [#allocation0], 152
    %228 = vst [vmem:[%s227] sm:%s3] %v226
    %s229 = smul.addr 4, 18
    %s230 = scalar_lea.vmem %s0, %s229
    %v231 = vld [vmem:[%s230] sm:%s3]
    %s232 = scalar_lea.vmem [#allocation0], 144
    %233 = vst [vmem:[%s232] sm:%s3] %v231
    %s234 = smul.addr 4, 17
    %s235 = scalar_lea.vmem %s0, %s234
    %v236 = vld [vmem:[%s235] sm:%s3]
    %s237 = scalar_lea.vmem [#allocation0], 136
    %238 = vst [vmem:[%s237] sm:%s3] %v236
    %s239 = smul.addr 4, 16
    %s240 = scalar_lea.vmem %s0, %s239
    %v241 = vld [vmem:[%s240] sm:%s3]
    %s242 = scalar_lea.vmem [#allocation0], 128
    %243 = vst [vmem:[%s242] sm:%s3] %v241
    %s244 = smul.addr 4, 15
    %s245 = scalar_lea.vmem %s0, %s244
    %v246 = vld [vmem:[%s245] sm:%s3]
    %s247 = scalar_lea.vmem [#allocation0], 120
    %248 = vst [vmem:[%s247] sm:%s3] %v246
    %s249 = smul.addr 4, 14
    %s250 = scalar_lea.vmem %s0, %s249
    %v251 = vld [vmem:[%s250] sm:%s3]
    %s252 = scalar_lea.vmem [#allocation0], 112
    %253 = vst [vmem:[%s252] sm:%s3] %v251
    %s254 = smul.addr 4, 13
    %s255 = scalar_lea.vmem %s0, %s254
    %v256 = vld [vmem:[%s255] sm:%s3]
    %s257 = scalar_lea.vmem [#allocation0], 104
    %258 = vst [vmem:[%s257] sm:%s3] %v256
    %s259 = smul.addr 4, 12
    %s260 = scalar_lea.vmem %s0, %s259
    %v261 = vld [vmem:[%s260] sm:%s3]
    %s262 = scalar_lea.vmem [#allocation0], 96
    %263 = vst [vmem:[%s262] sm:%s3] %v261
    %s264 = smul.addr 4, 11
    %s265 = scalar_lea.vmem %s0, %s264
    %v266 = vld [vmem:[%s265] sm:%s3]
    %s267 = scalar_lea.vmem [#allocation0], 88
    %268 = vst [vmem:[%s267] sm:%s3] %v266
    %s269 = smul.addr 4, 10
    %s270 = scalar_lea.vmem %s0, %s269
    %v271 = vld [vmem:[%s270] sm:%s3]
    %s272 = scalar_lea.vmem [#allocation0], 80
    %273 = vst [vmem:[%s272] sm:%s3] %v271
    %s274 = smul.addr 4, 9
    %s275 = scalar_lea.vmem %s0, %s274
    %v276 = vld [vmem:[%s275] sm:%s3]
    %s277 = scalar_lea.vmem [#allocation0], 72
    %278 = vst [vmem:[%s277] sm:%s3] %v276
    %s279 = smul.addr 4, 8
    %s280 = scalar_lea.vmem %s0, %s279
    %v281 = vld [vmem:[%s280] sm:%s3]
    %s282 = scalar_lea.vmem [#allocation0], 64
    %283 = vst [vmem:[%s282] sm:%s3] %v281
    %s284 = smul.addr 4, 7
    %s285 = scalar_lea.vmem %s0, %s284
    %v286 = vld [vmem:[%s285] sm:%s3]
    %s287 = scalar_lea.vmem [#allocation0], 56
    %288 = vst [vmem:[%s287] sm:%s3] %v286
    %s289 = smul.addr 4, 6
    %s290 = scalar_lea.vmem %s0, %s289
    %v291 = vld [vmem:[%s290] sm:%s3]
    %s292 = scalar_lea.vmem [#allocation0], 48
    %293 = vst [vmem:[%s292] sm:%s3] %v291
    %s294 = smul.addr 4, 5
    %s295 = scalar_lea.vmem %s0, %s294
    %v296 = vld [vmem:[%s295] sm:%s3]
    %s297 = scalar_lea.vmem [#allocation0], 40
    %298 = vst [vmem:[%s297] sm:%s3] %v296
    %s299 = smul.addr 4, 4
    %s300 = scalar_lea.vmem %s0, %s299
    %v301 = vld [vmem:[%s300] sm:%s3]
    %s302 = scalar_lea.vmem [#allocation0], 32
    %303 = vst [vmem:[%s302] sm:%s3] %v301
    %s304 = smul.addr 4, 3
    %s305 = scalar_lea.vmem %s0, %s304
    %v306 = vld [vmem:[%s305] sm:%s3]
    %s307 = scalar_lea.vmem [#allocation0], 24
    %308 = vst [vmem:[%s307] sm:%s3] %v306
    %s309 = smul.addr 4, 2
    %s310 = scalar_lea.vmem %s0, %s309
    %v311 = vld [vmem:[%s310] sm:%s3]
    %s312 = scalar_lea.vmem [#allocation0], 16
    %313 = vst [vmem:[%s312] sm:%s3] %v311
    %s314 = scalar_lea.vmem %s0, 4
    %v315 = vld [vmem:[%s314] sm:%s3]
    %s316 = scalar_lea.vmem [#allocation0], 8
    %317 = vst [vmem:[%s316] sm:%s3] %v315
    %v318 = vld [vmem:[%s0] sm:%s3]
    %319 = vst [vmem:[#allocation0] sm:%s3] %v318
    %v320 = vld [vmem:[#allocation0] ss:$8 sm:$0xf]
    %v321 = vld [vmem:[#allocation0] ss:$8 sm:$0xf0]
    %vm322 = vcmask 1047556
    %v323 = vsel %vm322, %v321, %v320
    %vm324 = vcmask 261120
    %325 = vst.msk [vmem:[%s1] sm:$0xff] %vm324, %v323
    %s326 = scalar_lea.vmem [#allocation0], 64
    %v327 = vld [vmem:[%s326] ss:$8 sm:$0xf]
    %s328 = scalar_lea.vmem [#allocation0], 64
    %v329 = vld [vmem:[%s328] ss:$8 sm:$0xf0]
    %vm330 = vcmask 1047556
    %v331 = vsel %vm330, %v329, %v327
    %vm332 = vcmask 261120
    %s333 = scalar_lea.vmem %s1, 8
    %334 = vst.msk [vmem:[%s333] sm:$0xff] %vm332, %v331
    %s335 = scalar_lea.vmem [#allocation0], 128
    %v336 = vld [vmem:[%s335] ss:$8 sm:$0xf]
    %s337 = scalar_lea.vmem [#allocation0], 128
    %v338 = vld [vmem:[%s337] ss:$8 sm:$0xf0]
    %vm339 = vcmask 1047556
    %v340 = vsel %vm339, %v338, %v336
    %vm341 = vcmask 261120
    %s342 = scalar_lea.vmem %s1, 16
    %343 = vst.msk [vmem:[%s342] sm:$0xff] %vm341, %v340
    %s344 = scalar_lea.vmem [#allocation0], 192
    %v345 = vld [vmem:[%s344] ss:$8 sm:$0xf]
    %s346 = scalar_lea.vmem [#allocation0], 192
    %v347 = vld [vmem:[%s346] ss:$8 sm:$0xf0]
    %vm348 = vcmask 1047556
    %v349 = vsel %vm348, %v347, %v345
    %vm350 = vcmask 261120
    %s351 = scalar_lea.vmem %s1, 24
    %352 = vst.msk [vmem:[%s351] sm:$0xff] %vm350, %v349
    %s353 = scalar_lea.vmem [#allocation0], 256
    %v354 = vld [vmem:[%s353] ss:$8 sm:$0xf]
    %s355 = scalar_lea.vmem [#allocation0], 256
    %v356 = vld [vmem:[%s355] ss:$8 sm:$0xf0]
    %vm357 = vcmask 1047556
    %v358 = vsel %vm357, %v356, %v354
    %vm359 = vcmask 261120
    %s360 = scalar_lea.vmem %s1, 32
    %361 = vst.msk [vmem:[%s360] sm:$0xff] %vm359, %v358
    %s362 = scalar_lea.vmem [#allocation0], 320
    %v363 = vld [vmem:[%s362] ss:$8 sm:$0xf]
    %s364 = scalar_lea.vmem [#allocation0], 320
    %v365 = vld [vmem:[%s364] ss:$8 sm:$0xf0]
    %vm366 = vcmask 1047556
    %v367 = vsel %vm366, %v365, %v363
    %vm368 = vcmask 261120
    %s369 = scalar_lea.vmem %s1, 40
    %370 = vst.msk [vmem:[%s369] sm:$0xff] %vm368, %v367
    %s371 = scalar_lea.vmem [#allocation0], 384
    %v372 = vld [vmem:[%s371] ss:$8 sm:$0xf]
    %s373 = scalar_lea.vmem [#allocation0], 384
    %v374 = vld [vmem:[%s373] ss:$8 sm:$0xf0]
    %vm375 = vcmask 1047556
    %v376 = vsel %vm375, %v374, %v372
    %vm377 = vcmask 261120
    %s378 = scalar_lea.vmem %s1, 48
    %379 = vst.msk [vmem:[%s378] sm:$0xff] %vm377, %v376
    %s380 = scalar_lea.vmem [#allocation0], 448
    %v381 = vld [vmem:[%s380] ss:$8 sm:$0xf]
    %s382 = scalar_lea.vmem [#allocation0], 448
    %v383 = vld [vmem:[%s382] ss:$8 sm:$0xf0]
    %vm384 = vcmask 1047556
    %v385 = vsel %vm384, %v383, %v381
    %vm386 = vcmask 261120
    %s387 = scalar_lea.vmem %s1, 56
    %388 = vst.msk [vmem:[%s387] sm:$0xff] %vm386, %v385
    %s389 = scalar_lea.vmem [#allocation0], 3
    %v390 = vld [vmem:[%s389] ss:$8 sm:$0xf]
    %s391 = scalar_lea.vmem [#allocation0], 3
    %v392 = vld [vmem:[%s391] ss:$8 sm:$0xf0]
    %vm393 = vcmask 1047556
    %v394 = vsel %vm393, %v392, %v390
    %395 = vrot.lane.b32.xlu0 %v394, 96
    %v396 = vpop.permute.xlu0 %395
    %vm397 = vcmask 1048320
    %398 = vst.msk [vmem:[%s1] sm:$0xff] %vm397, %v396
    %s399 = scalar_lea.vmem [#allocation0], 259
    %v400 = vld [vmem:[%s399] ss:$8 sm:$0xf]
    %s401 = scalar_lea.vmem [#allocation0], 259
    %v402 = vld [vmem:[%s401] ss:$8 sm:$0xf0]
    %vm403 = vcmask 1047556
    %v404 = vsel %vm403, %v402, %v400
    %405 = vrot.lane.b32.xlu0 %v404, 96
    %v406 = vpop.permute.xlu0 %405
    %vm407 = vcmask 1048320
    %s408 = scalar_lea.vmem %s1, 32
    %409 = vst.msk [vmem:[%s408] sm:$0xff] %vm407, %v406
    %s410 = scalar_lea.vmem [#allocation0], 67
    %v411 = vld [vmem:[%s410] ss:$8 sm:$0xf]
    %s412 = scalar_lea.vmem [#allocation0], 67
    %v413 = vld [vmem:[%s412] ss:$8 sm:$0xf0]
    %vm414 = vcmask 1047556
    %v415 = vsel %vm414, %v413, %v411
    %416 = vrot.lane.b32.xlu0 %v415, 96
    %v417 = vpop.permute.xlu0 %416
    %vm418 = vcmask 1048320
    %s419 = scalar_lea.vmem %s1, 8
    %420 = vst.msk [vmem:[%s419] sm:$0xff] %vm418, %v417
    %s421 = scalar_lea.vmem [#allocation0], 323
    %v422 = vld [vmem:[%s421] ss:$8 sm:$0xf]
    %s423 = scalar_lea.vmem [#allocation0], 323
    %v424 = vld [vmem:[%s423] ss:$8 sm:$0xf0]
    %vm425 = vcmask 1047556
    %v426 = vsel %vm425, %v424, %v422
    %427 = vrot.lane.b32.xlu0 %v426, 96
    %v428 = vpop.permute.xlu0 %427
    %vm429 = vcmask 1048320
    %s430 = scalar_lea.vmem %s1, 40
    %431 = vst.msk [vmem:[%s430] sm:$0xff] %vm429, %v428
    %s432 = scalar_lea.vmem [#allocation0], 131
    %v433 = vld [vmem:[%s432] ss:$8 sm:$0xf]
    %s434 = scalar_lea.vmem [#allocation0], 131
    %v435 = vld [vmem:[%s434] ss:$8 sm:$0xf0]
    %vm436 = vcmask 1047556
    %v437 = vsel %vm436, %v435, %v433
    %438 = vrot.lane.b32.xlu0 %v437, 96
    %v439 = vpop.permute.xlu0 %438
    %vm440 = vcmask 1048320
    %s441 = scalar_lea.vmem %s1, 16
    %442 = vst.msk [vmem:[%s441] sm:$0xff] %vm440, %v439
    %s443 = scalar_lea.vmem [#allocation0], 387
    %v444 = vld [vmem:[%s443] ss:$8 sm:$0xf]
    %s445 = scalar_lea.vmem [#allocation0], 387
    %v446 = vld [vmem:[%s445] ss:$8 sm:$0xf0]
    %vm447 = vcmask 1047556
    %v448 = vsel %vm447, %v446, %v444
    %449 = vrot.lane.b32.xlu0 %v448, 96
    %v450 = vpop.permute.xlu0 %449
    %vm451 = vcmask 1048320
    %s452 = scalar_lea.vmem %s1, 48
    %453 = vst.msk [vmem:[%s452] sm:$0xff] %vm451, %v450
    %s454 = scalar_lea.vmem [#allocation0], 195
    %v455 = vld [vmem:[%s454] ss:$8 sm:$0xf]
    %s456 = scalar_lea.vmem [#allocation0], 195
    %v457 = vld [vmem:[%s456] ss:$8 sm:$0xf0]
    %vm458 = vcmask 1047556
    %v459 = vsel %vm458, %v457, %v455
    %460 = vrot.lane.b32.xlu0 %v459, 96
    %v461 = vpop.permute.xlu0 %460
    %vm462 = vcmask 1048320
    %s463 = scalar_lea.vmem %s1, 24
    %464 = vst.msk [vmem:[%s463] sm:$0xff] %vm462, %v461
    %s465 = scalar_lea.vmem [#allocation0], 451
    %v466 = vld [vmem:[%s465] ss:$8 sm:$0xf]
    %s467 = scalar_lea.vmem [#allocation0], 451
    %v468 = vld [vmem:[%s467] ss:$8 sm:$0xf0]
    %vm469 = vcmask 1047556
    %v470 = vsel %vm469, %v468, %v466
    %471 = vrot.lane.b32.xlu0 %v470, 96
    %v472 = vpop.permute.xlu0 %471
    %vm473 = vcmask 1048320
    %s474 = scalar_lea.vmem %s1, 56
    %475 = vst.msk [vmem:[%s474] sm:$0xff] %vm473, %v472
    %s476 = scalar_lea.vmem [#allocation0], 2
    %v477 = vld [vmem:[%s476] ss:$8 sm:$0xf]
    %s478 = scalar_lea.vmem [#allocation0], 2
    %v479 = vld [vmem:[%s478] ss:$8 sm:$0xf0]
    %vm480 = vcmask 1047556
    %v481 = vsel %vm480, %v479, %v477
    %482 = vrot.lane.b32.xlu0 %v481, 64
    %v483 = vpop.permute.xlu0 %482
    %vm484 = vcmask 785920
    %485 = vst.msk [vmem:[%s1] sm:$0xff] %vm484, %v483
    %s486 = scalar_lea.vmem [#allocation0], 258
    %v487 = vld [vmem:[%s486] ss:$8 sm:$0xf]
    %s488 = scalar_lea.vmem [#allocation0], 258
    %v489 = vld [vmem:[%s488] ss:$8 sm:$0xf0]
    %vm490 = vcmask 1047556
    %v491 = vsel %vm490, %v489, %v487
    %492 = vrot.lane.b32.xlu0 %v491, 64
    %v493 = vpop.permute.xlu0 %492
    %vm494 = vcmask 785920
    %s495 = scalar_lea.vmem %s1, 32
    %496 = vst.msk [vmem:[%s495] sm:$0xff] %vm494, %v493
    %s497 = scalar_lea.vmem [#allocation0], 66
    %v498 = vld [vmem:[%s497] ss:$8 sm:$0xf]
    %s499 = scalar_lea.vmem [#allocation0], 66
    %v500 = vld [vmem:[%s499] ss:$8 sm:$0xf0]
    %vm501 = vcmask 1047556
    %v502 = vsel %vm501, %v500, %v498
    %503 = vrot.lane.b32.xlu0 %v502, 64
    %v504 = vpop.permute.xlu0 %503
    %vm505 = vcmask 785920
    %s506 = scalar_lea.vmem %s1, 8
    %507 = vst.msk [vmem:[%s506] sm:$0xff] %vm505, %v504
    %s508 = scalar_lea.vmem [#allocation0], 322
    %v509 = vld [vmem:[%s508] ss:$8 sm:$0xf]
    %s510 = scalar_lea.vmem [#allocation0], 322
    %v511 = vld [vmem:[%s510] ss:$8 sm:$0xf0]
    %vm512 = vcmask 1047556
    %v513 = vsel %vm512, %v511, %v509
    %514 = vrot.lane.b32.xlu0 %v513, 64
    %v515 = vpop.permute.xlu0 %514
    %vm516 = vcmask 785920
    %s517 = scalar_lea.vmem %s1, 40
    %518 = vst.msk [vmem:[%s517] sm:$0xff] %vm516, %v515
    %s519 = scalar_lea.vmem [#allocation0], 130
    %v520 = vld [vmem:[%s519] ss:$8 sm:$0xf]
    %s521 = scalar_lea.vmem [#allocation0], 130
    %v522 = vld [vmem:[%s521] ss:$8 sm:$0xf0]
    %vm523 = vcmask 1047556
    %v524 = vsel %vm523, %v522, %v520
    %525 = vrot.lane.b32.xlu0 %v524, 64
    %v526 = vpop.permute.xlu0 %525
    %vm527 = vcmask 785920
    %s528 = scalar_lea.vmem %s1, 16
    %529 = vst.msk [vmem:[%s528] sm:$0xff] %vm527, %v526
    %s530 = scalar_lea.vmem [#allocation0], 386
    %v531 = vld [vmem:[%s530] ss:$8 sm:$0xf]
    %s532 = scalar_lea.vmem [#allocation0], 386
    %v533 = vld [vmem:[%s532] ss:$8 sm:$0xf0]
    %vm534 = vcmask 1047556
    %v535 = vsel %vm534, %v533, %v531
    %536 = vrot.lane.b32.xlu0 %v535, 64
    %v537 = vpop.permute.xlu0 %536
    %vm538 = vcmask 785920
    %s539 = scalar_lea.vmem %s1, 48
    %540 = vst.msk [vmem:[%s539] sm:$0xff] %vm538, %v537
    %s541 = scalar_lea.vmem [#allocation0], 194
    %v542 = vld [vmem:[%s541] ss:$8 sm:$0xf]
    %s543 = scalar_lea.vmem [#allocation0], 194
    %v544 = vld [vmem:[%s543] ss:$8 sm:$0xf0]
    %vm545 = vcmask 1047556
    %v546 = vsel %vm545, %v544, %v542
    %547 = vrot.lane.b32.xlu0 %v546, 64
    %v548 = vpop.permute.xlu0 %547
    %vm549 = vcmask 785920
    %s550 = scalar_lea.vmem %s1, 24
    %551 = vst.msk [vmem:[%s550] sm:$0xff] %vm549, %v548
    %s552 = scalar_lea.vmem [#allocation0], 450
    %v553 = vld [vmem:[%s552] ss:$8 sm:$0xf]
    %s554 = scalar_lea.vmem [#allocation0], 450
    %v555 = vld [vmem:[%s554] ss:$8 sm:$0xf0]
    %vm556 = vcmask 1047556
    %v557 = vsel %vm556, %v555, %v553
    %558 = vrot.lane.b32.xlu0 %v557, 64
    %v559 = vpop.permute.xlu0 %558
    %vm560 = vcmask 785920
    %s561 = scalar_lea.vmem %s1, 56
    %562 = vst.msk [vmem:[%s561] sm:$0xff] %vm560, %v559
    %s563 = scalar_lea.vmem [#allocation0], 1
    %v564 = vld [vmem:[%s563] ss:$8 sm:$0xf]
    %s565 = scalar_lea.vmem [#allocation0], 1
    %v566 = vld [vmem:[%s565] ss:$8 sm:$0xf0]
    %vm567 = vcmask 1047556
    %v568 = vsel %vm567, %v566, %v564
    %569 = vrot.lane.b32.xlu0 %v568, 32
    %v570 = vpop.permute.xlu0 %569
    %vm571 = vcmask 523520
    %572 = vst.msk [vmem:[%s1] sm:$0xff] %vm571, %v570
    %s573 = scalar_lea.vmem [#allocation0], 257
    %v574 = vld [vmem:[%s573] ss:$8 sm:$0xf]
    %s575 = scalar_lea.vmem [#allocation0], 257
    %v576 = vld [vmem:[%s575] ss:$8 sm:$0xf0]
    %vm577 = vcmask 1047556
    %v578 = vsel %vm577, %v576, %v574
    %579 = vrot.lane.b32.xlu0 %v578, 32
    %v580 = vpop.permute.xlu0 %579
    %vm581 = vcmask 523520
    %s582 = scalar_lea.vmem %s1, 32
    %583 = vst.msk [vmem:[%s582] sm:$0xff] %vm581, %v580
    %s584 = scalar_lea.vmem [#allocation0], 65
    %v585 = vld [vmem:[%s584] ss:$8 sm:$0xf]
    %s586 = scalar_lea.vmem [#allocation0], 65
    %v587 = vld [vmem:[%s586] ss:$8 sm:$0xf0]
    %vm588 = vcmask 1047556
    %v589 = vsel %vm588, %v587, %v585
    %590 = vrot.lane.b32.xlu0 %v589, 32
    %v591 = vpop.permute.xlu0 %590
    %vm592 = vcmask 523520
    %s593 = scalar_lea.vmem %s1, 8
    %594 = vst.msk [vmem:[%s593] sm:$0xff] %vm592, %v591
    %s595 = scalar_lea.vmem [#allocation0], 321
    %v596 = vld [vmem:[%s595] ss:$8 sm:$0xf]
    %s597 = scalar_lea.vmem [#allocation0], 321
    %v598 = vld [vmem:[%s597] ss:$8 sm:$0xf0]
    %vm599 = vcmask 1047556
    %v600 = vsel %vm599, %v598, %v596
    %601 = vrot.lane.b32.xlu0 %v600, 32
    %v602 = vpop.permute.xlu0 %601
    %vm603 = vcmask 523520
    %s604 = scalar_lea.vmem %s1, 40
    %605 = vst.msk [vmem:[%s604] sm:$0xff] %vm603, %v602
    %s606 = scalar_lea.vmem [#allocation0], 129
    %v607 = vld [vmem:[%s606] ss:$8 sm:$0xf]
    %s608 = scalar_lea.vmem [#allocation0], 129
    %v609 = vld [vmem:[%s608] ss:$8 sm:$0xf0]
    %vm610 = vcmask 1047556
    %v611 = vsel %vm610, %v609, %v607
    %612 = vrot.lane.b32.xlu0 %v611, 32
    %v613 = vpop.permute.xlu0 %612
    %vm614 = vcmask 523520
    %s615 = scalar_lea.vmem %s1, 16
    %616 = vst.msk [vmem:[%s615] sm:$0xff] %vm614, %v613
    %s617 = scalar_lea.vmem [#allocation0], 385
    %v618 = vld [vmem:[%s617] ss:$8 sm:$0xf]
    %s619 = scalar_lea.vmem [#allocation0], 385
    %v620 = vld [vmem:[%s619] ss:$8 sm:$0xf0]
    %vm621 = vcmask 1047556
    %v622 = vsel %vm621, %v620, %v618
    %623 = vrot.lane.b32.xlu0 %v622, 32
    %v624 = vpop.permute.xlu0 %623
    %vm625 = vcmask 523520
    %s626 = scalar_lea.vmem %s1, 48
    %627 = vst.msk [vmem:[%s626] sm:$0xff] %vm625, %v624
    %s628 = scalar_lea.vmem [#allocation0], 193
    %v629 = vld [vmem:[%s628] ss:$8 sm:$0xf]
    %s630 = scalar_lea.vmem [#allocation0], 193
    %v631 = vld [vmem:[%s630] ss:$8 sm:$0xf0]
    %vm632 = vcmask 1047556
    %v633 = vsel %vm632, %v631, %v629
    %634 = vrot.lane.b32.xlu0 %v633, 32
    %v635 = vpop.permute.xlu0 %634
    %vm636 = vcmask 523520
    %s637 = scalar_lea.vmem %s1, 24
    %638 = vst.msk [vmem:[%s637] sm:$0xff] %vm636, %v635
    %s639 = scalar_lea.vmem [#allocation0], 449
    %v640 = vld [vmem:[%s639] ss:$8 sm:$0xf]
    %s641 = scalar_lea.vmem [#allocation0], 449
    %v642 = vld [vmem:[%s641] ss:$8 sm:$0xf0]
    %vm643 = vcmask 1047556
    %v644 = vsel %vm643, %v642, %v640
    %645 = vrot.lane.b32.xlu0 %v644, 32
    %v646 = vpop.permute.xlu0 %645
    %vm647 = vcmask 523520
    %s648 = scalar_lea.vmem %s1, 56
    %649 = vst.msk [vmem:[%s648] sm:$0xff] %vm647, %v646

// kernel: _forward_impl.3
$region0: #{_forward_impl.3}
  #allocation0 [shape = 'u32[]', space=smem, size = 0x4, offset = 0x4, fixed_abs, tag = 'smem constant byte address 0x4 - core index']
  #allocation1 [shape = 'u32[144,128]{1,0:T(1,128)}', space=vmem, size = 0x12000, scoped, tag = 'internal scratch']
  %s0 = inlined_call_operand.vmem [shape: f32[2,16,128], index: 0, kind: input, shape index: {}]
  %s1 = inlined_call_operand.hbm [shape: f32[3,32,128], index: 1, kind: input, shape index: {}]
  %s2 = inlined_call_operand.vmem [shape: f32[2,32,128], index: 2, kind: input, shape index: {}]
  %s3 = inlined_call_operand.vmem [shape: f32[2,32,128], index: 3, kind: input, shape index: {}]
  %s4 = inlined_call_operand.vmem [shape: s32[2,32,128], index: 4, kind: output, shape index: {0}]
  %s5 = inlined_call_operand.hbm [shape: f32[2,32,128], index: 5, kind: output, shape index: {1}]
  %s6 = inlined_call_operand.hbm [shape: f32[2,32,128], index: 6, kind: output, shape index: {2}]
  %7 = xla_tuple %s4, %s5, %s6
  %s8 = sld [smem:[#allocation0]]
  $region69: #{_forward_impl.3} parent=0
    _
  %s10 = ssub.s32 1, %s8
  %s11 = scalar_select 0, %s10, %s8
  $region1: #{_forward_impl.3} parent=0
    #allocation2 [shape = 'u8[49152]{0}', space=vmem, size = 0xc000, scoped, tag = 'input window, operand 1, single buffered']
    #allocation3 [shape = 's32[2]{0}', space=sflag, size = 0x8, scoped, tag = 'scoped memory for _forward_impl.3']
    #allocation4 [shape = 's32[2]{0}', space=sflag, size = 0x8, scoped, tag = 'scoped memory for _forward_impl.3']
    #allocation5 [shape = 'u8[32768]{0}', space=vmem, size = 0x8000, scoped, tag = 'output window, operand 1']
    #allocation6 [shape = 'u8[32768]{0}', space=vmem, size = 0x8000, scoped, tag = 'output window, operand 2']
    #allocation7 [shape = 's32[2]{0}', space=sflag, size = 0x8, scoped, tag = 'scoped memory for _forward_impl.3']
    %12 = vsyncpa [#allocation3], 0
    %13 = vsyncpa [#allocation4], 0
    %s14 = scalar_lea.sflag [#allocation4], 1
    %15 = vsyncpa %s14, 0
    %16 = vsyncpa [#allocation7], 0
    %s17 = scalar_lea.sflag [#allocation7], 1
    %18 = vsyncpa %s17, 0
    loop: start=0, step=1, limit=4
    $region2: #{_forward_impl.3} parent=1 // loop_pre_header
      _
    $region3: #{_forward_impl.3} parent=1 // loop_header
      %s20 = sphi 0, %s24
      %p21 = scmp.ge.s32.totalorder %s20, 4
      %s30 = sphi 0, %s32
      %s33 = sphi 0, %s30
      %s34 = sphi 0, %s33
      %s50 = sphi 0, %s34
      %s54 = sphi 0, %s54
      %s56 = sphi 0, %s54
      %s57 = sphi 0, %s56
      %s71 = sphi 0, %s57
      %s77 = sphi 0, %s79
      %s80 = sphi 0, %s77
      %s81 = sphi 0, %s80
      %s97 = sphi 0, %s81
      %s103 = sphi 0, %s105
      %s106 = sphi 0, %s103
      %s107 = sphi 0, %s106
      %s123 = sphi 0, %s107
      %s129 = sphi 0, %s131
      %s132 = sphi 0, %s129
      %s133 = sphi 0, %s132
      %s149 = sphi 0, %s133
      %s155 = sphi 0, %s157
      %s158 = sphi 0, %s155
      %s159 = sphi 0, %s158
      %s175 = sphi 0, %s159
      %s181 = sphi 0, %s183
      %s184 = sphi 0, %s181
      %s185 = sphi 0, %s184
      %s201 = sphi 0, %s185
    $region4: #{_forward_impl.3} parent=1 // loop_header_branch
      %23 = sbr.rel (%p21) target = $region8
    $region5: #{_forward_impl.3} parent=1 // loop_body
      %s25 = ssub.s32 %s20, 1
      %s26 = ssub.s32 %s20, 2
      %s27 = sadd.s32 %s20, 1
      %s28 = ssub.s32 %s20, %s27
      %p29 = scmp.eq.s32.totalorder %s28, 0
      %s31 = sadd.s32 %s30, 1
      %s32 = scalar_select %p29, %s30, %s31
      %p35 = pneg %p29
      %p36 = scmp.eq.s32.totalorder %s20, 1
      %p37 = por %p35, %p36
      %p38 = scmp.ne.s32.totalorder %s30, %s33
      %p39 = scmp.eq.s32.totalorder %s20, 0
      %p40 = por %p38, %p39
      %p41 = scmp.ne.s32.totalorder %s30, %s33
      %p42 = scmp.eq.s32.totalorder %s25, 1
      %p43 = por %p41, %p42
      %p44 = scmp.ne.s32.totalorder %s33, %s34
      %p45 = scmp.eq.s32.totalorder %s25, 0
      %p46 = por %p44, %p45
      %p47 = scmp.ne.s32.totalorder %s33, %s34
      %p48 = scmp.eq.s32.totalorder %s26, 1
      %p49 = por %p47, %p48
      %p51 = scmp.ne.s32.totalorder %s34, %s50
      %p52 = scmp.eq.s32.totalorder %s26, 0
      %p53 = por %p51, %p52
      %s55 = sadd.s32 %s54, 1
      %p58 = scmp.eq.s32.totalorder %s20, 1
      %p59 = scmp.ne.s32.totalorder %s54, %s56
      %p60 = scmp.eq.s32.totalorder %s20, 0
      %p61 = por %p59, %p60
      %p62 = scmp.ne.s32.totalorder %s54, %s56
      %p63 = scmp.eq.s32.totalorder %s25, 1
      %p64 = por %p62, %p63
      %p65 = scmp.ne.s32.totalorder %s56, %s57
      %p66 = scmp.eq.s32.totalorder %s25, 0
      %p67 = por %p65, %p66
      %p68 = scmp.ne.s32.totalorder %s56, %s57
      %p69 = scmp.eq.s32.totalorder %s26, 1
      %p70 = por %p68, %p69
      %p72 = scmp.ne.s32.totalorder %s57, %s71
      %p73 = scmp.eq.s32.totalorder %s26, 0
      %p74 = por %p72, %p73
      %s75 = ssub.s32 %s20, %s27
      %p76 = scmp.eq.s32.totalorder %s75, 0
      %s78 = sadd.s32 %s77, 1
      %s79 = scalar_select %p76, %s77, %s78
      %p82 = pneg %p76
      %p83 = scmp.eq.s32.totalorder %s20, 1
      %p84 = por %p82, %p83
      %p85 = scmp.ne.s32.totalorder %s77, %s80
      %p86 = scmp.eq.s32.totalorder %s20, 0
      %p87 = por %p85, %p86
      %p88 = scmp.ne.s32.totalorder %s77, %s80
      %p89 = scmp.eq.s32.totalorder %s25, 1
      %p90 = por %p88, %p89
      %p91 = scmp.ne.s32.totalorder %s80, %s81
      %p92 = scmp.eq.s32.totalorder %s25, 0
      %p93 = por %p91, %p92
      %p94 = scmp.ne.s32.totalorder %s80, %s81
      %p95 = scmp.eq.s32.totalorder %s26, 1
      %p96 = por %p94, %p95
      %p98 = scmp.ne.s32.totalorder %s81, %s97
      %p99 = scmp.eq.s32.totalorder %s26, 0
      %p100 = por %p98, %p99
      %s101 = ssub.s32 %s20, %s27
      %p102 = scmp.eq.s32.totalorder %s101, 0
      %s104 = sadd.s32 %s103, 1
      %s105 = scalar_select %p102, %s103, %s104
      %p108 = pneg %p102
      %p109 = scmp.eq.s32.totalorder %s20, 1
      %p110 = por %p108, %p109
      %p111 = scmp.ne.s32.totalorder %s103, %s106
      %p112 = scmp.eq.s32.totalorder %s20, 0
      %p113 = por %p111, %p112
      %p114 = scmp.ne.s32.totalorder %s103, %s106
      %p115 = scmp.eq.s32.totalorder %s25, 1
      %p116 = por %p114, %p115
      %p117 = scmp.ne.s32.totalorder %s106, %s107
      %p118 = scmp.eq.s32.totalorder %s25, 0
      %p119 = por %p117, %p118
      %p120 = scmp.ne.s32.totalorder %s106, %s107
      %p121 = scmp.eq.s32.totalorder %s26, 1
      %p122 = por %p120, %p121
      %p124 = scmp.ne.s32.totalorder %s107, %s123
      %p125 = scmp.eq.s32.totalorder %s26, 0
      %p126 = por %p124, %p125
      %s127 = ssub.s32 %s20, %s27
      %p128 = scmp.eq.s32.totalorder %s127, 0
      %s130 = sadd.s32 %s129, 1
      %s131 = scalar_select %p128, %s129, %s130
      %p134 = pneg %p128
      %p135 = scmp.eq.s32.totalorder %s20, 1
      %p136 = por %p134, %p135
      %p137 = scmp.ne.s32.totalorder %s129, %s132
      %p138 = scmp.eq.s32.totalorder %s20, 0
      %p139 = por %p137, %p138
      %p140 = scmp.ne.s32.totalorder %s129, %s132
      %p141 = scmp.eq.s32.totalorder %s25, 1
      %p142 = por %p140, %p141
      %p143 = scmp.ne.s32.totalorder %s132, %s133
      %p144 = scmp.eq.s32.totalorder %s25, 0
      %p145 = por %p143, %p144
      %p146 = scmp.ne.s32.totalorder %s132, %s133
      %p147 = scmp.eq.s32.totalorder %s26, 1
      %p148 = por %p146, %p147
      %p150 = scmp.ne.s32.totalorder %s133, %s149
      %p151 = scmp.eq.s32.totalorder %s26, 0
      %p152 = por %p150, %p151
      %s153 = ssub.s32 %s20, %s27
      %p154 = scmp.eq.s32.totalorder %s153, 0
      %s156 = sadd.s32 %s155, 1
      %s157 = scalar_select %p154, %s155, %s156
      %p160 = pneg %p154
      %p161 = scmp.eq.s32.totalorder %s20, 1
      %p162 = por %p160, %p161
      %p163 = scmp.ne.s32.totalorder %s155, %s158
      %p164 = scmp.eq.s32.totalorder %s20, 0
      %p165 = por %p163, %p164
      %p166 = scmp.ne.s32.totalorder %s155, %s158
      %p167 = scmp.eq.s32.totalorder %s25, 1
      %p168 = por %p166, %p167
      %p169 = scmp.ne.s32.totalorder %s158, %s159
      %p170 = scmp.eq.s32.totalorder %s25, 0
      %p171 = por %p169, %p170
      %p172 = scmp.ne.s32.totalorder %s158, %s159
      %p173 = scmp.eq.s32.totalorder %s26, 1
      %p174 = por %p172, %p173
      %p176 = scmp.ne.s32.totalorder %s159, %s175
      %p177 = scmp.eq.s32.totalorder %s26, 0
      %p178 = por %p176, %p177
      %s179 = ssub.s32 %s20, %s27
      %p180 = scmp.eq.s32.totalorder %s179, 0
      %s182 = sadd.s32 %s181, 1
      %s183 = scalar_select %p180, %s181, %s182
      %p186 = pneg %p180
      %p187 = scmp.eq.s32.totalorder %s20, 1
      %p188 = por %p186, %p187
      %p189 = scmp.ne.s32.totalorder %s181, %s184
      %p190 = scmp.eq.s32.totalorder %s20, 0
      %p191 = por %p189, %p190
      %p192 = scmp.ne.s32.totalorder %s181, %s184
      %p193 = scmp.eq.s32.totalorder %s25, 1
      %p194 = por %p192, %p193
      %p195 = scmp.ne.s32.totalorder %s184, %s185
      %p196 = scmp.eq.s32.totalorder %s25, 0
      %p197 = por %p195, %p196
      %p198 = scmp.ne.s32.totalorder %s184, %s185
      %p199 = scmp.eq.s32.totalorder %s26, 1
      %p200 = por %p198, %p199
      %p202 = scmp.ne.s32.totalorder %s185, %s201
      %p203 = scmp.eq.s32.totalorder %s26, 0
      %p204 = por %p202, %p203
      %p205 = scmp.le.s32.totalorder 1, %s20
      %p206 = scmp.lt.s32.totalorder %s20, 3
      %p207 = pnand %p205, %p206
      %p208 = pneg %p207
      // Predicated region
      $region9: #{_forward_impl.3} parent=5 // pred_check
        _
      $region10: #{_forward_impl.3} parent=5 // pred_check_branch
        %210 = sbr.rel (%p207) target = $region12
      $region11: #{_forward_impl.3} parent=5 // pred_region
        %s211 = ssub.s32 %s20, 1
        // Predicated region
        $region13: #{_forward_impl.3} parent=11 // pred_check
          %p212 = pneg %p67
        $region14: #{_forward_impl.3} parent=11 // pred_check_branch
          %214 = sbr.rel (%p212) target = $region16
        $region15: #{_forward_impl.3} parent=11 // pred_region
          %s216 = ssub.s32 1536, 1536
          %217 = vsyncadd [#allocation3], %s216
          %s218 = sshll.u32 [#allocation2], 4
          %s219 = int_to_ptr.vmem [resolvable:$true] %s218
          %224 = dma.hbm_to_vmem [thread:$0]  %s1, 1536, %s219, [#allocation3], 128, 128, 8
        $region16: #{_forward_impl.3} parent=11 // pred_fallthru
          _
      $region12: #{_forward_impl.3} parent=5 // pred_fallthru
        _
      %p225 = scmp.lt.s32.totalorder %s20, 2
      // Predicated region
      $region17: #{_forward_impl.3} parent=5 // pred_check
        %p226 = pneg %p225
      $region18: #{_forward_impl.3} parent=5 // pred_check_branch
        %228 = sbr.rel (%p226) target = $region20
      $region19: #{_forward_impl.3} parent=5 // pred_region
        // Predicated region
        $region21: #{_forward_impl.3} parent=19 // pred_check
          %p229 = pneg %p40
        $region22: #{_forward_impl.3} parent=19 // pred_check_branch
          %231 = sbr.rel (%p229) target = $region24
        $region23: #{_forward_impl.3} parent=19 // pred_region
          %p232 = scmp.lt.s32.totalorder %s20, 1
          %s233 = scalar_select %p232, %s20, 1
          %s234 = smul.addr %s233, 2
          %s235 = smul.addr %s234, 8
          %s236 = scalar_lea.vmem %s0, %s235
        $region24: #{_forward_impl.3} parent=19 // pred_fallthru
          _
        // Predicated region
        $region25: #{_forward_impl.3} parent=19 // pred_check
          %p237 = pneg %p87
        $region26: #{_forward_impl.3} parent=19 // pred_check_branch
          %239 = sbr.rel (%p237) target = $region28
        $region27: #{_forward_impl.3} parent=19 // pred_region
          %p240 = scmp.lt.s32.totalorder %s20, 1
          %s241 = scalar_select %p240, %s20, 1
          %s242 = smul.addr %s241, 4
          %s243 = smul.addr %s242, 8
          %s244 = scalar_lea.vmem %s2, %s243
        $region28: #{_forward_impl.3} parent=19 // pred_fallthru
          _
        // Predicated region
        $region29: #{_forward_impl.3} parent=19 // pred_check
          %p245 = pneg %p113
        $region30: #{_forward_impl.3} parent=19 // pred_check_branch
          %247 = sbr.rel (%p245) target = $region32
        $region31: #{_forward_impl.3} parent=19 // pred_region
          %p248 = scmp.lt.s32.totalorder %s20, 1
          %s249 = scalar_select %p248, %s20, 1
          %s250 = smul.addr %s249, 4
          %s251 = smul.addr %s250, 8
          %s252 = scalar_lea.vmem %s3, %s251
        $region32: #{_forward_impl.3} parent=19 // pred_fallthru
          _
      $region20: #{_forward_impl.3} parent=5 // pred_fallthru
        _
      %p253 = scmp.le.s32.totalorder 1, %s20
      %p254 = scmp.lt.s32.totalorder %s20, 3
      %p255 = pnand %p253, %p254
      %p256 = pneg %p255
      // Predicated region
      $region33: #{_forward_impl.3} parent=5 // pred_check
        _
      $region34: #{_forward_impl.3} parent=5 // pred_check_branch
        %258 = sbr.rel (%p255) target = $region36
      $region35: #{_forward_impl.3} parent=5 // pred_region
        %s259 = ssub.s32 %s20, 1
        // Predicated region
        $region37: #{_forward_impl.3} parent=35 // pred_check
          %p260 = pneg %p67
        $region38: #{_forward_impl.3} parent=35 // pred_check_branch
          %262 = sbr.rel (%p260) target = $region40
        $region39: #{_forward_impl.3} parent=35 // pred_region
          %263 = dma.done [#allocation3], 1536
        $region40: #{_forward_impl.3} parent=35 // pred_fallthru
          _
        %p264 = scmp.lt.s32.totalorder %s25, 1
        %s265 = scalar_select %p264, %s25, 1
        %s266 = smul.addr %s265, 2
        %s267 = smul.addr %s266, 8
        %s268 = scalar_lea.vmem %s0, %s267
        %p269 = pneg %p46
        %p270 = pneg %p43
        %p271 = pneg %p67
        %p272 = pneg %p64
        %p273 = scmp.lt.s32.totalorder %s25, 1
        %s274 = scalar_select %p273, %s25, 1
        %s275 = smul.addr %s274, 4
        %s276 = smul.addr %s275, 8
        %s277 = scalar_lea.vmem %s2, %s276
        %p278 = pneg %p93
        %p279 = pneg %p90
        %p280 = scmp.lt.s32.totalorder %s25, 1
        %s281 = scalar_select %p280, %s25, 1
        %s282 = smul.addr %s281, 4
        %s283 = smul.addr %s282, 8
        %s284 = scalar_lea.vmem %s3, %s283
        %p285 = pneg %p119
        %p286 = pneg %p116
        %p287 = pneg %p145
        %p288 = pneg %p142
        %p289 = scmp.lt.s32.totalorder %s25, 1
        %s290 = scalar_select %p289, %s25, 1
        %s291 = smul.addr %s290, 4
        %s292 = smul.addr %s291, 8
        %s293 = scalar_lea.vmem %s4, %s292
        %p294 = pneg %p171
        %p295 = pneg %p168
        %s296 = sand.u32 %s158, 1
        %s297 = scalar_lea.sflag [#allocation4], %s296
        %s298 = sand.u32 %s158, 1
        %s299 = smul.addr %s298, 32
        %s300 = scalar_lea.vmem [#allocation5], %s299
        %p301 = pneg %p197
        %p302 = pneg %p194
        %s303 = sand.u32 %s184, 1
        %s304 = scalar_lea.sflag [#allocation7], %s303
        %s305 = sand.u32 %s184, 1
        %s306 = smul.addr %s305, 32
        %s307 = scalar_lea.vmem [#allocation6], %s306
        %p308 = scmp.lt.s32.totalorder %s25, 1
        %s309 = scalar_select %p308, %s25, 1
        %s310 = smul.addr %s309, 2
        %s311 = smul.addr %s310, 8
        %s312 = scalar_lea.vmem %s0, %s311
        %p313 = scmp.lt.s32.totalorder %s25, 1
        %s314 = scalar_select %p313, %s25, 1
        %s315 = smul.addr %s314, 4
        %s316 = smul.addr %s315, 8
        %s317 = scalar_lea.vmem %s2, %s316
        %p318 = scmp.lt.s32.totalorder %s25, 1
        %s319 = scalar_select %p318, %s25, 1
        %s320 = smul.addr %s319, 4
        %s321 = smul.addr %s320, 8
        %s322 = scalar_lea.vmem %s3, %s321
        %p323 = scmp.lt.s32.totalorder %s25, 1
        %s324 = scalar_select %p323, %s25, 1
        %s325 = smul.addr %s324, 4
        %s326 = smul.addr %s325, 8
        %s327 = scalar_lea.vmem %s4, %s326
        %v328 = vld [vmem:[%s317] sm:$0xff]
        %v329 = vld [vmem:[%s317 + $0x8] sm:$0xff]
        %v330 = vld [vmem:[%s317 + $0x10] sm:$0xff]
        %v331 = vld [vmem:[%s317 + $0x18] sm:$0xff]
        %v332 = vld [vmem:[%s322] sm:$0xff]
        %v333 = vld [vmem:[%s322 + $0x8] sm:$0xff]
        %v334 = vld [vmem:[%s322 + $0x10] sm:$0xff]
        %v335 = vld [vmem:[%s322 + $0x18] sm:$0xff]
        %v336 = vld [vmem:[#allocation2] sm:$0xff]
        %v337 = vld [vmem:[#allocation2 + $0x8] sm:$0xff]
        %v338 = vld [vmem:[#allocation2 + $0x10] sm:$0xff]
        %v339 = vld [vmem:[#allocation2 + $0x18] sm:$0xff]
        %s340 = scalar_lea.vmem [#allocation2], 32
        %v341 = vld [vmem:[%s340] sm:$0xff]
        %v342 = vld [vmem:[%s340 + $0x8] sm:$0xff]
        %v343 = vld [vmem:[%s340 + $0x10] sm:$0xff]
        %v344 = vld [vmem:[%s340 + $0x18] sm:$0xff]
        %s345 = scalar_lea.vmem [#allocation2], 64
        %v346 = vld [vmem:[%s345] sm:$0xff]
        %v347 = vld [vmem:[%s345 + $0x8] sm:$0xff]
        %v348 = vld [vmem:[%s345 + $0x10] sm:$0xff]
        %v349 = vld [vmem:[%s345 + $0x18] sm:$0xff]
        %v350 = vld [vmem:[%s312] sm:$0xff]
        %v351 = vld [vmem:[%s312 + $0x8] sm:$0xff]
        %v352 = vsub.f32 0.0, %v328
        %v353 = vsub.f32 0.0, %v329
        %v354 = vsub.f32 0.0, %v330
        %v355 = vsub.f32 0.0, %v331
        %v356 = vmul.f32 %v352, 0.36
        %v357 = vmul.f32 %v353, 0.36
        %v358 = vmul.f32 %v354, 0.36
        %v359 = vmul.f32 %v355, 0.36
        %v360 = vmul.f32 %v356, %v336
        %v361 = vmul.f32 %v357, %v337
        %v362 = vmul.f32 %v358, %v338
        %v363 = vmul.f32 %v359, %v339
        %v364 = vmul.f32 %v328, 0.36
        %v365 = vmul.f32 %v329, 0.36
        %v366 = vmul.f32 %v330, 0.36
        %v367 = vmul.f32 %v331, 0.36
        %v368 = vmul.f32 %v364, %v341
        %v369 = vmul.f32 %v365, %v342
        %v370 = vmul.f32 %v366, %v343
        %v371 = vmul.f32 %v367, %v344
        %v372 = vlaneseq
        %v373 = vshrl.u32 %v372, 7
        %v374 = vsub.s32 0, %v373
        %v375 = vrot.slane %v350, %v374
        %v376 = vmul.f32 %v375, %v360
        %v377 = vmul.f32 %v375, %v361
        %v378 = vmul.f32 %v375, %v362
        %v379 = vmul.f32 %v375, %v363
        %v380 = vlaneseq
        %v381 = vshrl.u32 %v380, 7
        %v382 = vsub.s32 1, %v381
        %v383 = vrot.slane %v350, %v382
        %v384 = vmul.f32 %v383, %v368
        %v385 = vmul.f32 %v383, %v369
        %v386 = vmul.f32 %v383, %v370
        %v387 = vmul.f32 %v383, %v371
        %v388 = vadd.f32 %v376, %v384
        %v389 = vadd.f32 %v377, %v385
        %v390 = vadd.f32 %v378, %v386
        %v391 = vadd.f32 %v379, %v387
        %v392 = vlaneseq
        %v393 = vshrl.u32 %v392, 7
        %v394 = vsub.s32 2, %v393
        %v395 = vrot.slane %v350, %v394
        %v396 = vmul.f32 %v395, %v328
        %v397 = vmul.f32 %v395, %v329
        %v398 = vmul.f32 %v395, %v330
        %v399 = vmul.f32 %v395, %v331
        %v400 = vadd.f32 %v388, %v396
        %v401 = vadd.f32 %v389, %v397
        %v402 = vadd.f32 %v390, %v398
        %v403 = vadd.f32 %v391, %v399
        %v404 = vlaneseq
        %v405 = vshrl.u32 %v404, 7
        %v406 = vsub.s32 3, %v405
        %v407 = vrot.slane %v350, %v406
        %v408 = vadd.f32 %v400, %v407
        %v409 = vadd.f32 %v401, %v407
        %v410 = vadd.f32 %v402, %v407
        %v411 = vadd.f32 %v403, %v407
        %v412 = vlaneseq
        %v413 = vshrl.u32 %v412, 7
        %v414 = vsub.s32 4, %v413
        %v415 = vrot.slane %v350, %v414
        %v416 = vmul.f32 %v415, %v360
        %v417 = vmul.f32 %v415, %v361
        %v418 = vmul.f32 %v415, %v362
        %v419 = vmul.f32 %v415, %v363
        %v420 = vlaneseq
        %v421 = vshrl.u32 %v420, 7
        %v422 = vsub.s32 5, %v421
        %v423 = vrot.slane %v350, %v422
        %v424 = vmul.f32 %v423, %v368
        %v425 = vmul.f32 %v423, %v369
        %v426 = vmul.f32 %v423, %v370
        %v427 = vmul.f32 %v423, %v371
        %v428 = vadd.f32 %v416, %v424
        %v429 = vadd.f32 %v417, %v425
        %v430 = vadd.f32 %v418, %v426
        %v431 = vadd.f32 %v419, %v427
        %v432 = vlaneseq
        %v433 = vshrl.u32 %v432, 7
        %v434 = vsub.s32 6, %v433
        %v435 = vrot.slane %v350, %v434
        %v436 = vmul.f32 %v435, %v328
        %v437 = vmul.f32 %v435, %v329
        %v438 = vmul.f32 %v435, %v330
        %v439 = vmul.f32 %v435, %v331
        %v440 = vadd.f32 %v428, %v436
        %v441 = vadd.f32 %v429, %v437
        %v442 = vadd.f32 %v430, %v438
        %v443 = vadd.f32 %v431, %v439
        %v444 = vlaneseq
        %v445 = vshrl.u32 %v444, 7
        %v446 = vsub.s32 7, %v445
        %v447 = vrot.slane %v350, %v446
        %v448 = vadd.f32 %v440, %v447
        %v449 = vadd.f32 %v441, %v447
        %v450 = vadd.f32 %v442, %v447
        %v451 = vadd.f32 %v443, %v447
        %v452 = vlaneseq
        %v453 = vshrl.u32 %v452, 7
        %v454 = vsub.s32 0, %v453
        %v455 = vrot.slane %v351, %v454
        %v456 = vmul.f32 %v455, %v360
        %v457 = vmul.f32 %v455, %v361
        %v458 = vmul.f32 %v455, %v362
        %v459 = vmul.f32 %v455, %v363
        %v460 = vlaneseq
        %v461 = vshrl.u32 %v460, 7
        %v462 = vsub.s32 1, %v461
        %v463 = vrot.slane %v351, %v462
        %v464 = vmul.f32 %v463, %v368
        %v465 = vmul.f32 %v463, %v369
        %v466 = vmul.f32 %v463, %v370
        %v467 = vmul.f32 %v463, %v371
        %v468 = vadd.f32 %v456, %v464
        %v469 = vadd.f32 %v457, %v465
        %v470 = vadd.f32 %v458, %v466
        %v471 = vadd.f32 %v459, %v467
        %v472 = vlaneseq
        %v473 = vshrl.u32 %v472, 7
        %v474 = vsub.s32 2, %v473
        %v475 = vrot.slane %v351, %v474
        %v476 = vmul.f32 %v475, %v328
        %v477 = vmul.f32 %v475, %v329
        %v478 = vmul.f32 %v475, %v330
        %v479 = vmul.f32 %v475, %v331
        %v480 = vadd.f32 %v468, %v476
        %v481 = vadd.f32 %v469, %v477
        %v482 = vadd.f32 %v470, %v478
        %v483 = vadd.f32 %v471, %v479
        %v484 = vlaneseq
        %v485 = vshrl.u32 %v484, 7
        %v486 = vsub.s32 3, %v485
        %v487 = vrot.slane %v351, %v486
        %v488 = vadd.f32 %v480, %v487
        %v489 = vadd.f32 %v481, %v487
        %v490 = vadd.f32 %v482, %v487
        %v491 = vadd.f32 %v483, %v487
        %v492 = vlaneseq
        %v493 = vshrl.u32 %v492, 7
        %v494 = vsub.s32 4, %v493
        %v495 = vrot.slane %v351, %v494
        %v496 = vmul.f32 %v495, %v360
        %v497 = vmul.f32 %v495, %v361
        %v498 = vmul.f32 %v495, %v362
        %v499 = vmul.f32 %v495, %v363
        %v500 = vlaneseq
        %v501 = vshrl.u32 %v500, 7
        %v502 = vsub.s32 5, %v501
        %v503 = vrot.slane %v351, %v502
        %v504 = vmul.f32 %v503, %v368
        %v505 = vmul.f32 %v503, %v369
        %v506 = vmul.f32 %v503, %v370
        %v507 = vmul.f32 %v503, %v371
        %v508 = vadd.f32 %v496, %v504
        %v509 = vadd.f32 %v497, %v505
        %v510 = vadd.f32 %v498, %v506
        %v511 = vadd.f32 %v499, %v507
        %v512 = vlaneseq
        %v513 = vshrl.u32 %v512, 7
        %v514 = vsub.s32 6, %v513
        %v515 = vrot.slane %v351, %v514
        %v516 = vmul.f32 %v515, %v328
        %v517 = vmul.f32 %v515, %v329
        %v518 = vmul.f32 %v515, %v330
        %v519 = vmul.f32 %v515, %v331
        %v520 = vadd.f32 %v508, %v516
        %v521 = vadd.f32 %v509, %v517
        %v522 = vadd.f32 %v510, %v518
        %v523 = vadd.f32 %v511, %v519
        %v524 = vlaneseq
        %v525 = vshrl.u32 %v524, 7
        %v526 = vsub.s32 7, %v525
        %v527 = vrot.slane %v351, %v526
        %v528 = vadd.f32 %v520, %v527
        %v529 = vadd.f32 %v521, %v527
        %v530 = vadd.f32 %v522, %v527
        %v531 = vadd.f32 %v523, %v527
        %v532 = vadd.f32 %v408, 1.0
        %v533 = vadd.f32 %v409, 1.0
        %v534 = vadd.f32 %v410, 1.0
        %v535 = vadd.f32 %v411, 1.0
        %v536 = vmul.f32 %v532, 32.0
        %v537 = vmul.f32 %v533, 32.0
        %v538 = vmul.f32 %v534, 32.0
        %v539 = vmul.f32 %v535, 32.0
        %v540 = vmul.f32 %v536, 0.5
        %v541 = vmul.f32 %v537, 0.5
        %v542 = vmul.f32 %v538, 0.5
        %v543 = vmul.f32 %v539, 0.5
        %v544 = vcvt.f32.s32.to.zero.pseudo %v540
        %v545 = vcvt.f32.s32.to.zero.pseudo %v541
        %v546 = vcvt.f32.s32.to.zero.pseudo %v542
        %v547 = vcvt.f32.s32.to.zero.pseudo %v543
        %vm548 = vcmp.gt.s32.totalorder %v544, 0
        %v549 = vsel %vm548, %v544, 0
        %vm550 = vcmp.gt.s32.totalorder %v545, 0
        %v551 = vsel %vm550, %v545, 0
        %vm552 = vcmp.gt.s32.totalorder %v546, 0
        %v553 = vsel %vm552, %v546, 0
        %vm554 = vcmp.gt.s32.totalorder %v547, 0
        %v555 = vsel %vm554, %v547, 0
        %vm556 = vcmp.lt.s32.totalorder %v549, 31
        %v557 = vsel %vm556, %v549, 31
        %vm558 = vcmp.lt.s32.totalorder %v551, 31
        %v559 = vsel %vm558, %v551, 31
        %vm560 = vcmp.lt.s32.totalorder %v553, 31
        %v561 = vsel %vm560, %v553, 31
        %vm562 = vcmp.lt.s32.totalorder %v555, 31
        %v563 = vsel %vm562, %v555, 31
        %v564 = vadd.f32 %v448, 1.0
        %v565 = vadd.f32 %v449, 1.0
        %v566 = vadd.f32 %v450, 1.0
        %v567 = vadd.f32 %v451, 1.0
        %v568 = vmul.f32 %v564, 32.0
        %v569 = vmul.f32 %v565, 32.0
        %v570 = vmul.f32 %v566, 32.0
        %v571 = vmul.f32 %v567, 32.0
        %v572 = vmul.f32 %v568, 0.5
        %v573 = vmul.f32 %v569, 0.5
        %v574 = vmul.f32 %v570, 0.5
        %v575 = vmul.f32 %v571, 0.5
        %v576 = vcvt.f32.s32.to.zero.pseudo %v572
        %v577 = vcvt.f32.s32.to.zero.pseudo %v573
        %v578 = vcvt.f32.s32.to.zero.pseudo %v574
        %v579 = vcvt.f32.s32.to.zero.pseudo %v575
        %vm580 = vcmp.gt.s32.totalorder %v576, 0
        %v581 = vsel %vm580, %v576, 0
        %vm582 = vcmp.gt.s32.totalorder %v577, 0
        %v583 = vsel %vm582, %v577, 0
        %vm584 = vcmp.gt.s32.totalorder %v578, 0
        %v585 = vsel %vm584, %v578, 0
        %vm586 = vcmp.gt.s32.totalorder %v579, 0
        %v587 = vsel %vm586, %v579, 0
        %vm588 = vcmp.lt.s32.totalorder %v581, 31
        %v589 = vsel %vm588, %v581, 31
        %vm590 = vcmp.lt.s32.totalorder %v583, 31
        %v591 = vsel %vm590, %v583, 31
        %vm592 = vcmp.lt.s32.totalorder %v585, 31
        %v593 = vsel %vm592, %v585, 31
        %vm594 = vcmp.lt.s32.totalorder %v587, 31
        %v595 = vsel %vm594, %v587, 31
        %v596 = vrcp.pop %v528
        %v597 = vmul.f32 %v488, %v596
        %v598 = vrcp.pop %v529
        %v599 = vmul.f32 %v489, %v598
        %v600 = vrcp.pop %v530
        %v601 = vmul.f32 %v490, %v600
        %v602 = vrcp.pop %v531
        %v603 = vmul.f32 %v491, %v602
        %v604 = vadd.f32 %v597, 1.0
        %v605 = vadd.f32 %v599, 1.0
        %v606 = vadd.f32 %v601, 1.0
        %v607 = vadd.f32 %v603, 1.0
        %v608 = vmul.f32 %v604, 0.5
        %v609 = vmul.f32 %v605, 0.5
        %v610 = vmul.f32 %v606, 0.5
        %v611 = vmul.f32 %v607, 0.5
        %v612 = vmax.f32 %v608, 0.0
        %v613 = vmax.f32 %v609, 0.0
        %v614 = vmax.f32 %v610, 0.0
        %v615 = vmax.f32 %v611, 0.0
        %v616 = vmin.f32 %v612, 1.0
        %v617 = vmin.f32 %v613, 1.0
        %v618 = vmin.f32 %v614, 1.0
        %v619 = vmin.f32 %v615, 1.0
        %v620 = vcvt.f32.s32.to.zero.pseudo %v346
        %v621 = vcvt.f32.s32.to.zero.pseudo %v347
        %v622 = vcvt.f32.s32.to.zero.pseudo %v348
        %v623 = vcvt.f32.s32.to.zero.pseudo %v349
        %v624 = vmul.u32 %v589, 32
        %v625 = vmul.u32 %v591, 32
        %v626 = vmul.u32 %v593, 32
        %v627 = vmul.u32 %v595, 32
        %v628 = vadd.s32 %v620, %v624
        %v629 = vadd.s32 %v621, %v625
        %v630 = vadd.s32 %v622, %v626
        %v631 = vadd.s32 %v623, %v627
        %v632 = vadd.s32 %v628, %v557
        %v633 = vadd.s32 %v629, %v559
        %v634 = vadd.s32 %v630, %v561
        %v635 = vadd.s32 %v631, %v563
        %636 = vst [vmem:[%s327] sm:$0xff] %v632
        %637 = vst [vmem:[%s327 + $0x8] sm:$0xff] %v633
        %638 = vst [vmem:[%s327 + $0x10] sm:$0xff] %v634
        %639 = vst [vmem:[%s327 + $0x18] sm:$0xff] %v635
        %640 = vst [vmem:[%s300] sm:$0xff] %v616
        %641 = vst [vmem:[%s300 + $0x8] sm:$0xff] %v617
        %642 = vst [vmem:[%s300 + $0x10] sm:$0xff] %v618
        %643 = vst [vmem:[%s300 + $0x18] sm:$0xff] %v619
        %vm644 = vcmp.gt.f32.partialorder %v332, 0.0
        %vm645 = vcmp.gt.f32.partialorder %v333, 0.0
        %vm646 = vcmp.gt.f32.partialorder %v334, 0.0
        %vm647 = vcmp.gt.f32.partialorder %v335, 0.0
        %v648 = vsel %vm644, %v616, 1.0
        %v649 = vsel %vm645, %v617, 1.0
        %v650 = vsel %vm646, %v618, 1.0
        %v651 = vsel %vm647, %v619, 1.0
        %652 = vst [vmem:[%s307] sm:$0xff] %v648
        %653 = vst [vmem:[%s307 + $0x8] sm:$0xff] %v649
        %654 = vst [vmem:[%s307 + $0x10] sm:$0xff] %v650
        %655 = vst [vmem:[%s307 + $0x18] sm:$0xff] %v651
        %p656 = scmp.lt.s32.totalorder %s25, 1
        %s657 = scalar_select %p656, %s25, 1
        %s658 = smul.addr %s657, 4
        %s659 = smul.addr %s658, 8
        %s660 = scalar_lea.vmem %s4, %s659
        %s661 = sand.u32 %s158, 1
        %s662 = scalar_lea.sflag [#allocation4], %s661
        %s663 = sand.u32 %s158, 1
        %s664 = smul.addr %s663, 32
        %s665 = scalar_lea.vmem [#allocation5], %s664
        %s666 = sand.u32 %s184, 1
        %s667 = scalar_lea.sflag [#allocation7], %s666
        %s668 = sand.u32 %s184, 1
        %s669 = smul.addr %s668, 32
        %s670 = scalar_lea.vmem [#allocation6], %s669
        // Predicated region
        $region41: #{_forward_impl.3} parent=35 // pred_check
          %p671 = pneg %p142
        $region42: #{_forward_impl.3} parent=35 // pred_check_branch
          %673 = sbr.rel (%p671) target = $region44
        $region43: #{_forward_impl.3} parent=35 // pred_region
          _
        $region44: #{_forward_impl.3} parent=35 // pred_fallthru
          _
        // Predicated region
        $region45: #{_forward_impl.3} parent=35 // pred_check
          %p674 = pneg %p168
        $region46: #{_forward_impl.3} parent=35 // pred_check_branch
          %676 = sbr.rel (%p674) target = $region48
        $region47: #{_forward_impl.3} parent=35 // pred_region
          %s678 = ssub.s32 512, 512
          %679 = vsyncadd %s662, %s678
          %s680 = smul.addr %s25, 4
          %s681 = smul.addr %s680, 128
          %s682 = scalar_lea.hbm %s5, %s681
          %s683 = sshll.u32 %s665, 4
          %s684 = int_to_ptr.vmem [resolvable:$true] %s683
          %689 = dma.vmem_to_hbm [thread:$0]  %s684, 512, %s682, %s662, 128, 128, 8
        $region48: #{_forward_impl.3} parent=35 // pred_fallthru
          _
        // Predicated region
        $region49: #{_forward_impl.3} parent=35 // pred_check
          %p690 = pneg %p194
        $region50: #{_forward_impl.3} parent=35 // pred_check_branch
          %692 = sbr.rel (%p690) target = $region52
        $region51: #{_forward_impl.3} parent=35 // pred_region
          %s694 = ssub.s32 512, 512
          %695 = vsyncadd %s667, %s694
          %s696 = smul.addr %s25, 4
          %s697 = smul.addr %s696, 128
          %s698 = scalar_lea.hbm %s6, %s697
          %s699 = sshll.u32 %s670, 4
          %s700 = int_to_ptr.vmem [resolvable:$true] %s699
          %705 = dma.vmem_to_hbm [thread:$0]  %s700, 512, %s698, %s667, 128, 128, 8
        $region52: #{_forward_impl.3} parent=35 // pred_fallthru
          _
      $region36: #{_forward_impl.3} parent=5 // pred_fallthru
        _
      %p706 = scmp.le.s32.totalorder 2, %s20
      // Predicated region
      $region53: #{_forward_impl.3} parent=5 // pred_check
        %p707 = pneg %p706
      $region54: #{_forward_impl.3} parent=5 // pred_check_branch
        %709 = sbr.rel (%p707) target = $region56
      $region55: #{_forward_impl.3} parent=5 // pred_region
        %s710 = ssub.s32 %s20, 2
        // Predicated region
        $region57: #{_forward_impl.3} parent=55 // pred_check
          %p711 = pneg %p148
        $region58: #{_forward_impl.3} parent=55 // pred_check_branch
          %713 = sbr.rel (%p711) target = $region60
        $region59: #{_forward_impl.3} parent=55 // pred_region
          %p714 = scmp.lt.s32.totalorder %s26, 1
          %s715 = scalar_select %p714, %s26, 1
          %s716 = smul.addr %s715, 4
          %s717 = smul.addr %s716, 8
          %s718 = scalar_lea.vmem %s4, %s717
        $region60: #{_forward_impl.3} parent=55 // pred_fallthru
          _
        // Predicated region
        $region61: #{_forward_impl.3} parent=55 // pred_check
          %p719 = pneg %p174
        $region62: #{_forward_impl.3} parent=55 // pred_check_branch
          %721 = sbr.rel (%p719) target = $region64
        $region63: #{_forward_impl.3} parent=55 // pred_region
          %s722 = sand.u32 %s159, 1
          %s723 = scalar_lea.sflag [#allocation4], %s722
          %s724 = sand.u32 %s159, 1
          %s725 = smul.addr %s724, 32
          %s726 = scalar_lea.vmem [#allocation5], %s725
          %727 = dma.done %s723, 512
        $region64: #{_forward_impl.3} parent=55 // pred_fallthru
          _
        // Predicated region
        $region65: #{_forward_impl.3} parent=55 // pred_check
          %p728 = pneg %p200
        $region66: #{_forward_impl.3} parent=55 // pred_check_branch
          %730 = sbr.rel (%p728) target = $region68
        $region67: #{_forward_impl.3} parent=55 // pred_region
          %s731 = sand.u32 %s185, 1
          %s732 = scalar_lea.sflag [#allocation7], %s731
          %s733 = sand.u32 %s185, 1
          %s734 = smul.addr %s733, 32
          %s735 = scalar_lea.vmem [#allocation6], %s734
          %736 = dma.done %s732, 512
        $region68: #{_forward_impl.3} parent=55 // pred_fallthru
          _
      $region56: #{_forward_impl.3} parent=5 // pred_fallthru
        _
    $region6: #{_forward_impl.3} parent=1 // loop_footer
      %s24 = sadd.s32 1, %s20
    $region7: #{_forward_impl.3} parent=1 // loop_footer_branch
      %19 = sbr.rel target = $region3
    $region8: #{_forward_impl.3} parent=1 // loop_exit
      _
    %737 = vsyncpa [#allocation3], 1
    %s738 = scalar_lea.sflag [#allocation3], 1
    %739 = vsyncpa %s738, 1
    %740 = vsyncpa [#allocation4], 1
    %s741 = scalar_lea.sflag [#allocation4], 1
    %742 = vsyncpa %s741, 1
    %743 = vsyncpa [#allocation7], 1
    %s744 = scalar_lea.sflag [#allocation7], 1
    %745 = vsyncpa %s744, 1

// kernel: _forward_impl.4
$region0: #{_forward_impl.4}
  #allocation0 [shape = 'u32[]', space=smem, size = 0x4, offset = 0x4, fixed_abs, tag = 'smem constant byte address 0x4 - core index']
  #allocation1 [shape = 'u32[144,128]{1,0:T(1,128)}', space=vmem, size = 0x12000, scoped, tag = 'internal scratch']
  %s0 = inlined_call_operand.vmem [shape: f32[8,32,32], index: 0, kind: input, shape index: {}]
  %s1 = inlined_call_operand.vmem [shape: f32[8,32,32], index: 1, kind: input, shape index: {}]
  %s2 = inlined_call_operand.vmem [shape: f32[8,32,32], index: 2, kind: input, shape index: {}]
  %s3 = inlined_call_operand.vmem [shape: f32[8,32,256], index: 3, kind: output, shape index: {}]
  %s4 = sld [smem:[#allocation0]]
  $region45: #{_forward_impl.4} parent=0
    _
  %s6 = ssub.s32 1, %s4
  %s7 = scalar_select 0, %s6, %s4
  loop: start=0, step=1, limit=10
  $region2: #{_forward_impl.4} parent=0 // loop_pre_header
    _
  $region3: #{_forward_impl.4} parent=0 // loop_header
    %s9 = sphi 0, %s13
    %p10 = scmp.ge.s32.totalorder %s9, 10
    %s19 = sphi 0, %s21
    %s22 = sphi 0, %s19
    %s23 = sphi 0, %s22
    %s39 = sphi 0, %s23
    %s45 = sphi 0, %s47
    %s48 = sphi 0, %s45
    %s49 = sphi 0, %s48
    %s65 = sphi 0, %s49
    %s71 = sphi 0, %s73
    %s74 = sphi 0, %s71
    %s75 = sphi 0, %s74
    %s91 = sphi 0, %s75
    %s97 = sphi 0, %s99
    %s100 = sphi 0, %s97
    %s101 = sphi 0, %s100
    %s117 = sphi 0, %s101
  $region4: #{_forward_impl.4} parent=0 // loop_header_branch
    %12 = sbr.rel (%p10) target = $region8
  $region5: #{_forward_impl.4} parent=0 // loop_body
    %s14 = ssub.s32 %s9, 1
    %s15 = ssub.s32 %s9, 2
    %s16 = sadd.s32 %s9, 1
    %s17 = ssub.s32 %s9, %s16
    %p18 = scmp.eq.s32.totalorder %s17, 0
    %s20 = sadd.s32 %s19, 1
    %s21 = scalar_select %p18, %s19, %s20
    %p24 = pneg %p18
    %p25 = scmp.eq.s32.totalorder %s9, 7
    %p26 = por %p24, %p25
    %p27 = scmp.ne.s32.totalorder %s19, %s22
    %p28 = scmp.eq.s32.totalorder %s9, 0
    %p29 = por %p27, %p28
    %p30 = scmp.ne.s32.totalorder %s19, %s22
    %p31 = scmp.eq.s32.totalorder %s14, 7
    %p32 = por %p30, %p31
    %p33 = scmp.ne.s32.totalorder %s22, %s23
    %p34 = scmp.eq.s32.totalorder %s14, 0
    %p35 = por %p33, %p34
    %p36 = scmp.ne.s32.totalorder %s22, %s23
    %p37 = scmp.eq.s32.totalorder %s15, 7
    %p38 = por %p36, %p37
    %p40 = scmp.ne.s32.totalorder %s23, %s39
    %p41 = scmp.eq.s32.totalorder %s15, 0
    %p42 = por %p40, %p41
    %s43 = ssub.s32 %s9, %s16
    %p44 = scmp.eq.s32.totalorder %s43, 0
    %s46 = sadd.s32 %s45, 1
    %s47 = scalar_select %p44, %s45, %s46
    %p50 = pneg %p44
    %p51 = scmp.eq.s32.totalorder %s9, 7
    %p52 = por %p50, %p51
    %p53 = scmp.ne.s32.totalorder %s45, %s48
    %p54 = scmp.eq.s32.totalorder %s9, 0
    %p55 = por %p53, %p54
    %p56 = scmp.ne.s32.totalorder %s45, %s48
    %p57 = scmp.eq.s32.totalorder %s14, 7
    %p58 = por %p56, %p57
    %p59 = scmp.ne.s32.totalorder %s48, %s49
    %p60 = scmp.eq.s32.totalorder %s14, 0
    %p61 = por %p59, %p60
    %p62 = scmp.ne.s32.totalorder %s48, %s49
    %p63 = scmp.eq.s32.totalorder %s15, 7
    %p64 = por %p62, %p63
    %p66 = scmp.ne.s32.totalorder %s49, %s65
    %p67 = scmp.eq.s32.totalorder %s15, 0
    %p68 = por %p66, %p67
    %s69 = ssub.s32 %s9, %s16
    %p70 = scmp.eq.s32.totalorder %s69, 0
    %s72 = sadd.s32 %s71, 1
    %s73 = scalar_select %p70, %s71, %s72
    %p76 = pneg %p70
    %p77 = scmp.eq.s32.totalorder %s9, 7
    %p78 = por %p76, %p77
    %p79 = scmp.ne.s32.totalorder %s71, %s74
    %p80 = scmp.eq.s32.totalorder %s9, 0
    %p81 = por %p79, %p80
    %p82 = scmp.ne.s32.totalorder %s71, %s74
    %p83 = scmp.eq.s32.totalorder %s14, 7
    %p84 = por %p82, %p83
    %p85 = scmp.ne.s32.totalorder %s74, %s75
    %p86 = scmp.eq.s32.totalorder %s14, 0
    %p87 = por %p85, %p86
    %p88 = scmp.ne.s32.totalorder %s74, %s75
    %p89 = scmp.eq.s32.totalorder %s15, 7
    %p90 = por %p88, %p89
    %p92 = scmp.ne.s32.totalorder %s75, %s91
    %p93 = scmp.eq.s32.totalorder %s15, 0
    %p94 = por %p92, %p93
    %s95 = ssub.s32 %s9, %s16
    %p96 = scmp.eq.s32.totalorder %s95, 0
    %s98 = sadd.s32 %s97, 1
    %s99 = scalar_select %p96, %s97, %s98
    %p102 = pneg %p96
    %p103 = scmp.eq.s32.totalorder %s9, 7
    %p104 = por %p102, %p103
    %p105 = scmp.ne.s32.totalorder %s97, %s100
    %p106 = scmp.eq.s32.totalorder %s9, 0
    %p107 = por %p105, %p106
    %p108 = scmp.ne.s32.totalorder %s97, %s100
    %p109 = scmp.eq.s32.totalorder %s14, 7
    %p110 = por %p108, %p109
    %p111 = scmp.ne.s32.totalorder %s100, %s101
    %p112 = scmp.eq.s32.totalorder %s14, 0
    %p113 = por %p111, %p112
    %p114 = scmp.ne.s32.totalorder %s100, %s101
    %p115 = scmp.eq.s32.totalorder %s15, 7
    %p116 = por %p114, %p115
    %p118 = scmp.ne.s32.totalorder %s101, %s117
    %p119 = scmp.eq.s32.totalorder %s15, 0
    %p120 = por %p118, %p119
    %p121 = scmp.le.s32.totalorder 1, %s9
    %p122 = scmp.lt.s32.totalorder %s9, 9
    %p123 = pnand %p121, %p122
    %p124 = pneg %p123
    // Predicated region
    $region9: #{_forward_impl.4} parent=5 // pred_check
      _
    $region10: #{_forward_impl.4} parent=5 // pred_check_branch
      %126 = sbr.rel (%p123) target = $region12
    $region11: #{_forward_impl.4} parent=5 // pred_region
      %s127 = ssub.s32 %s9, 1
    $region12: #{_forward_impl.4} parent=5 // pred_fallthru
      _
    %p128 = scmp.lt.s32.totalorder %s9, 8
    // Predicated region
    $region13: #{_forward_impl.4} parent=5 // pred_check
      %p129 = pneg %p128
    $region14: #{_forward_impl.4} parent=5 // pred_check_branch
      %131 = sbr.rel (%p129) target = $region16
    $region15: #{_forward_impl.4} parent=5 // pred_region
      // Predicated region
      $region17: #{_forward_impl.4} parent=15 // pred_check
        %p132 = pneg %p29
      $region18: #{_forward_impl.4} parent=15 // pred_check_branch
        %134 = sbr.rel (%p132) target = $region20
      $region19: #{_forward_impl.4} parent=15 // pred_region
        %p135 = scmp.lt.s32.totalorder %s9, 7
        %s136 = scalar_select %p135, %s9, 7
        %s137 = smul.addr %s136, 4
        %s138 = smul.addr %s137, 8
        %s139 = scalar_lea.vmem %s0, %s138
      $region20: #{_forward_impl.4} parent=15 // pred_fallthru
        _
      // Predicated region
      $region21: #{_forward_impl.4} parent=15 // pred_check
        %p140 = pneg %p55
      $region22: #{_forward_impl.4} parent=15 // pred_check_branch
        %142 = sbr.rel (%p140) target = $region24
      $region23: #{_forward_impl.4} parent=15 // pred_region
        %p143 = scmp.lt.s32.totalorder %s9, 7
        %s144 = scalar_select %p143, %s9, 7
        %s145 = smul.addr %s144, 4
        %s146 = smul.addr %s145, 8
        %s147 = scalar_lea.vmem %s1, %s146
      $region24: #{_forward_impl.4} parent=15 // pred_fallthru
        _
      // Predicated region
      $region25: #{_forward_impl.4} parent=15 // pred_check
        %p148 = pneg %p81
      $region26: #{_forward_impl.4} parent=15 // pred_check_branch
        %150 = sbr.rel (%p148) target = $region28
      $region27: #{_forward_impl.4} parent=15 // pred_region
        %p151 = scmp.lt.s32.totalorder %s9, 7
        %s152 = scalar_select %p151, %s9, 7
        %s153 = smul.addr %s152, 4
        %s154 = smul.addr %s153, 8
        %s155 = scalar_lea.vmem %s2, %s154
      $region28: #{_forward_impl.4} parent=15 // pred_fallthru
        _
    $region16: #{_forward_impl.4} parent=5 // pred_fallthru
      _
    %p156 = scmp.le.s32.totalorder 1, %s9
    %p157 = scmp.lt.s32.totalorder %s9, 9
    %p158 = pnand %p156, %p157
    %p159 = pneg %p158
    // Predicated region
    $region29: #{_forward_impl.4} parent=5 // pred_check
      _
    $region30: #{_forward_impl.4} parent=5 // pred_check_branch
      %161 = sbr.rel (%p158) target = $region32
    $region31: #{_forward_impl.4} parent=5 // pred_region
      %s162 = ssub.s32 %s9, 1
      %p163 = scmp.lt.s32.totalorder %s14, 7
      %s164 = scalar_select %p163, %s14, 7
      %s165 = smul.addr %s164, 4
      %s166 = smul.addr %s165, 8
      %s167 = scalar_lea.vmem %s0, %s166
      %p168 = pneg %p35
      %p169 = pneg %p32
      %p170 = scmp.lt.s32.totalorder %s14, 7
      %s171 = scalar_select %p170, %s14, 7
      %s172 = smul.addr %s171, 4
      %s173 = smul.addr %s172, 8
      %s174 = scalar_lea.vmem %s1, %s173
      %p175 = pneg %p61
      %p176 = pneg %p58
      %p177 = scmp.lt.s32.totalorder %s14, 7
      %s178 = scalar_select %p177, %s14, 7
      %s179 = smul.addr %s178, 4
      %s180 = smul.addr %s179, 8
      %s181 = scalar_lea.vmem %s2, %s180
      %p182 = pneg %p87
      %p183 = pneg %p84
      %p184 = pneg %p113
      %p185 = pneg %p110
      %p186 = scmp.lt.s32.totalorder %s14, 7
      %s187 = scalar_select %p186, %s14, 7
      %s188 = smul.addr %s187, 8
      %s189 = smul.addr %s188, 8
      %s190 = scalar_lea.vmem %s3, %s189
      %p191 = scmp.lt.s32.totalorder %s14, 7
      %s192 = scalar_select %p191, %s14, 7
      %s193 = smul.addr %s192, 4
      %s194 = smul.addr %s193, 8
      %s195 = scalar_lea.vmem %s0, %s194
      %p196 = scmp.lt.s32.totalorder %s14, 7
      %s197 = scalar_select %p196, %s14, 7
      %s198 = smul.addr %s197, 4
      %s199 = smul.addr %s198, 8
      %s200 = scalar_lea.vmem %s1, %s199
      %p201 = scmp.lt.s32.totalorder %s14, 7
      %s202 = scalar_select %p201, %s14, 7
      %s203 = smul.addr %s202, 4
      %s204 = smul.addr %s203, 8
      %s205 = scalar_lea.vmem %s2, %s204
      %p206 = scmp.lt.s32.totalorder %s14, 7
      %s207 = scalar_select %p206, %s14, 7
      %s208 = smul.addr %s207, 8
      %s209 = smul.addr %s208, 8
      %s210 = scalar_lea.vmem %s3, %s209
      %v211 = vld [vmem:[%s195] sm:$0xff]
      %v212 = vld [vmem:[%s195 + $0x8] sm:$0xff]
      %v213 = vld [vmem:[%s195 + $0x10] sm:$0xff]
      %v214 = vld [vmem:[%s195 + $0x18] sm:$0xff]
      %v215 = vmul.f32 %v211, 3.1415927
      %v216 = vmul.f32 %v212, 3.1415927
      %v217 = vmul.f32 %v213, 3.1415927
      %v218 = vmul.f32 %v214, 3.1415927
      %v219 = vand.u32 2147483647, %v215
      %vm220 = vcmp.le.f32.partialorder %v219, 0.7853982
      %vm221 = vcmp.lt.s32.totalorder %v215, 0
      %v222 = vand.u32 %v215, 2139095040
      %v223 = vshrl.u32 %v222, 23
      %v224 = vsub.s32 %v223, 127
      %v225 = vand.u32 2147483647, %v215
      %v226 = vand.u32 %v225, 8388607
      %v227 = vor.u32 %v226, 8388608
      %v228 = vsub.s32 0, %v227
      %v229 = vadd.s32 %v224, 1
      %vm230 = vcmp.gt.s32.totalorder %v229, 0
      %v231 = vsel %vm230, %v229, 0
      %v232 = vshrl.u32 %v231, 5
      %v233 = vand.u32 %v231, 31
      %v234 = vsub.s32 32, %v233
      %v235 = vshrl.u32 683565275, %v234
      %v236 = vshll.u32 683565275, %v233
      %v237 = vshrl.u32 2475754826, %v234
      %v238 = vor.u32 %v236, %v237
      %v239 = vshll.u32 2475754826, %v233
      %v240 = vshrl.u32 2131351028, %v234
      %v241 = vor.u32 %v239, %v240
      %v242 = vshll.u32 2131351028, %v233
      %v243 = vshrl.u32 2102212464, %v234
      %v244 = vor.u32 %v242, %v243
      %v245 = vshll.u32 2102212464, %v233
      %v246 = vshrl.u32 920167782, %v234
      %v247 = vor.u32 %v245, %v246
      %v248 = vshll.u32 920167782, %v233
      %v249 = vshrl.u32 1326507024, %v234
      %v250 = vor.u32 %v248, %v249
      %vm251 = vcmp.lt.s32.totalorder %v232, 1
      %vm252 = vcmp.lt.s32.totalorder %v232, 2
      %vm253 = vcmp.lt.s32.totalorder %v232, 3
      %vm254 = vcmp.lt.s32.totalorder %v232, 4
      %v255 = vsel %vm251, %v235, %v238
      %v256 = vsel %vm254, %v244, 2102212464
      %v257 = vsel %vm253, %v241, %v256
      %v258 = vsel %vm252, %v255, %v257
      %v259 = vsel %vm251, %v238, %v241
      %v260 = vsel %vm254, %v247, 920167782
      %v261 = vsel %vm253, %v244, %v260
      %v262 = vsel %vm252, %v259, %v261
      %v263 = vsel %vm251, %v241, %v244
      %v264 = vsel %vm254, %v250, 1326507024
      %v265 = vsel %vm253, %v247, %v264
      %v266 = vsel %vm252, %v263, %v265
      %v267 = vshll.u32 %v227, 8
      %v268 = vmul.u32.u64.compose %v267, %v266
      %v269 = vextract.low.u32 %v268
      %v270 = vextract.high.u32 %v268
      %v271 = vmul.u32.u64.compose %v267, %v262
      %v272 = vextract.low.u32 %v271
      %v273 = vextract.high.u32 %v271
      %v274 = vmul.u32 %v267, %v258
      %v275 = vadd.s32 %v270, %v272
      %vm276 = vc.u32 %v270, %v272
      %v277 = vadd.s32 %v273, 1
      %v278 = vsel %vm276, %v277, %v273
      %v279 = vadd.s32 %v274, %v278
      %v280 = vadd.s32 %v279, 536870912
      %v281 = vshrl.u32 %v280, 30
      %v282 = vshll.u32 %v281, 30
      %v283 = vsub.s32 %v279, %v282
      %vm284 = vcmp.lt.s32.totalorder %v283, 0
      %v285 = vsub.s32 0, %v283
      %v286 = vsel %vm284, %v285, %v283
      %v287 = vclz %v286
      %v288 = vsub.s32 %v287, 2
      %vm289 = vcmp.gt.s32.totalorder 0, %v288
      %v290 = vsel %vm289, 0, %v288
      %v291 = vsub.s32 32, %v290
      %v292 = vshll.u32 %v283, %v290
      %v293 = vshrl.u32 %v275, %v291
      %v294 = vor.u32 %v292, %v293
      %v295 = vsub.s32 4294967266, %v290
      %v296 = vadd.s32 %v295, 127
      %v297 = vshll.u32 %v296, 23
      %v298 = vor.u32 4788187, %v297
      %v299 = vand.u32 2147483647, %v298
      %v301 = vcvt.s32.f32 %v294
      %v302 = vmul.f32 %v301, %v299
      %v303 = vxor.u32 %v302, 2147483648
      %v304 = vsel %vm221, %v303, %v302
      %v305 = vsub.s32 4, %v281
      %v306 = vsel %vm221, %v305, %v281
      %v307 = vsel %vm220, %v215, %v304
      %v308 = vsel %vm220, 0, %v306
      %v309 = vcosq.f32.pop %v307
      %v310 = vsinq.f32.pop %v307
      %vm311 = vweird.f32 %v215
      %v312 = vand.u32 %v308, 3
      %vm313 = vcmp.lt.s32.totalorder %v312, 2
      %vm314 = vcmp.eq.s32.totalorder %v312, 0
      %v315 = vxor.u32 %v310, 2147483648
      %v316 = vsel %vm314, %v309, %v315
      %vm317 = vcmp.eq.s32.totalorder %v312, 2
      %v318 = vxor.u32 %v309, 2147483648
      %v319 = vsel %vm317, %v318, %v310
      %v320 = vsel %vm313, %v316, %v319
      %v321 = vsel %vm311, nan, %v320
      %v322 = vand.u32 2147483647, %v216
      %vm323 = vcmp.le.f32.partialorder %v322, 0.7853982
      %vm324 = vcmp.lt.s32.totalorder %v216, 0
      %v325 = vand.u32 %v216, 2139095040
      %v326 = vshrl.u32 %v325, 23
      %v327 = vsub.s32 %v326, 127
      %v328 = vand.u32 2147483647, %v216
      %v329 = vand.u32 %v328, 8388607
      %v330 = vor.u32 %v329, 8388608
      %v331 = vsub.s32 0, %v330
      %v332 = vadd.s32 %v327, 1
      %vm333 = vcmp.gt.s32.totalorder %v332, 0
      %v334 = vsel %vm333, %v332, 0
      %v335 = vshrl.u32 %v334, 5
      %v336 = vand.u32 %v334, 31
      %v337 = vsub.s32 32, %v336
      %v338 = vshrl.u32 683565275, %v337
      %v339 = vshll.u32 683565275, %v336
      %v340 = vshrl.u32 2475754826, %v337
      %v341 = vor.u32 %v339, %v340
      %v342 = vshll.u32 2475754826, %v336
      %v343 = vshrl.u32 2131351028, %v337
      %v344 = vor.u32 %v342, %v343
      %v345 = vshll.u32 2131351028, %v336
      %v346 = vshrl.u32 2102212464, %v337
      %v347 = vor.u32 %v345, %v346
      %v348 = vshll.u32 2102212464, %v336
      %v349 = vshrl.u32 920167782, %v337
      %v350 = vor.u32 %v348, %v349
      %v351 = vshll.u32 920167782, %v336
      %v352 = vshrl.u32 1326507024, %v337
      %v353 = vor.u32 %v351, %v352
      %vm354 = vcmp.lt.s32.totalorder %v335, 1
      %vm355 = vcmp.lt.s32.totalorder %v335, 2
      %vm356 = vcmp.lt.s32.totalorder %v335, 3
      %vm357 = vcmp.lt.s32.totalorder %v335, 4
      %v358 = vsel %vm354, %v338, %v341
      %v359 = vsel %vm357, %v347, 2102212464
      %v360 = vsel %vm356, %v344, %v359
      %v361 = vsel %vm355, %v358, %v360
      %v362 = vsel %vm354, %v341, %v344
      %v363 = vsel %vm357, %v350, 920167782
      %v364 = vsel %vm356, %v347, %v363
      %v365 = vsel %vm355, %v362, %v364
      %v366 = vsel %vm354, %v344, %v347
      %v367 = vsel %vm357, %v353, 1326507024
      %v368 = vsel %vm356, %v350, %v367
      %v369 = vsel %vm355, %v366, %v368
      %v370 = vshll.u32 %v330, 8
      %v371 = vmul.u32.u64.compose %v370, %v369
      %v372 = vextract.low.u32 %v371
      %v373 = vextract.high.u32 %v371
      %v374 = vmul.u32.u64.compose %v370, %v365
      %v375 = vextract.low.u32 %v374
      %v376 = vextract.high.u32 %v374
      %v377 = vmul.u32 %v370, %v361
      %v378 = vadd.s32 %v373, %v375
      %vm379 = vc.u32 %v373, %v375
      %v380 = vadd.s32 %v376, 1
      %v381 = vsel %vm379, %v380, %v376
      %v382 = vadd.s32 %v377, %v381
      %v383 = vadd.s32 %v382, 536870912
      %v384 = vshrl.u32 %v383, 30
      %v385 = vshll.u32 %v384, 30
      %v386 = vsub.s32 %v382, %v385
      %vm387 = vcmp.lt.s32.totalorder %v386, 0
      %v388 = vsub.s32 0, %v386
      %v389 = vsel %vm387, %v388, %v386
      %v390 = vclz %v389
      %v391 = vsub.s32 %v390, 2
      %vm392 = vcmp.gt.s32.totalorder 0, %v391
      %v393 = vsel %vm392, 0, %v391
      %v394 = vsub.s32 32, %v393
      %v395 = vshll.u32 %v386, %v393
      %v396 = vshrl.u32 %v378, %v394
      %v397 = vor.u32 %v395, %v396
      %v398 = vsub.s32 4294967266, %v393
      %v399 = vadd.s32 %v398, 127
      %v400 = vshll.u32 %v399, 23
      %v401 = vor.u32 4788187, %v400
      %v402 = vand.u32 2147483647, %v401
      %v404 = vcvt.s32.f32 %v397
      %v405 = vmul.f32 %v404, %v402
      %v406 = vxor.u32 %v405, 2147483648
      %v407 = vsel %vm324, %v406, %v405
      %v408 = vsub.s32 4, %v384
      %v409 = vsel %vm324, %v408, %v384
      %v410 = vsel %vm323, %v216, %v407
      %v411 = vsel %vm323, 0, %v409
      %v412 = vcosq.f32.pop %v410
      %v413 = vsinq.f32.pop %v410
      %vm414 = vweird.f32 %v216
      %v415 = vand.u32 %v411, 3
      %vm416 = vcmp.lt.s32.totalorder %v415, 2
      %vm417 = vcmp.eq.s32.totalorder %v415, 0
      %v418 = vxor.u32 %v413, 2147483648
      %v419 = vsel %vm417, %v412, %v418
      %vm420 = vcmp.eq.s32.totalorder %v415, 2
      %v421 = vxor.u32 %v412, 2147483648
      %v422 = vsel %vm420, %v421, %v413
      %v423 = vsel %vm416, %v419, %v422
      %v424 = vsel %vm414, nan, %v423
      %v425 = vand.u32 2147483647, %v217
      %vm426 = vcmp.le.f32.partialorder %v425, 0.7853982
      %vm427 = vcmp.lt.s32.totalorder %v217, 0
      %v428 = vand.u32 %v217, 2139095040
      %v429 = vshrl.u32 %v428, 23
      %v430 = vsub.s32 %v429, 127
      %v431 = vand.u32 2147483647, %v217
      %v432 = vand.u32 %v431, 8388607
      %v433 = vor.u32 %v432, 8388608
      %v434 = vsub.s32 0, %v433
      %v435 = vadd.s32 %v430, 1
      %vm436 = vcmp.gt.s32.totalorder %v435, 0
      %v437 = vsel %vm436, %v435, 0
      %v438 = vshrl.u32 %v437, 5
      %v439 = vand.u32 %v437, 31
      %v440 = vsub.s32 32, %v439
      %v441 = vshrl.u32 683565275, %v440
      %v442 = vshll.u32 683565275, %v439
      %v443 = vshrl.u32 2475754826, %v440
      %v444 = vor.u32 %v442, %v443
      %v445 = vshll.u32 2475754826, %v439
      %v446 = vshrl.u32 2131351028, %v440
      %v447 = vor.u32 %v445, %v446
      %v448 = vshll.u32 2131351028, %v439
      %v449 = vshrl.u32 2102212464, %v440
      %v450 = vor.u32 %v448, %v449
      %v451 = vshll.u32 2102212464, %v439
      %v452 = vshrl.u32 920167782, %v440
      %v453 = vor.u32 %v451, %v452
      %v454 = vshll.u32 920167782, %v439
      %v455 = vshrl.u32 1326507024, %v440
      %v456 = vor.u32 %v454, %v455
      %vm457 = vcmp.lt.s32.totalorder %v438, 1
      %vm458 = vcmp.lt.s32.totalorder %v438, 2
      %vm459 = vcmp.lt.s32.totalorder %v438, 3
      %vm460 = vcmp.lt.s32.totalorder %v438, 4
      %v461 = vsel %vm457, %v441, %v444
      %v462 = vsel %vm460, %v450, 2102212464
      %v463 = vsel %vm459, %v447, %v462
      %v464 = vsel %vm458, %v461, %v463
      %v465 = vsel %vm457, %v444, %v447
      %v466 = vsel %vm460, %v453, 920167782
      %v467 = vsel %vm459, %v450, %v466
      %v468 = vsel %vm458, %v465, %v467
      %v469 = vsel %vm457, %v447, %v450
      %v470 = vsel %vm460, %v456, 1326507024
      %v471 = vsel %vm459, %v453, %v470
      %v472 = vsel %vm458, %v469, %v471
      %v473 = vshll.u32 %v433, 8
      %v474 = vmul.u32.u64.compose %v473, %v472
      %v475 = vextract.low.u32 %v474
      %v476 = vextract.high.u32 %v474
      %v477 = vmul.u32.u64.compose %v473, %v468
      %v478 = vextract.low.u32 %v477
      %v479 = vextract.high.u32 %v477
      %v480 = vmul.u32 %v473, %v464
      %v481 = vadd.s32 %v476, %v478
      %vm482 = vc.u32 %v476, %v478
      %v483 = vadd.s32 %v479, 1
      %v484 = vsel %vm482, %v483, %v479
      %v485 = vadd.s32 %v480, %v484
      %v486 = vadd.s32 %v485, 536870912
      %v487 = vshrl.u32 %v486, 30
      %v488 = vshll.u32 %v487, 30
      %v489 = vsub.s32 %v485, %v488
      %vm490 = vcmp.lt.s32.totalorder %v489, 0
      %v491 = vsub.s32 0, %v489
      %v492 = vsel %vm490, %v491, %v489
      %v493 = vclz %v492
      %v494 = vsub.s32 %v493, 2
      %vm495 = vcmp.gt.s32.totalorder 0, %v494
      %v496 = vsel %vm495, 0, %v494
      %v497 = vsub.s32 32, %v496
      %v498 = vshll.u32 %v489, %v496
      %v499 = vshrl.u32 %v481, %v497
      %v500 = vor.u32 %v498, %v499
      %v501 = vsub.s32 4294967266, %v496
      %v502 = vadd.s32 %v501, 127
      %v503 = vshll.u32 %v502, 23
      %v504 = vor.u32 4788187, %v503
      %v505 = vand.u32 2147483647, %v504
      %v507 = vcvt.s32.f32 %v500
      %v508 = vmul.f32 %v507, %v505
      %v509 = vxor.u32 %v508, 2147483648
      %v510 = vsel %vm427, %v509, %v508
      %v511 = vsub.s32 4, %v487
      %v512 = vsel %vm427, %v511, %v487
      %v513 = vsel %vm426, %v217, %v510
      %v514 = vsel %vm426, 0, %v512
      %v515 = vcosq.f32.pop %v513
      %v516 = vsinq.f32.pop %v513
      %vm517 = vweird.f32 %v217
      %v518 = vand.u32 %v514, 3
      %vm519 = vcmp.lt.s32.totalorder %v518, 2
      %vm520 = vcmp.eq.s32.totalorder %v518, 0
      %v521 = vxor.u32 %v516, 2147483648
      %v522 = vsel %vm520, %v515, %v521
      %vm523 = vcmp.eq.s32.totalorder %v518, 2
      %v524 = vxor.u32 %v515, 2147483648
      %v525 = vsel %vm523, %v524, %v516
      %v526 = vsel %vm519, %v522, %v525
      %v527 = vsel %vm517, nan, %v526
      %v528 = vand.u32 2147483647, %v218
      %vm529 = vcmp.le.f32.partialorder %v528, 0.7853982
      %vm530 = vcmp.lt.s32.totalorder %v218, 0
      %v531 = vand.u32 %v218, 2139095040
      %v532 = vshrl.u32 %v531, 23
      %v533 = vsub.s32 %v532, 127
      %v534 = vand.u32 2147483647, %v218
      %v535 = vand.u32 %v534, 8388607
      %v536 = vor.u32 %v535, 8388608
      %v537 = vsub.s32 0, %v536
      %v538 = vadd.s32 %v533, 1
      %vm539 = vcmp.gt.s32.totalorder %v538, 0
      %v540 = vsel %vm539, %v538, 0
      %v541 = vshrl.u32 %v540, 5
      %v542 = vand.u32 %v540, 31
      %v543 = vsub.s32 32, %v542
      %v544 = vshrl.u32 683565275, %v543
      %v545 = vshll.u32 683565275, %v542
      %v546 = vshrl.u32 2475754826, %v543
      %v547 = vor.u32 %v545, %v546
      %v548 = vshll.u32 2475754826, %v542
      %v549 = vshrl.u32 2131351028, %v543
      %v550 = vor.u32 %v548, %v549
      %v551 = vshll.u32 2131351028, %v542
      %v552 = vshrl.u32 2102212464, %v543
      %v553 = vor.u32 %v551, %v552
      %v554 = vshll.u32 2102212464, %v542
      %v555 = vshrl.u32 920167782, %v543
      %v556 = vor.u32 %v554, %v555
      %v557 = vshll.u32 920167782, %v542
      %v558 = vshrl.u32 1326507024, %v543
      %v559 = vor.u32 %v557, %v558
      %vm560 = vcmp.lt.s32.totalorder %v541, 1
      %vm561 = vcmp.lt.s32.totalorder %v541, 2
      %vm562 = vcmp.lt.s32.totalorder %v541, 3
      %vm563 = vcmp.lt.s32.totalorder %v541, 4
      %v564 = vsel %vm560, %v544, %v547
      %v565 = vsel %vm563, %v553, 2102212464
      %v566 = vsel %vm562, %v550, %v565
      %v567 = vsel %vm561, %v564, %v566
      %v568 = vsel %vm560, %v547, %v550
      %v569 = vsel %vm563, %v556, 920167782
      %v570 = vsel %vm562, %v553, %v569
      %v571 = vsel %vm561, %v568, %v570
      %v572 = vsel %vm560, %v550, %v553
      %v573 = vsel %vm563, %v559, 1326507024
      %v574 = vsel %vm562, %v556, %v573
      %v575 = vsel %vm561, %v572, %v574
      %v576 = vshll.u32 %v536, 8
      %v577 = vmul.u32.u64.compose %v576, %v575
      %v578 = vextract.low.u32 %v577
      %v579 = vextract.high.u32 %v577
      %v580 = vmul.u32.u64.compose %v576, %v571
      %v581 = vextract.low.u32 %v580
      %v582 = vextract.high.u32 %v580
      %v583 = vmul.u32 %v576, %v567
      %v584 = vadd.s32 %v579, %v581
      %vm585 = vc.u32 %v579, %v581
      %v586 = vadd.s32 %v582, 1
      %v587 = vsel %vm585, %v586, %v582
      %v588 = vadd.s32 %v583, %v587
      %v589 = vadd.s32 %v588, 536870912
      %v590 = vshrl.u32 %v589, 30
      %v591 = vshll.u32 %v590, 30
      %v592 = vsub.s32 %v588, %v591
      %vm593 = vcmp.lt.s32.totalorder %v592, 0
      %v594 = vsub.s32 0, %v592
      %v595 = vsel %vm593, %v594, %v592
      %v596 = vclz %v595
      %v597 = vsub.s32 %v596, 2
      %vm598 = vcmp.gt.s32.totalorder 0, %v597
      %v599 = vsel %vm598, 0, %v597
      %v600 = vsub.s32 32, %v599
      %v601 = vshll.u32 %v592, %v599
      %v602 = vshrl.u32 %v584, %v600
      %v603 = vor.u32 %v601, %v602
      %v604 = vsub.s32 4294967266, %v599
      %v605 = vadd.s32 %v604, 127
      %v606 = vshll.u32 %v605, 23
      %v607 = vor.u32 4788187, %v606
      %v608 = vand.u32 2147483647, %v607
      %v610 = vcvt.s32.f32 %v603
      %v611 = vmul.f32 %v610, %v608
      %v612 = vxor.u32 %v611, 2147483648
      %v613 = vsel %vm530, %v612, %v611
      %v614 = vsub.s32 4, %v590
      %v615 = vsel %vm530, %v614, %v590
      %v616 = vsel %vm529, %v218, %v613
      %v617 = vsel %vm529, 0, %v615
      %v618 = vcosq.f32.pop %v616
      %v619 = vsinq.f32.pop %v616
      %vm620 = vweird.f32 %v218
      %v621 = vand.u32 %v617, 3
      %vm622 = vcmp.lt.s32.totalorder %v621, 2
      %vm623 = vcmp.eq.s32.totalorder %v621, 0
      %v624 = vxor.u32 %v619, 2147483648
      %v625 = vsel %vm623, %v618, %v624
      %vm626 = vcmp.eq.s32.totalorder %v621, 2
      %v627 = vxor.u32 %v618, 2147483648
      %v628 = vsel %vm626, %v627, %v619
      %v629 = vsel %vm622, %v625, %v628
      %v630 = vsel %vm620, nan, %v629
      %v631 = vand.u32 2147483647, %v215
      %vm632 = vcmp.le.f32.partialorder %v631, 0.7853982
      %vm633 = vcmp.lt.s32.totalorder %v215, 0
      %v634 = vand.u32 %v215, 2139095040
      %v635 = vshrl.u32 %v634, 23
      %v636 = vsub.s32 %v635, 127
      %v637 = vand.u32 2147483647, %v215
      %v638 = vand.u32 %v637, 8388607
      %v639 = vor.u32 %v638, 8388608
      %v640 = vsub.s32 0, %v639
      %v641 = vadd.s32 %v636, 1
      %vm642 = vcmp.gt.s32.totalorder %v641, 0
      %v643 = vsel %vm642, %v641, 0
      %v644 = vshrl.u32 %v643, 5
      %v645 = vand.u32 %v643, 31
      %v646 = vsub.s32 32, %v645
      %v647 = vshrl.u32 683565275, %v646
      %v648 = vshll.u32 683565275, %v645
      %v649 = vshrl.u32 2475754826, %v646
      %v650 = vor.u32 %v648, %v649
      %v651 = vshll.u32 2475754826, %v645
      %v652 = vshrl.u32 2131351028, %v646
      %v653 = vor.u32 %v651, %v652
      %v654 = vshll.u32 2131351028, %v645
      %v655 = vshrl.u32 2102212464, %v646
      %v656 = vor.u32 %v654, %v655
      %v657 = vshll.u32 2102212464, %v645
      %v658 = vshrl.u32 920167782, %v646
      %v659 = vor.u32 %v657, %v658
      %v660 = vshll.u32 920167782, %v645
      %v661 = vshrl.u32 1326507024, %v646
      %v662 = vor.u32 %v660, %v661
      %vm663 = vcmp.lt.s32.totalorder %v644, 1
      %vm664 = vcmp.lt.s32.totalorder %v644, 2
      %vm665 = vcmp.lt.s32.totalorder %v644, 3
      %vm666 = vcmp.lt.s32.totalorder %v644, 4
      %v667 = vsel %vm663, %v647, %v650
      %v668 = vsel %vm666, %v656, 2102212464
      %v669 = vsel %vm665, %v653, %v668
      %v670 = vsel %vm664, %v667, %v669
      %v671 = vsel %vm663, %v650, %v653
      %v672 = vsel %vm666, %v659, 920167782
      %v673 = vsel %vm665, %v656, %v672
      %v674 = vsel %vm664, %v671, %v673
      %v675 = vsel %vm663, %v653, %v656
      %v676 = vsel %vm666, %v662, 1326507024
      %v677 = vsel %vm665, %v659, %v676
      %v678 = vsel %vm664, %v675, %v677
      %v679 = vshll.u32 %v639, 8
      %v680 = vmul.u32.u64.compose %v679, %v678
      %v681 = vextract.low.u32 %v680
      %v682 = vextract.high.u32 %v680
      %v683 = vmul.u32.u64.compose %v679, %v674
      %v684 = vextract.low.u32 %v683
      %v685 = vextract.high.u32 %v683
      %v686 = vmul.u32 %v679, %v670
      %v687 = vadd.s32 %v682, %v684
      %vm688 = vc.u32 %v682, %v684
      %v689 = vadd.s32 %v685, 1
      %v690 = vsel %vm688, %v689, %v685
      %v691 = vadd.s32 %v686, %v690
      %v692 = vadd.s32 %v691, 536870912
      %v693 = vshrl.u32 %v692, 30
      %v694 = vshll.u32 %v693, 30
      %v695 = vsub.s32 %v691, %v694
      %vm696 = vcmp.lt.s32.totalorder %v695, 0
      %v697 = vsub.s32 0, %v695
      %v698 = vsel %vm696, %v697, %v695
      %v699 = vclz %v698
      %v700 = vsub.s32 %v699, 2
      %vm701 = vcmp.gt.s32.totalorder 0, %v700
      %v702 = vsel %vm701, 0, %v700
      %v703 = vsub.s32 32, %v702
      %v704 = vshll.u32 %v695, %v702
      %v705 = vshrl.u32 %v687, %v703
      %v706 = vor.u32 %v704, %v705
      %v707 = vsub.s32 4294967266, %v702
      %v708 = vadd.s32 %v707, 127
      %v709 = vshll.u32 %v708, 23
      %v710 = vor.u32 4788187, %v709
      %v711 = vand.u32 2147483647, %v710
      %v713 = vcvt.s32.f32 %v706
      %v714 = vmul.f32 %v713, %v711
      %v715 = vxor.u32 %v714, 2147483648
      %v716 = vsel %vm633, %v715, %v714
      %v717 = vsub.s32 4, %v693
      %v718 = vsel %vm633, %v717, %v693
      %v719 = vsel %vm632, %v215, %v716
      %v720 = vsel %vm632, 0, %v718
      %v721 = vcosq.f32.pop %v719
      %v722 = vsinq.f32.pop %v719
      %vm723 = vweird.f32 %v215
      %v724 = vadd.s32 %v720, 3
      %v725 = vand.u32 %v724, 3
      %vm726 = vcmp.lt.s32.totalorder %v725, 2
      %vm727 = vcmp.eq.s32.totalorder %v725, 0
      %v728 = vxor.u32 %v722, 2147483648
      %v729 = vsel %vm727, %v721, %v728
      %vm730 = vcmp.eq.s32.totalorder %v725, 2
      %v731 = vxor.u32 %v721, 2147483648
      %v732 = vsel %vm730, %v731, %v722
      %v733 = vsel %vm726, %v729, %v732
      %v734 = vsel %vm723, nan, %v733
      %v735 = vand.u32 2147483647, %v216
      %vm736 = vcmp.le.f32.partialorder %v735, 0.7853982
      %vm737 = vcmp.lt.s32.totalorder %v216, 0
      %v738 = vand.u32 %v216, 2139095040
      %v739 = vshrl.u32 %v738, 23
      %v740 = vsub.s32 %v739, 127
      %v741 = vand.u32 2147483647, %v216
      %v742 = vand.u32 %v741, 8388607
      %v743 = vor.u32 %v742, 8388608
      %v744 = vsub.s32 0, %v743
      %v745 = vadd.s32 %v740, 1
      %vm746 = vcmp.gt.s32.totalorder %v745, 0
      %v747 = vsel %vm746, %v745, 0
      %v748 = vshrl.u32 %v747, 5
      %v749 = vand.u32 %v747, 31
      %v750 = vsub.s32 32, %v749
      %v751 = vshrl.u32 683565275, %v750
      %v752 = vshll.u32 683565275, %v749
      %v753 = vshrl.u32 2475754826, %v750
      %v754 = vor.u32 %v752, %v753
      %v755 = vshll.u32 2475754826, %v749
      %v756 = vshrl.u32 2131351028, %v750
      %v757 = vor.u32 %v755, %v756
      %v758 = vshll.u32 2131351028, %v749
      %v759 = vshrl.u32 2102212464, %v750
      %v760 = vor.u32 %v758, %v759
      %v761 = vshll.u32 2102212464, %v749
      %v762 = vshrl.u32 920167782, %v750
      %v763 = vor.u32 %v761, %v762
      %v764 = vshll.u32 920167782, %v749
      %v765 = vshrl.u32 1326507024, %v750
      %v766 = vor.u32 %v764, %v765
      %vm767 = vcmp.lt.s32.totalorder %v748, 1
      %vm768 = vcmp.lt.s32.totalorder %v748, 2
      %vm769 = vcmp.lt.s32.totalorder %v748, 3
      %vm770 = vcmp.lt.s32.totalorder %v748, 4
      %v771 = vsel %vm767, %v751, %v754
      %v772 = vsel %vm770, %v760, 2102212464
      %v773 = vsel %vm769, %v757, %v772
      %v774 = vsel %vm768, %v771, %v773
      %v775 = vsel %vm767, %v754, %v757
      %v776 = vsel %vm770, %v763, 920167782
      %v777 = vsel %vm769, %v760, %v776
      %v778 = vsel %vm768, %v775, %v777
      %v779 = vsel %vm767, %v757, %v760
      %v780 = vsel %vm770, %v766, 1326507024
      %v781 = vsel %vm769, %v763, %v780
      %v782 = vsel %vm768, %v779, %v781
      %v783 = vshll.u32 %v743, 8
      %v784 = vmul.u32.u64.compose %v783, %v782
      %v785 = vextract.low.u32 %v784
      %v786 = vextract.high.u32 %v784
      %v787 = vmul.u32.u64.compose %v783, %v778
      %v788 = vextract.low.u32 %v787
      %v789 = vextract.high.u32 %v787
      %v790 = vmul.u32 %v783, %v774
      %v791 = vadd.s32 %v786, %v788
      %vm792 = vc.u32 %v786, %v788
      %v793 = vadd.s32 %v789, 1
      %v794 = vsel %vm792, %v793, %v789
      %v795 = vadd.s32 %v790, %v794
      %v796 = vadd.s32 %v795, 536870912
      %v797 = vshrl.u32 %v796, 30
      %v798 = vshll.u32 %v797, 30
      %v799 = vsub.s32 %v795, %v798
      %vm800 = vcmp.lt.s32.totalorder %v799, 0
      %v801 = vsub.s32 0, %v799
      %v802 = vsel %vm800, %v801, %v799
      %v803 = vclz %v802
      %v804 = vsub.s32 %v803, 2
      %vm805 = vcmp.gt.s32.totalorder 0, %v804
      %v806 = vsel %vm805, 0, %v804
      %v807 = vsub.s32 32, %v806
      %v808 = vshll.u32 %v799, %v806
      %v809 = vshrl.u32 %v791, %v807
      %v810 = vor.u32 %v808, %v809
      %v811 = vsub.s32 4294967266, %v806
      %v812 = vadd.s32 %v811, 127
      %v813 = vshll.u32 %v812, 23
      %v814 = vor.u32 4788187, %v813
      %v815 = vand.u32 2147483647, %v814
      %v817 = vcvt.s32.f32 %v810
      %v818 = vmul.f32 %v817, %v815
      %v819 = vxor.u32 %v818, 2147483648
      %v820 = vsel %vm737, %v819, %v818
      %v821 = vsub.s32 4, %v797
      %v822 = vsel %vm737, %v821, %v797
      %v823 = vsel %vm736, %v216, %v820
      %v824 = vsel %vm736, 0, %v822
      %v825 = vcosq.f32.pop %v823
      %v826 = vsinq.f32.pop %v823
      %vm827 = vweird.f32 %v216
      %v828 = vadd.s32 %v824, 3
      %v829 = vand.u32 %v828, 3
      %vm830 = vcmp.lt.s32.totalorder %v829, 2
      %vm831 = vcmp.eq.s32.totalorder %v829, 0
      %v832 = vxor.u32 %v826, 2147483648
      %v833 = vsel %vm831, %v825, %v832
      %vm834 = vcmp.eq.s32.totalorder %v829, 2
      %v835 = vxor.u32 %v825, 2147483648
      %v836 = vsel %vm834, %v835, %v826
      %v837 = vsel %vm830, %v833, %v836
      %v838 = vsel %vm827, nan, %v837
      %v839 = vand.u32 2147483647, %v217
      %vm840 = vcmp.le.f32.partialorder %v839, 0.7853982
      %vm841 = vcmp.lt.s32.totalorder %v217, 0
      %v842 = vand.u32 %v217, 2139095040
      %v843 = vshrl.u32 %v842, 23
      %v844 = vsub.s32 %v843, 127
      %v845 = vand.u32 2147483647, %v217
      %v846 = vand.u32 %v845, 8388607
      %v847 = vor.u32 %v846, 8388608
      %v848 = vsub.s32 0, %v847
      %v849 = vadd.s32 %v844, 1
      %vm850 = vcmp.gt.s32.totalorder %v849, 0
      %v851 = vsel %vm850, %v849, 0
      %v852 = vshrl.u32 %v851, 5
      %v853 = vand.u32 %v851, 31
      %v854 = vsub.s32 32, %v853
      %v855 = vshrl.u32 683565275, %v854
      %v856 = vshll.u32 683565275, %v853
      %v857 = vshrl.u32 2475754826, %v854
      %v858 = vor.u32 %v856, %v857
      %v859 = vshll.u32 2475754826, %v853
      %v860 = vshrl.u32 2131351028, %v854
      %v861 = vor.u32 %v859, %v860
      %v862 = vshll.u32 2131351028, %v853
      %v863 = vshrl.u32 2102212464, %v854
      %v864 = vor.u32 %v862, %v863
      %v865 = vshll.u32 2102212464, %v853
      %v866 = vshrl.u32 920167782, %v854
      %v867 = vor.u32 %v865, %v866
      %v868 = vshll.u32 920167782, %v853
      %v869 = vshrl.u32 1326507024, %v854
      %v870 = vor.u32 %v868, %v869
      %vm871 = vcmp.lt.s32.totalorder %v852, 1
      %vm872 = vcmp.lt.s32.totalorder %v852, 2
      %vm873 = vcmp.lt.s32.totalorder %v852, 3
      %vm874 = vcmp.lt.s32.totalorder %v852, 4
      %v875 = vsel %vm871, %v855, %v858
      %v876 = vsel %vm874, %v864, 2102212464
      %v877 = vsel %vm873, %v861, %v876
      %v878 = vsel %vm872, %v875, %v877
      %v879 = vsel %vm871, %v858, %v861
      %v880 = vsel %vm874, %v867, 920167782
      %v881 = vsel %vm873, %v864, %v880
      %v882 = vsel %vm872, %v879, %v881
      %v883 = vsel %vm871, %v861, %v864
      %v884 = vsel %vm874, %v870, 1326507024
      %v885 = vsel %vm873, %v867, %v884
      %v886 = vsel %vm872, %v883, %v885
      %v887 = vshll.u32 %v847, 8
      %v888 = vmul.u32.u64.compose %v887, %v886
      %v889 = vextract.low.u32 %v888
      %v890 = vextract.high.u32 %v888
      %v891 = vmul.u32.u64.compose %v887, %v882
      %v892 = vextract.low.u32 %v891
      %v893 = vextract.high.u32 %v891
      %v894 = vmul.u32 %v887, %v878
      %v895 = vadd.s32 %v890, %v892
      %vm896 = vc.u32 %v890, %v892
      %v897 = vadd.s32 %v893, 1
      %v898 = vsel %vm896, %v897, %v893
      %v899 = vadd.s32 %v894, %v898
      %v900 = vadd.s32 %v899, 536870912
      %v901 = vshrl.u32 %v900, 30
      %v902 = vshll.u32 %v901, 30
      %v903 = vsub.s32 %v899, %v902
      %vm904 = vcmp.lt.s32.totalorder %v903, 0
      %v905 = vsub.s32 0, %v903
      %v906 = vsel %vm904, %v905, %v903
      %v907 = vclz %v906
      %v908 = vsub.s32 %v907, 2
      %vm909 = vcmp.gt.s32.totalorder 0, %v908
      %v910 = vsel %vm909, 0, %v908
      %v911 = vsub.s32 32, %v910
      %v912 = vshll.u32 %v903, %v910
      %v913 = vshrl.u32 %v895, %v911
      %v914 = vor.u32 %v912, %v913
      %v915 = vsub.s32 4294967266, %v910
      %v916 = vadd.s32 %v915, 127
      %v917 = vshll.u32 %v916, 23
      %v918 = vor.u32 4788187, %v917
      %v919 = vand.u32 2147483647, %v918
      %v921 = vcvt.s32.f32 %v914
      %v922 = vmul.f32 %v921, %v919
      %v923 = vxor.u32 %v922, 2147483648
      %v924 = vsel %vm841, %v923, %v922
      %v925 = vsub.s32 4, %v901
      %v926 = vsel %vm841, %v925, %v901
      %v927 = vsel %vm840, %v217, %v924
      %v928 = vsel %vm840, 0, %v926
      %v929 = vcosq.f32.pop %v927
      %v930 = vsinq.f32.pop %v927
      %vm931 = vweird.f32 %v217
      %v932 = vadd.s32 %v928, 3
      %v933 = vand.u32 %v932, 3
      %vm934 = vcmp.lt.s32.totalorder %v933, 2
      %vm935 = vcmp.eq.s32.totalorder %v933, 0
      %v936 = vxor.u32 %v930, 2147483648
      %v937 = vsel %vm935, %v929, %v936
      %vm938 = vcmp.eq.s32.totalorder %v933, 2
      %v939 = vxor.u32 %v929, 2147483648
      %v940 = vsel %vm938, %v939, %v930
      %v941 = vsel %vm934, %v937, %v940
      %v942 = vsel %vm931, nan, %v941
      %v943 = vand.u32 2147483647, %v218
      %vm944 = vcmp.le.f32.partialorder %v943, 0.7853982
      %vm945 = vcmp.lt.s32.totalorder %v218, 0
      %v946 = vand.u32 %v218, 2139095040
      %v947 = vshrl.u32 %v946, 23
      %v948 = vsub.s32 %v947, 127
      %v949 = vand.u32 2147483647, %v218
      %v950 = vand.u32 %v949, 8388607
      %v951 = vor.u32 %v950, 8388608
      %v952 = vsub.s32 0, %v951
      %v953 = vadd.s32 %v948, 1
      %vm954 = vcmp.gt.s32.totalorder %v953, 0
      %v955 = vsel %vm954, %v953, 0
      %v956 = vshrl.u32 %v955, 5
      %v957 = vand.u32 %v955, 31
      %v958 = vsub.s32 32, %v957
      %v959 = vshrl.u32 683565275, %v958
      %v960 = vshll.u32 683565275, %v957
      %v961 = vshrl.u32 2475754826, %v958
      %v962 = vor.u32 %v960, %v961
      %v963 = vshll.u32 2475754826, %v957
      %v964 = vshrl.u32 2131351028, %v958
      %v965 = vor.u32 %v963, %v964
      %v966 = vshll.u32 2131351028, %v957
      %v967 = vshrl.u32 2102212464, %v958
      %v968 = vor.u32 %v966, %v967
      %v969 = vshll.u32 2102212464, %v957
      %v970 = vshrl.u32 920167782, %v958
      %v971 = vor.u32 %v969, %v970
      %v972 = vshll.u32 920167782, %v957
      %v973 = vshrl.u32 1326507024, %v958
      %v974 = vor.u32 %v972, %v973
      %vm975 = vcmp.lt.s32.totalorder %v956, 1
      %vm976 = vcmp.lt.s32.totalorder %v956, 2
      %vm977 = vcmp.lt.s32.totalorder %v956, 3
      %vm978 = vcmp.lt.s32.totalorder %v956, 4
      %v979 = vsel %vm975, %v959, %v962
      %v980 = vsel %vm978, %v968, 2102212464
      %v981 = vsel %vm977, %v965, %v980
      %v982 = vsel %vm976, %v979, %v981
      %v983 = vsel %vm975, %v962, %v965
      %v984 = vsel %vm978, %v971, 920167782
      %v985 = vsel %vm977, %v968, %v984
      %v986 = vsel %vm976, %v983, %v985
      %v987 = vsel %vm975, %v965, %v968
      %v988 = vsel %vm978, %v974, 1326507024
      %v989 = vsel %vm977, %v971, %v988
      %v990 = vsel %vm976, %v987, %v989
      %v991 = vshll.u32 %v951, 8
      %v992 = vmul.u32.u64.compose %v991, %v990
      %v993 = vextract.low.u32 %v992
      %v994 = vextract.high.u32 %v992
      %v995 = vmul.u32.u64.compose %v991, %v986
      %v996 = vextract.low.u32 %v995
      %v997 = vextract.high.u32 %v995
      %v998 = vmul.u32 %v991, %v982
      %v999 = vadd.s32 %v994, %v996
      %vm1000 = vc.u32 %v994, %v996
      %v1001 = vadd.s32 %v997, 1
      %v1002 = vsel %vm1000, %v1001, %v997
      %v1003 = vadd.s32 %v998, %v1002
      %v1004 = vadd.s32 %v1003, 536870912
      %v1005 = vshrl.u32 %v1004, 30
      %v1006 = vshll.u32 %v1005, 30
      %v1007 = vsub.s32 %v1003, %v1006
      %vm1008 = vcmp.lt.s32.totalorder %v1007, 0
      %v1009 = vsub.s32 0, %v1007
      %v1010 = vsel %vm1008, %v1009, %v1007
      %v1011 = vclz %v1010
      %v1012 = vsub.s32 %v1011, 2
      %vm1013 = vcmp.gt.s32.totalorder 0, %v1012
      %v1014 = vsel %vm1013, 0, %v1012
      %v1015 = vsub.s32 32, %v1014
      %v1016 = vshll.u32 %v1007, %v1014
      %v1017 = vshrl.u32 %v999, %v1015
      %v1018 = vor.u32 %v1016, %v1017
      %v1019 = vsub.s32 4294967266, %v1014
      %v1020 = vadd.s32 %v1019, 127
      %v1021 = vshll.u32 %v1020, 23
      %v1022 = vor.u32 4788187, %v1021
      %v1023 = vand.u32 2147483647, %v1022
      %v1025 = vcvt.s32.f32 %v1018
      %v1026 = vmul.f32 %v1025, %v1023
      %v1027 = vxor.u32 %v1026, 2147483648
      %v1028 = vsel %vm945, %v1027, %v1026
      %v1029 = vsub.s32 4, %v1005
      %v1030 = vsel %vm945, %v1029, %v1005
      %v1031 = vsel %vm944, %v218, %v1028
      %v1032 = vsel %vm944, 0, %v1030
      %v1033 = vcosq.f32.pop %v1031
      %v1034 = vsinq.f32.pop %v1031
      %vm1035 = vweird.f32 %v218
      %v1036 = vadd.s32 %v1032, 3
      %v1037 = vand.u32 %v1036, 3
      %vm1038 = vcmp.lt.s32.totalorder %v1037, 2
      %vm1039 = vcmp.eq.s32.totalorder %v1037, 0
      %v1040 = vxor.u32 %v1034, 2147483648
      %v1041 = vsel %vm1039, %v1033, %v1040
      %vm1042 = vcmp.eq.s32.totalorder %v1037, 2
      %v1043 = vxor.u32 %v1033, 2147483648
      %v1044 = vsel %vm1042, %v1043, %v1034
      %v1045 = vsel %vm1038, %v1041, %v1044
      %v1046 = vsel %vm1035, nan, %v1045
      %v1047 = vmul.f32 %v321, 2.0
      %v1048 = vmul.f32 %v424, 2.0
      %v1049 = vmul.f32 %v527, 2.0
      %v1050 = vmul.f32 %v630, 2.0
      %v1051 = vmul.f32 %v1047, %v321
      %v1052 = vmul.f32 %v1048, %v424
      %v1053 = vmul.f32 %v1049, %v527
      %v1054 = vmul.f32 %v1050, %v630
      %v1055 = vsub.f32 %v1051, 1.0
      %v1056 = vsub.f32 %v1052, 1.0
      %v1057 = vsub.f32 %v1053, 1.0
      %v1058 = vsub.f32 %v1054, 1.0
      %v1059 = vmul.f32 %v734, 2.0
      %v1060 = vmul.f32 %v838, 2.0
      %v1061 = vmul.f32 %v942, 2.0
      %v1062 = vmul.f32 %v1046, 2.0
      %v1063 = vmul.f32 %v1059, %v321
      %v1064 = vmul.f32 %v1060, %v424
      %v1065 = vmul.f32 %v1061, %v527
      %v1066 = vmul.f32 %v1062, %v630
      %v1067 = vmul.f32 %v321, %v1055
      %v1068 = vmul.f32 %v424, %v1056
      %v1069 = vmul.f32 %v527, %v1057
      %v1070 = vmul.f32 %v630, %v1058
      %v1071 = vmul.f32 %v734, %v1063
      %v1072 = vmul.f32 %v838, %v1064
      %v1073 = vmul.f32 %v942, %v1065
      %v1074 = vmul.f32 %v1046, %v1066
      %v1075 = vsub.f32 %v1067, %v1071
      %v1076 = vsub.f32 %v1068, %v1072
      %v1077 = vsub.f32 %v1069, %v1073
      %v1078 = vsub.f32 %v1070, %v1074
      %v1079 = vmul.f32 %v734, %v1055
      %v1080 = vmul.f32 %v838, %v1056
      %v1081 = vmul.f32 %v942, %v1057
      %v1082 = vmul.f32 %v1046, %v1058
      %v1083 = vmul.f32 %v321, %v1063
      %v1084 = vmul.f32 %v424, %v1064
      %v1085 = vmul.f32 %v527, %v1065
      %v1086 = vmul.f32 %v630, %v1066
      %v1087 = vadd.f32 %v1079, %v1083
      %v1088 = vadd.f32 %v1080, %v1084
      %v1089 = vadd.f32 %v1081, %v1085
      %v1090 = vadd.f32 %v1082, %v1086
      %v1091 = vmul.f32 %v1075, %v1055
      %v1092 = vmul.f32 %v1076, %v1056
      %v1093 = vmul.f32 %v1077, %v1057
      %v1094 = vmul.f32 %v1078, %v1058
      %v1095 = vmul.f32 %v1087, %v1063
      %v1096 = vmul.f32 %v1088, %v1064
      %v1097 = vmul.f32 %v1089, %v1065
      %v1098 = vmul.f32 %v1090, %v1066
      %v1099 = vsub.f32 %v1091, %v1095
      %v1100 = vsub.f32 %v1092, %v1096
      %v1101 = vsub.f32 %v1093, %v1097
      %v1102 = vsub.f32 %v1094, %v1098
      %v1103 = vmul.f32 %v1087, %v1055
      %v1104 = vmul.f32 %v1088, %v1056
      %v1105 = vmul.f32 %v1089, %v1057
      %v1106 = vmul.f32 %v1090, %v1058
      %v1107 = vmul.f32 %v1075, %v1063
      %v1108 = vmul.f32 %v1076, %v1064
      %v1109 = vmul.f32 %v1077, %v1065
      %v1110 = vmul.f32 %v1078, %v1066
      %v1111 = vadd.f32 %v1103, %v1107
      %v1112 = vadd.f32 %v1104, %v1108
      %v1113 = vadd.f32 %v1105, %v1109
      %v1114 = vadd.f32 %v1106, %v1110
      %v1115 = vmul.f32 %v1099, %v1055
      %v1116 = vmul.f32 %v1100, %v1056
      %v1117 = vmul.f32 %v1101, %v1057
      %v1118 = vmul.f32 %v1102, %v1058
      %v1119 = vmul.f32 %v1111, %v1063
      %v1120 = vmul.f32 %v1112, %v1064
      %v1121 = vmul.f32 %v1113, %v1065
      %v1122 = vmul.f32 %v1114, %v1066
      %v1123 = vsub.f32 %v1115, %v1119
      %v1124 = vsub.f32 %v1116, %v1120
      %v1125 = vsub.f32 %v1117, %v1121
      %v1126 = vsub.f32 %v1118, %v1122
      %v1127 = vmul.f32 %v1111, %v1055
      %v1128 = vmul.f32 %v1112, %v1056
      %v1129 = vmul.f32 %v1113, %v1057
      %v1130 = vmul.f32 %v1114, %v1058
      %v1131 = vmul.f32 %v1099, %v1063
      %v1132 = vmul.f32 %v1100, %v1064
      %v1133 = vmul.f32 %v1101, %v1065
      %v1134 = vmul.f32 %v1102, %v1066
      %v1135 = vadd.f32 %v1127, %v1131
      %v1136 = vadd.f32 %v1128, %v1132
      %v1137 = vadd.f32 %v1129, %v1133
      %v1138 = vadd.f32 %v1130, %v1134
      %v1139 = vld [vmem:[%s205] sm:$0xff]
      %v1140 = vld [vmem:[%s205 + $0x8] sm:$0xff]
      %v1141 = vld [vmem:[%s205 + $0x10] sm:$0xff]
      %v1142 = vld [vmem:[%s205 + $0x18] sm:$0xff]
      %vm1143 = vcmask 261120
      %v1145 = vsel %vm1143, %v321, 0
      %v1148 = vsel %vm1143, %v424, 0
      %v1151 = vsel %vm1143, %v527, 0
      %v1154 = vsel %vm1143, %v630, 0
      %v1157 = vsel %vm1143, %v734, 0
      %v1160 = vsel %vm1143, %v838, 0
      %v1163 = vsel %vm1143, %v942, 0
      %v1166 = vsel %vm1143, %v1046, 0
      %v1169 = vsel %vm1143, %v1075, 0
      %v1172 = vsel %vm1143, %v1076, 0
      %v1175 = vsel %vm1143, %v1077, 0
      %v1178 = vsel %vm1143, %v1078, 0
      %v1181 = vsel %vm1143, %v1087, 0
      %v1184 = vsel %vm1143, %v1088, 0
      %v1187 = vsel %vm1143, %v1089, 0
      %v1190 = vsel %vm1143, %v1090, 0
      %v1193 = vsel %vm1143, %v1099, 0
      %v1196 = vsel %vm1143, %v1100, 0
      %v1199 = vsel %vm1143, %v1101, 0
      %v1202 = vsel %vm1143, %v1102, 0
      %v1205 = vsel %vm1143, %v1111, 0
      %v1208 = vsel %vm1143, %v1112, 0
      %v1211 = vsel %vm1143, %v1113, 0
      %v1214 = vsel %vm1143, %v1114, 0
      %v1217 = vsel %vm1143, %v1123, 0
      %v1220 = vsel %vm1143, %v1124, 0
      %v1223 = vsel %vm1143, %v1125, 0
      %v1226 = vsel %vm1143, %v1126, 0
      %v1229 = vsel %vm1143, %v1135, 0
      %v1232 = vsel %vm1143, %v1136, 0
      %v1235 = vsel %vm1143, %v1137, 0
      %v1238 = vsel %vm1143, %v1138, 0
      %1240 = vmatprep.subr.mxu0 0.0
      %1241 = vmatpush1.msra.mxu0 %v1139
      %1242 = vmatprep.subr.mxu0 0.0
      %1243 = vmatpush1.msra.mxu0 %v1140
      %1244 = vmatprep.subr.mxu0 0.0
      %1245 = vmatpush1.msra.mxu0 %v1141
      %1246 = vmatprep.subr.mxu0 0.0
      %1247 = vmatpush1.msra.mxu0 %v1142
      %1248 = vmatprep.subr.mxu0 0.0
      %1249 = vmatpush1.msra.mxu0 0.0
      %1250 = vmatprep.subr.mxu0 0.0
      %1251 = vmatpush1.msra.mxu0 0.0
      %1252 = vmatprep.subr.mxu0 0.0
      %1253 = vmatpush1.msra.mxu0 0.0
      %1254 = vmatprep.subr.mxu0 0.0
      %1255 = vmatpush1.msra.mxu0 0.0
      %1256 = vmatprep.subr.mxu0 0.0
      %1257 = vmatpush1.msra.mxu0 0.0
      %1258 = vmatprep.subr.mxu0 0.0
      %1259 = vmatpush1.msra.mxu0 0.0
      %1260 = vmatprep.subr.mxu0 0.0
      %1261 = vmatpush1.msra.mxu0 0.0
      %1262 = vmatprep.subr.mxu0 0.0
      %1263 = vmatpush1.msra.mxu0 0.0
      %1264 = vmatprep.subr.mxu0 0.0
      %1265 = vmatpush1.msra.mxu0 0.0
      %1266 = vmatprep.subr.mxu0 0.0
      %1267 = vmatpush1.msra.mxu0 0.0
      %1268 = vmatprep.subr.mxu0 0.0
      %1269 = vmatpush1.msra.mxu0 0.0
      %1270 = vmatprep.subr.mxu0 0.0
      %1271 = vmatpush1.msra.mxu0 0.0
      %1272 = vmatprep.subr.mxu0 0.0
      %1273 = vmatpush1.msra.mxu0 0.0
      %1274 = vmatprep.subr.mxu0 0.0
      %1275 = vmatpush1.msra.mxu0 0.0
      %1276 = vmatprep.subr.mxu0 0.0
      %1277 = vmatpush1.msra.mxu0 0.0
      %1278 = vmatprep.subr.mxu0 0.0
      %1279 = vmatpush1.msra.mxu0 0.0
      %1280 = vmatprep.subr.mxu0 0.0
      %1281 = vmatpush1.msra.mxu0 0.0
      %1282 = vmatprep.subr.mxu0 0.0
      %1283 = vmatpush1.msra.mxu0 0.0
      %1284 = vmatprep.subr.mxu0 0.0
      %1285 = vmatpush1.msra.mxu0 0.0
      %1286 = vmatprep.subr.mxu0 0.0
      %1287 = vmatpush1.msra.mxu0 0.0
      %1288 = vmatprep.subr.mxu0 0.0
      %1289 = vmatpush1.msra.mxu0 0.0
      %1290 = vmatprep.subr.mxu0 0.0
      %1291 = vmatpush1.msra.mxu0 0.0
      %1292 = vmatprep.subr.mxu0 0.0
      %1293 = vmatpush1.msra.mxu0 0.0
      %1294 = vmatprep.subr.mxu0 0.0
      %1295 = vmatpush1.msra.mxu0 0.0
      %1296 = vmatprep.subr.mxu0 0.0
      %1297 = vmatpush1.msra.mxu0 0.0
      %1298 = vmatprep.subr.mxu0 0.0
      %1299 = vmatpush1.msra.mxu0 0.0
      %1300 = vmatprep.subr.mxu0 0.0
      %1301 = vmatpush1.msra.mxu0 0.0
      %1302 = vmatprep.subr.mxu0 0.0
      %1303 = vmatpush1.msra.mxu0 0.0
      %1304 = vmatprep.mubr.f32.mxu0 0.0
      %1305 = vmatmul.mubr.f32.gmra.mrb[0].mxu0 %v1145
      %v1306 = vpop.f32.mrb[0].mxu0
      %v1307 = vadd.f32 0.0, %v1306
      %v1308 = vpop.f32.mrb[0].mxu0
      %1309 = vmatprep.mubr.f32.mxu0 0.0
      %1310 = vmatmul.mubr.f32.gmra.mrb[0].mxu0 %v1148
      %v1311 = vpop.f32.mrb[0].mxu0
      %v1312 = vadd.f32 0.0, %v1311
      %v1313 = vpop.f32.mrb[0].mxu0
      %1314 = vmatprep.mubr.f32.mxu0 0.0
      %1315 = vmatmul.mubr.f32.gmra.mrb[0].mxu0 %v1151
      %v1316 = vpop.f32.mrb[0].mxu0
      %v1317 = vadd.f32 0.0, %v1316
      %v1318 = vpop.f32.mrb[0].mxu0
      %1319 = vmatprep.mubr.f32.mxu0 0.0
      %1320 = vmatmul.mubr.f32.gmra.mrb[0].mxu0 %v1154
      %v1321 = vpop.f32.mrb[0].mxu0
      %v1322 = vadd.f32 0.0, %v1321
      %v1323 = vpop.f32.mrb[0].mxu0
      %1324 = vmatprep.mubr.f32.mxu0 0.0
      %1325 = vmatmul.mubr.f32.gmra.mrb[0].mxu0 %v1157
      %v1326 = vpop.f32.mrb[0].mxu0
      %v1327 = vadd.f32 0.0, %v1326
      %v1328 = vpop.f32.mrb[0].mxu0
      %1329 = vmatprep.mubr.f32.mxu0 0.0
      %1330 = vmatmul.mubr.f32.gmra.mrb[0].mxu0 %v1160
      %v1331 = vpop.f32.mrb[0].mxu0
      %v1332 = vadd.f32 0.0, %v1331
      %v1333 = vpop.f32.mrb[0].mxu0
      %1334 = vmatprep.mubr.f32.mxu0 0.0
      %1335 = vmatmul.mubr.f32.gmra.mrb[0].mxu0 %v1163
      %v1336 = vpop.f32.mrb[0].mxu0
      %v1337 = vadd.f32 0.0, %v1336
      %v1338 = vpop.f32.mrb[0].mxu0
      %1339 = vmatprep.mubr.f32.mxu0 0.0
      %1340 = vmatmul.mubr.f32.gmra.mrb[0].mxu0 %v1166
      %v1341 = vpop.f32.mrb[0].mxu0
      %v1342 = vadd.f32 0.0, %v1341
      %v1343 = vpop.f32.mrb[0].mxu0
      %1344 = vmatprep.mubr.f32.mxu0 0.0
      %1345 = vmatmul.mubr.f32.gmra.mrb[0].mxu0 %v1169
      %v1346 = vpop.f32.mrb[0].mxu0
      %v1347 = vadd.f32 0.0, %v1346
      %v1348 = vpop.f32.mrb[0].mxu0
      %1349 = vmatprep.mubr.f32.mxu0 0.0
      %1350 = vmatmul.mubr.f32.gmra.mrb[0].mxu0 %v1172
      %v1351 = vpop.f32.mrb[0].mxu0
      %v1352 = vadd.f32 0.0, %v1351
      %v1353 = vpop.f32.mrb[0].mxu0
      %1354 = vmatprep.mubr.f32.mxu0 0.0
      %1355 = vmatmul.mubr.f32.gmra.mrb[0].mxu0 %v1175
      %v1356 = vpop.f32.mrb[0].mxu0
      %v1357 = vadd.f32 0.0, %v1356
      %v1358 = vpop.f32.mrb[0].mxu0
      %1359 = vmatprep.mubr.f32.mxu0 0.0
      %1360 = vmatmul.mubr.f32.gmra.mrb[0].mxu0 %v1178
      %v1361 = vpop.f32.mrb[0].mxu0
      %v1362 = vadd.f32 0.0, %v1361
      %v1363 = vpop.f32.mrb[0].mxu0
      %1364 = vmatprep.mubr.f32.mxu0 0.0
      %1365 = vmatmul.mubr.f32.gmra.mrb[0].mxu0 %v1181
      %v1366 = vpop.f32.mrb[0].mxu0
      %v1367 = vadd.f32 0.0, %v1366
      %v1368 = vpop.f32.mrb[0].mxu0
      %1369 = vmatprep.mubr.f32.mxu0 0.0
      %1370 = vmatmul.mubr.f32.gmra.mrb[0].mxu0 %v1184
      %v1371 = vpop.f32.mrb[0].mxu0
      %v1372 = vadd.f32 0.0, %v1371
      %v1373 = vpop.f32.mrb[0].mxu0
      %1374 = vmatprep.mubr.f32.mxu0 0.0
      %1375 = vmatmul.mubr.f32.gmra.mrb[0].mxu0 %v1187
      %v1376 = vpop.f32.mrb[0].mxu0
      %v1377 = vadd.f32 0.0, %v1376
      %v1378 = vpop.f32.mrb[0].mxu0
      %1379 = vmatprep.mubr.f32.mxu0 0.0
      %1380 = vmatmul.mubr.f32.gmra.mrb[0].mxu0 %v1190
      %v1381 = vpop.f32.mrb[0].mxu0
      %v1382 = vadd.f32 0.0, %v1381
      %v1383 = vpop.f32.mrb[0].mxu0
      %1384 = vmatprep.mubr.f32.mxu0 0.0
      %1385 = vmatmul.mubr.f32.gmra.mrb[0].mxu0 %v1193
      %v1386 = vpop.f32.mrb[0].mxu0
      %v1387 = vadd.f32 0.0, %v1386
      %v1388 = vpop.f32.mrb[0].mxu0
      %1389 = vmatprep.mubr.f32.mxu0 0.0
      %1390 = vmatmul.mubr.f32.gmra.mrb[0].mxu0 %v1196
      %v1391 = vpop.f32.mrb[0].mxu0
      %v1392 = vadd.f32 0.0, %v1391
      %v1393 = vpop.f32.mrb[0].mxu0
      %1394 = vmatprep.mubr.f32.mxu0 0.0
      %1395 = vmatmul.mubr.f32.gmra.mrb[0].mxu0 %v1199
      %v1396 = vpop.f32.mrb[0].mxu0
      %v1397 = vadd.f32 0.0, %v1396
      %v1398 = vpop.f32.mrb[0].mxu0
      %1399 = vmatprep.mubr.f32.mxu0 0.0
      %1400 = vmatmul.mubr.f32.gmra.mrb[0].mxu0 %v1202
      %v1401 = vpop.f32.mrb[0].mxu0
      %v1402 = vadd.f32 0.0, %v1401
      %v1403 = vpop.f32.mrb[0].mxu0
      %1404 = vmatprep.mubr.f32.mxu0 0.0
      %1405 = vmatmul.mubr.f32.gmra.mrb[0].mxu0 %v1205
      %v1406 = vpop.f32.mrb[0].mxu0
      %v1407 = vadd.f32 0.0, %v1406
      %v1408 = vpop.f32.mrb[0].mxu0
      %1409 = vmatprep.mubr.f32.mxu0 0.0
      %1410 = vmatmul.mubr.f32.gmra.mrb[0].mxu0 %v1208
      %v1411 = vpop.f32.mrb[0].mxu0
      %v1412 = vadd.f32 0.0, %v1411
      %v1413 = vpop.f32.mrb[0].mxu0
      %1414 = vmatprep.mubr.f32.mxu0 0.0
      %1415 = vmatmul.mubr.f32.gmra.mrb[0].mxu0 %v1211
      %v1416 = vpop.f32.mrb[0].mxu0
      %v1417 = vadd.f32 0.0, %v1416
      %v1418 = vpop.f32.mrb[0].mxu0
      %1419 = vmatprep.mubr.f32.mxu0 0.0
      %1420 = vmatmul.mubr.f32.gmra.mrb[0].mxu0 %v1214
      %v1421 = vpop.f32.mrb[0].mxu0
      %v1422 = vadd.f32 0.0, %v1421
      %v1423 = vpop.f32.mrb[0].mxu0
      %1424 = vmatprep.mubr.f32.mxu0 0.0
      %1425 = vmatmul.mubr.f32.gmra.mrb[0].mxu0 %v1217
      %v1426 = vpop.f32.mrb[0].mxu0
      %v1427 = vadd.f32 0.0, %v1426
      %v1428 = vpop.f32.mrb[0].mxu0
      %1429 = vmatprep.mubr.f32.mxu0 0.0
      %1430 = vmatmul.mubr.f32.gmra.mrb[0].mxu0 %v1220
      %v1431 = vpop.f32.mrb[0].mxu0
      %v1432 = vadd.f32 0.0, %v1431
      %v1433 = vpop.f32.mrb[0].mxu0
      %1434 = vmatprep.mubr.f32.mxu0 0.0
      %1435 = vmatmul.mubr.f32.gmra.mrb[0].mxu0 %v1223
      %v1436 = vpop.f32.mrb[0].mxu0
      %v1437 = vadd.f32 0.0, %v1436
      %v1438 = vpop.f32.mrb[0].mxu0
      %1439 = vmatprep.mubr.f32.mxu0 0.0
      %1440 = vmatmul.mubr.f32.gmra.mrb[0].mxu0 %v1226
      %v1441 = vpop.f32.mrb[0].mxu0
      %v1442 = vadd.f32 0.0, %v1441
      %v1443 = vpop.f32.mrb[0].mxu0
      %1444 = vmatprep.mubr.f32.mxu0 0.0
      %1445 = vmatmul.mubr.f32.gmra.mrb[0].mxu0 %v1229
      %v1446 = vpop.f32.mrb[0].mxu0
      %v1447 = vadd.f32 0.0, %v1446
      %v1448 = vpop.f32.mrb[0].mxu0
      %1449 = vmatprep.mubr.f32.mxu0 0.0
      %1450 = vmatmul.mubr.f32.gmra.mrb[0].mxu0 %v1232
      %v1451 = vpop.f32.mrb[0].mxu0
      %v1452 = vadd.f32 0.0, %v1451
      %v1453 = vpop.f32.mrb[0].mxu0
      %1454 = vmatprep.mubr.f32.mxu0 0.0
      %1455 = vmatmul.mubr.f32.gmra.mrb[0].mxu0 %v1235
      %v1456 = vpop.f32.mrb[0].mxu0
      %v1457 = vadd.f32 0.0, %v1456
      %v1458 = vpop.f32.mrb[0].mxu0
      %1459 = vmatprep.mubr.f32.mxu0 0.0
      %1460 = vmatmul.mubr.f32.gmra.mrb[0].mxu0 %v1238
      %v1461 = vpop.f32.mrb[0].mxu0
      %v1462 = vadd.f32 0.0, %v1461
      %v1463 = vpop.f32.mrb[0].mxu0
      %1464 = vdwg.mxu0
      %1469 = vrot.lane.b32.xlu0 %v1327, 32
      %v1470 = vpop.permute.xlu0 %1469
      %1471 = vrot.lane.b32.xlu0 %v1332, 32
      %v1472 = vpop.permute.xlu0 %1471
      %1473 = vrot.lane.b32.xlu0 %v1337, 32
      %v1474 = vpop.permute.xlu0 %1473
      %1475 = vrot.lane.b32.xlu0 %v1342, 32
      %v1476 = vpop.permute.xlu0 %1475
      %1485 = vrot.lane.b32.xlu0 %v1347, 64
      %v1486 = vpop.permute.xlu0 %1485
      %1487 = vrot.lane.b32.xlu0 %v1352, 64
      %v1488 = vpop.permute.xlu0 %1487
      %1489 = vrot.lane.b32.xlu0 %v1357, 64
      %v1490 = vpop.permute.xlu0 %1489
      %1491 = vrot.lane.b32.xlu0 %v1362, 64
      %v1492 = vpop.permute.xlu0 %1491
      %1501 = vrot.lane.b32.xlu0 %v1367, 96
      %v1502 = vpop.permute.xlu0 %1501
      %1503 = vrot.lane.b32.xlu0 %v1372, 96
      %v1504 = vpop.permute.xlu0 %1503
      %1505 = vrot.lane.b32.xlu0 %v1377, 96
      %v1506 = vpop.permute.xlu0 %1505
      %1507 = vrot.lane.b32.xlu0 %v1382, 96
      %v1508 = vpop.permute.xlu0 %1507
      %1517 = vrot.lane.b32.xlu0 %v1407, 32
      %v1518 = vpop.permute.xlu0 %1517
      %1519 = vrot.lane.b32.xlu0 %v1412, 32
      %v1520 = vpop.permute.xlu0 %1519
      %1521 = vrot.lane.b32.xlu0 %v1417, 32
      %v1522 = vpop.permute.xlu0 %1521
      %1523 = vrot.lane.b32.xlu0 %v1422, 32
      %v1524 = vpop.permute.xlu0 %1523
      %1533 = vrot.lane.b32.xlu0 %v1427, 64
      %v1534 = vpop.permute.xlu0 %1533
      %1535 = vrot.lane.b32.xlu0 %v1432, 64
      %v1536 = vpop.permute.xlu0 %1535
      %1537 = vrot.lane.b32.xlu0 %v1437, 64
      %v1538 = vpop.permute.xlu0 %1537
      %1539 = vrot.lane.b32.xlu0 %v1442, 64
      %v1540 = vpop.permute.xlu0 %1539
      %1549 = vrot.lane.b32.xlu0 %v1447, 96
      %v1550 = vpop.permute.xlu0 %1549
      %1551 = vrot.lane.b32.xlu0 %v1452, 96
      %v1552 = vpop.permute.xlu0 %1551
      %1553 = vrot.lane.b32.xlu0 %v1457, 96
      %v1554 = vpop.permute.xlu0 %1553
      %1555 = vrot.lane.b32.xlu0 %v1462, 96
      %v1556 = vpop.permute.xlu0 %1555
      %v1561 = vsel %vm1143, %v1307, %v1470
      %v1562 = vsel %vm1143, %v1312, %v1472
      %v1563 = vsel %vm1143, %v1317, %v1474
      %v1564 = vsel %vm1143, %v1322, %v1476
      %vm1565 = vcmask 523264
      %v1566 = vsel %vm1565, %v1561, %v1486
      %v1567 = vsel %vm1565, %v1562, %v1488
      %v1568 = vsel %vm1565, %v1563, %v1490
      %v1569 = vsel %vm1565, %v1564, %v1492
      %vm1570 = vcmask 785408
      %v1571 = vsel %vm1570, %v1566, %v1502
      %v1572 = vsel %vm1570, %v1567, %v1504
      %v1573 = vsel %vm1570, %v1568, %v1506
      %v1574 = vsel %vm1570, %v1569, %v1508
      %v1575 = vsel %vm1143, %v1387, %v1518
      %v1576 = vsel %vm1143, %v1392, %v1520
      %v1577 = vsel %vm1143, %v1397, %v1522
      %v1578 = vsel %vm1143, %v1402, %v1524
      %v1579 = vsel %vm1565, %v1575, %v1534
      %v1580 = vsel %vm1565, %v1576, %v1536
      %v1581 = vsel %vm1565, %v1577, %v1538
      %v1582 = vsel %vm1565, %v1578, %v1540
      %v1583 = vsel %vm1570, %v1579, %v1550
      %v1584 = vsel %vm1570, %v1580, %v1552
      %v1585 = vsel %vm1570, %v1581, %v1554
      %v1586 = vsel %vm1570, %v1582, %v1556
      %v1587 = vld [vmem:[%s200] sm:$0xff]
      %v1588 = vld [vmem:[%s200 + $0x8] sm:$0xff]
      %v1589 = vld [vmem:[%s200 + $0x10] sm:$0xff]
      %v1590 = vld [vmem:[%s200 + $0x18] sm:$0xff]
      %v1592 = vsel %vm1143, %v1587, 0
      %v1595 = vsel %vm1143, %v1588, 0
      %v1598 = vsel %vm1143, %v1589, 0
      %v1601 = vsel %vm1143, %v1590, 0
      %1603 = vmatprep.subr.mxu0 %v1583
      %1604 = vmatpush1.msra.mxu0 %v1571
      %1605 = vmatprep.subr.mxu0 %v1584
      %1606 = vmatpush1.msra.mxu0 %v1572
      %1607 = vmatprep.subr.mxu0 %v1585
      %1608 = vmatpush1.msra.mxu0 %v1573
      %1609 = vmatprep.subr.mxu0 %v1586
      %1610 = vmatpush1.msra.mxu0 %v1574
      %1611 = vmatprep.subr.mxu0 0.0
      %1612 = vmatpush1.msra.mxu0 0.0
      %1613 = vmatprep.subr.mxu0 0.0
      %1614 = vmatpush1.msra.mxu0 0.0
      %1615 = vmatprep.subr.mxu0 0.0
      %1616 = vmatpush1.msra.mxu0 0.0
      %1617 = vmatprep.subr.mxu0 0.0
      %1618 = vmatpush1.msra.mxu0 0.0
      %1619 = vmatprep.subr.mxu0 0.0
      %1620 = vmatpush1.msra.mxu0 0.0
      %1621 = vmatprep.subr.mxu0 0.0
      %1622 = vmatpush1.msra.mxu0 0.0
      %1623 = vmatprep.subr.mxu0 0.0
      %1624 = vmatpush1.msra.mxu0 0.0
      %1625 = vmatprep.subr.mxu0 0.0
      %1626 = vmatpush1.msra.mxu0 0.0
      %1627 = vmatprep.subr.mxu0 0.0
      %1628 = vmatpush1.msra.mxu0 0.0
      %1629 = vmatprep.subr.mxu0 0.0
      %1630 = vmatpush1.msra.mxu0 0.0
      %1631 = vmatprep.subr.mxu0 0.0
      %1632 = vmatpush1.msra.mxu0 0.0
      %1633 = vmatprep.subr.mxu0 0.0
      %1634 = vmatpush1.msra.mxu0 0.0
      %1635 = vmatprep.subr.mxu0 0.0
      %1636 = vmatpush1.msra.mxu0 0.0
      %1637 = vmatprep.subr.mxu0 0.0
      %1638 = vmatpush1.msra.mxu0 0.0
      %1639 = vmatprep.subr.mxu0 0.0
      %1640 = vmatpush1.msra.mxu0 0.0
      %1641 = vmatprep.subr.mxu0 0.0
      %1642 = vmatpush1.msra.mxu0 0.0
      %1643 = vmatprep.subr.mxu0 0.0
      %1644 = vmatpush1.msra.mxu0 0.0
      %1645 = vmatprep.subr.mxu0 0.0
      %1646 = vmatpush1.msra.mxu0 0.0
      %1647 = vmatprep.subr.mxu0 0.0
      %1648 = vmatpush1.msra.mxu0 0.0
      %1649 = vmatprep.subr.mxu0 0.0
      %1650 = vmatpush1.msra.mxu0 0.0
      %1651 = vmatprep.subr.mxu0 0.0
      %1652 = vmatpush1.msra.mxu0 0.0
      %1653 = vmatprep.subr.mxu0 0.0
      %1654 = vmatpush1.msra.mxu0 0.0
      %1655 = vmatprep.subr.mxu0 0.0
      %1656 = vmatpush1.msra.mxu0 0.0
      %1657 = vmatprep.subr.mxu0 0.0
      %1658 = vmatpush1.msra.mxu0 0.0
      %1659 = vmatprep.subr.mxu0 0.0
      %1660 = vmatpush1.msra.mxu0 0.0
      %1661 = vmatprep.subr.mxu0 0.0
      %1662 = vmatpush1.msra.mxu0 0.0
      %1663 = vmatprep.subr.mxu0 0.0
      %1664 = vmatpush1.msra.mxu0 0.0
      %1665 = vmatprep.subr.mxu0 0.0
      %1666 = vmatpush1.msra.mxu0 0.0
      %1667 = vmatprep.mubr.f32.mxu0 0.0
      %1668 = vmatmul.mubr.f32.gmra.mrb[0].mxu0 %v1592
      %v1669 = vpop.f32.mrb[0].mxu0
      %v1670 = vadd.f32 0.0, %v1669
      %v1671 = vpop.f32.mrb[0].mxu0
      %v1672 = vadd.f32 0.0, %v1671
      %1673 = vmatprep.mubr.f32.mxu0 0.0
      %1674 = vmatmul.mubr.f32.gmra.mrb[0].mxu0 %v1595
      %v1675 = vpop.f32.mrb[0].mxu0
      %v1676 = vadd.f32 0.0, %v1675
      %v1677 = vpop.f32.mrb[0].mxu0
      %v1678 = vadd.f32 0.0, %v1677
      %1679 = vmatprep.mubr.f32.mxu0 0.0
      %1680 = vmatmul.mubr.f32.gmra.mrb[0].mxu0 %v1598
      %v1681 = vpop.f32.mrb[0].mxu0
      %v1682 = vadd.f32 0.0, %v1681
      %v1683 = vpop.f32.mrb[0].mxu0
      %v1684 = vadd.f32 0.0, %v1683
      %1685 = vmatprep.mubr.f32.mxu0 0.0
      %1686 = vmatmul.mubr.f32.gmra.mrb[0].mxu0 %v1601
      %v1687 = vpop.f32.mrb[0].mxu0
      %v1688 = vadd.f32 0.0, %v1687
      %v1689 = vpop.f32.mrb[0].mxu0
      %v1690 = vadd.f32 0.0, %v1689
      %1691 = vdwg.mxu0
      %1692 = vst [vmem:[%s210] sm:$0xff] %v1670
      %1693 = vst [vmem:[%s210 + $0x8] sm:$0xff] %v1672
      %1694 = vst [vmem:[%s210 + $0x10] sm:$0xff] %v1676
      %1695 = vst [vmem:[%s210 + $0x18] sm:$0xff] %v1678
      %1696 = vst [vmem:[%s210 + $0x20] sm:$0xff] %v1682
      %1697 = vst [vmem:[%s210 + $0x28] sm:$0xff] %v1684
      %1698 = vst [vmem:[%s210 + $0x30] sm:$0xff] %v1688
      %1699 = vst [vmem:[%s210 + $0x38] sm:$0xff] %v1690
      %p1700 = scmp.lt.s32.totalorder %s14, 7
      %s1701 = scalar_select %p1700, %s14, 7
      %s1702 = smul.addr %s1701, 8
      %s1703 = smul.addr %s1702, 8
      %s1704 = scalar_lea.vmem %s3, %s1703
      // Predicated region
      $region33: #{_forward_impl.4} parent=31 // pred_check
        %p1705 = pneg %p110
      $region34: #{_forward_impl.4} parent=31 // pred_check_branch
        %1707 = sbr.rel (%p1705) target = $region36
      $region35: #{_forward_impl.4} parent=31 // pred_region
        _
      $region36: #{_forward_impl.4} parent=31 // pred_fallthru
        _
    $region32: #{_forward_impl.4} parent=5 // pred_fallthru
      _
    %p1708 = scmp.le.s32.totalorder 2, %s9
    // Predicated region
    $region37: #{_forward_impl.4} parent=5 // pred_check
      %p1709 = pneg %p1708
    $region38: #{_forward_impl.4} parent=5 // pred_check_branch
      %1711 = sbr.rel (%p1709) target = $region40
    $region39: #{_forward_impl.4} parent=5 // pred_region
      %s1712 = ssub.s32 %s9, 2
      // Predicated region
      $region41: #{_forward_impl.4} parent=39 // pred_check
        %p1713 = pneg %p116
      $region42: #{_forward_impl.4} parent=39 // pred_check_branch
        %1715 = sbr.rel (%p1713) target = $region44
      $region43: #{_forward_impl.4} parent=39 // pred_region
        %p1716 = scmp.lt.s32.totalorder %s15, 7
        %s1717 = scalar_select %p1716, %s15, 7
        %s1718 = smul.addr %s1717, 8
        %s1719 = smul.addr %s1718, 8
        %s1720 = scalar_lea.vmem %s3, %s1719
      $region44: #{_forward_impl.4} parent=39 // pred_fallthru
        _
    $region40: #{_forward_impl.4} parent=5 // pred_fallthru
      _
  $region6: #{_forward_impl.4} parent=0 // loop_footer
    %s13 = sadd.s32 1, %s9
  $region7: #{_forward_impl.4} parent=0 // loop_footer_branch
    %8 = sbr.rel target = $region3
  $region8: #{_forward_impl.4} parent=0 // loop_exit
    _

// kernel: _forward_impl.5
$region0: #{_forward_impl.5}
  #allocation0 [shape = 'u32[]', space=smem, size = 0x4, offset = 0x4, fixed_abs, tag = 'smem constant byte address 0x4 - core index']
  #allocation1 [shape = 'u32[144,128]{1,0:T(1,128)}', space=vmem, size = 0x12000, scoped, tag = 'internal scratch']
  %s0 = inlined_call_operand.vmem [shape: f32[2,32,128], index: 0, kind: input, shape index: {}]
  %s1 = inlined_call_operand.vmem [shape: f32[2,9,32,128], index: 1, kind: input, shape index: {}]
  %s2 = inlined_call_operand.vmem [shape: f32[2,32,128], index: 2, kind: output, shape index: {0}]
  %s3 = inlined_call_operand.vmem [shape: f32[2,32,128], index: 3, kind: output, shape index: {1}]
  %4 = xla_tuple %s2, %s3
  %s5 = sld [smem:[#allocation0]]
  $region49: #{_forward_impl.5} parent=0
    _
  %s7 = ssub.s32 1, %s5
  %s8 = scalar_select 0, %s7, %s5
  loop: start=0, step=1, limit=4
  $region2: #{_forward_impl.5} parent=0 // loop_pre_header
    _
  $region3: #{_forward_impl.5} parent=0 // loop_header
    %s10 = sphi 0, %s14
    %p11 = scmp.ge.s32.totalorder %s10, 4
    %s20 = sphi 0, %s22
    %s23 = sphi 0, %s20
    %s24 = sphi 0, %s23
    %s40 = sphi 0, %s24
    %s46 = sphi 0, %s48
    %s49 = sphi 0, %s46
    %s50 = sphi 0, %s49
    %s66 = sphi 0, %s50
    %s72 = sphi 0, %s74
    %s75 = sphi 0, %s72
    %s76 = sphi 0, %s75
    %s92 = sphi 0, %s76
    %s98 = sphi 0, %s100
    %s101 = sphi 0, %s98
    %s102 = sphi 0, %s101
    %s118 = sphi 0, %s102
  $region4: #{_forward_impl.5} parent=0 // loop_header_branch
    %13 = sbr.rel (%p11) target = $region8
  $region5: #{_forward_impl.5} parent=0 // loop_body
    %s15 = ssub.s32 %s10, 1
    %s16 = ssub.s32 %s10, 2
    %s17 = sadd.s32 %s10, 1
    %s18 = ssub.s32 %s10, %s17
    %p19 = scmp.eq.s32.totalorder %s18, 0
    %s21 = sadd.s32 %s20, 1
    %s22 = scalar_select %p19, %s20, %s21
    %p25 = pneg %p19
    %p26 = scmp.eq.s32.totalorder %s10, 1
    %p27 = por %p25, %p26
    %p28 = scmp.ne.s32.totalorder %s20, %s23
    %p29 = scmp.eq.s32.totalorder %s10, 0
    %p30 = por %p28, %p29
    %p31 = scmp.ne.s32.totalorder %s20, %s23
    %p32 = scmp.eq.s32.totalorder %s15, 1
    %p33 = por %p31, %p32
    %p34 = scmp.ne.s32.totalorder %s23, %s24
    %p35 = scmp.eq.s32.totalorder %s15, 0
    %p36 = por %p34, %p35
    %p37 = scmp.ne.s32.totalorder %s23, %s24
    %p38 = scmp.eq.s32.totalorder %s16, 1
    %p39 = por %p37, %p38
    %p41 = scmp.ne.s32.totalorder %s24, %s40
    %p42 = scmp.eq.s32.totalorder %s16, 0
    %p43 = por %p41, %p42
    %s44 = ssub.s32 %s10, %s17
    %p45 = scmp.eq.s32.totalorder %s44, 0
    %s47 = sadd.s32 %s46, 1
    %s48 = scalar_select %p45, %s46, %s47
    %p51 = pneg %p45
    %p52 = scmp.eq.s32.totalorder %s10, 1
    %p53 = por %p51, %p52
    %p54 = scmp.ne.s32.totalorder %s46, %s49
    %p55 = scmp.eq.s32.totalorder %s10, 0
    %p56 = por %p54, %p55
    %p57 = scmp.ne.s32.totalorder %s46, %s49
    %p58 = scmp.eq.s32.totalorder %s15, 1
    %p59 = por %p57, %p58
    %p60 = scmp.ne.s32.totalorder %s49, %s50
    %p61 = scmp.eq.s32.totalorder %s15, 0
    %p62 = por %p60, %p61
    %p63 = scmp.ne.s32.totalorder %s49, %s50
    %p64 = scmp.eq.s32.totalorder %s16, 1
    %p65 = por %p63, %p64
    %p67 = scmp.ne.s32.totalorder %s50, %s66
    %p68 = scmp.eq.s32.totalorder %s16, 0
    %p69 = por %p67, %p68
    %s70 = ssub.s32 %s10, %s17
    %p71 = scmp.eq.s32.totalorder %s70, 0
    %s73 = sadd.s32 %s72, 1
    %s74 = scalar_select %p71, %s72, %s73
    %p77 = pneg %p71
    %p78 = scmp.eq.s32.totalorder %s10, 1
    %p79 = por %p77, %p78
    %p80 = scmp.ne.s32.totalorder %s72, %s75
    %p81 = scmp.eq.s32.totalorder %s10, 0
    %p82 = por %p80, %p81
    %p83 = scmp.ne.s32.totalorder %s72, %s75
    %p84 = scmp.eq.s32.totalorder %s15, 1
    %p85 = por %p83, %p84
    %p86 = scmp.ne.s32.totalorder %s75, %s76
    %p87 = scmp.eq.s32.totalorder %s15, 0
    %p88 = por %p86, %p87
    %p89 = scmp.ne.s32.totalorder %s75, %s76
    %p90 = scmp.eq.s32.totalorder %s16, 1
    %p91 = por %p89, %p90
    %p93 = scmp.ne.s32.totalorder %s76, %s92
    %p94 = scmp.eq.s32.totalorder %s16, 0
    %p95 = por %p93, %p94
    %s96 = ssub.s32 %s10, %s17
    %p97 = scmp.eq.s32.totalorder %s96, 0
    %s99 = sadd.s32 %s98, 1
    %s100 = scalar_select %p97, %s98, %s99
    %p103 = pneg %p97
    %p104 = scmp.eq.s32.totalorder %s10, 1
    %p105 = por %p103, %p104
    %p106 = scmp.ne.s32.totalorder %s98, %s101
    %p107 = scmp.eq.s32.totalorder %s10, 0
    %p108 = por %p106, %p107
    %p109 = scmp.ne.s32.totalorder %s98, %s101
    %p110 = scmp.eq.s32.totalorder %s15, 1
    %p111 = por %p109, %p110
    %p112 = scmp.ne.s32.totalorder %s101, %s102
    %p113 = scmp.eq.s32.totalorder %s15, 0
    %p114 = por %p112, %p113
    %p115 = scmp.ne.s32.totalorder %s101, %s102
    %p116 = scmp.eq.s32.totalorder %s16, 1
    %p117 = por %p115, %p116
    %p119 = scmp.ne.s32.totalorder %s102, %s118
    %p120 = scmp.eq.s32.totalorder %s16, 0
    %p121 = por %p119, %p120
    %p122 = scmp.le.s32.totalorder 1, %s10
    %p123 = scmp.lt.s32.totalorder %s10, 3
    %p124 = pnand %p122, %p123
    %p125 = pneg %p124
    // Predicated region
    $region9: #{_forward_impl.5} parent=5 // pred_check
      _
    $region10: #{_forward_impl.5} parent=5 // pred_check_branch
      %127 = sbr.rel (%p124) target = $region12
    $region11: #{_forward_impl.5} parent=5 // pred_region
      %s128 = ssub.s32 %s10, 1
    $region12: #{_forward_impl.5} parent=5 // pred_fallthru
      _
    %p129 = scmp.lt.s32.totalorder %s10, 2
    // Predicated region
    $region13: #{_forward_impl.5} parent=5 // pred_check
      %p130 = pneg %p129
    $region14: #{_forward_impl.5} parent=5 // pred_check_branch
      %132 = sbr.rel (%p130) target = $region16
    $region15: #{_forward_impl.5} parent=5 // pred_region
      // Predicated region
      $region17: #{_forward_impl.5} parent=15 // pred_check
        %p133 = pneg %p30
      $region18: #{_forward_impl.5} parent=15 // pred_check_branch
        %135 = sbr.rel (%p133) target = $region20
      $region19: #{_forward_impl.5} parent=15 // pred_region
        %p136 = scmp.lt.s32.totalorder %s10, 1
        %s137 = scalar_select %p136, %s10, 1
        %s138 = smul.addr %s137, 4
        %s139 = smul.addr %s138, 8
        %s140 = scalar_lea.vmem %s0, %s139
      $region20: #{_forward_impl.5} parent=15 // pred_fallthru
        _
      // Predicated region
      $region21: #{_forward_impl.5} parent=15 // pred_check
        %p141 = pneg %p56
      $region22: #{_forward_impl.5} parent=15 // pred_check_branch
        %143 = sbr.rel (%p141) target = $region24
      $region23: #{_forward_impl.5} parent=15 // pred_region
        %p144 = scmp.lt.s32.totalorder %s10, 1
        %s145 = scalar_select %p144, %s10, 1
        %s146 = smul.addr %s145, 36
        %s147 = smul.addr %s146, 8
        %s148 = scalar_lea.vmem %s1, %s147
      $region24: #{_forward_impl.5} parent=15 // pred_fallthru
        _
    $region16: #{_forward_impl.5} parent=5 // pred_fallthru
      _
    %p149 = scmp.le.s32.totalorder 1, %s10
    %p150 = scmp.lt.s32.totalorder %s10, 3
    %p151 = pnand %p149, %p150
    %p152 = pneg %p151
    // Predicated region
    $region25: #{_forward_impl.5} parent=5 // pred_check
      _
    $region26: #{_forward_impl.5} parent=5 // pred_check_branch
      %154 = sbr.rel (%p151) target = $region28
    $region27: #{_forward_impl.5} parent=5 // pred_region
      %s155 = ssub.s32 %s10, 1
      %p156 = scmp.lt.s32.totalorder %s15, 1
      %s157 = scalar_select %p156, %s15, 1
      %s158 = smul.addr %s157, 4
      %s159 = smul.addr %s158, 8
      %s160 = scalar_lea.vmem %s0, %s159
      %p161 = pneg %p36
      %p162 = pneg %p33
      %p163 = scmp.lt.s32.totalorder %s15, 1
      %s164 = scalar_select %p163, %s15, 1
      %s165 = smul.addr %s164, 36
      %s166 = smul.addr %s165, 8
      %s167 = scalar_lea.vmem %s1, %s166
      %p168 = pneg %p62
      %p169 = pneg %p59
      %p170 = pneg %p88
      %p171 = pneg %p85
      %p172 = scmp.lt.s32.totalorder %s15, 1
      %s173 = scalar_select %p172, %s15, 1
      %s174 = smul.addr %s173, 4
      %s175 = smul.addr %s174, 8
      %s176 = scalar_lea.vmem %s2, %s175
      %p177 = pneg %p114
      %p178 = pneg %p111
      %p179 = scmp.lt.s32.totalorder %s15, 1
      %s180 = scalar_select %p179, %s15, 1
      %s181 = smul.addr %s180, 4
      %s182 = smul.addr %s181, 8
      %s183 = scalar_lea.vmem %s3, %s182
      %p184 = scmp.lt.s32.totalorder %s15, 1
      %s185 = scalar_select %p184, %s15, 1
      %s186 = smul.addr %s185, 4
      %s187 = smul.addr %s186, 8
      %s188 = scalar_lea.vmem %s0, %s187
      %p189 = scmp.lt.s32.totalorder %s15, 1
      %s190 = scalar_select %p189, %s15, 1
      %s191 = smul.addr %s190, 36
      %s192 = smul.addr %s191, 8
      %s193 = scalar_lea.vmem %s1, %s192
      %p194 = scmp.lt.s32.totalorder %s15, 1
      %s195 = scalar_select %p194, %s15, 1
      %s196 = smul.addr %s195, 4
      %s197 = smul.addr %s196, 8
      %s198 = scalar_lea.vmem %s2, %s197
      %p199 = scmp.lt.s32.totalorder %s15, 1
      %s200 = scalar_select %p199, %s15, 1
      %s201 = smul.addr %s200, 4
      %s202 = smul.addr %s201, 8
      %s203 = scalar_lea.vmem %s3, %s202
      %v204 = vld [vmem:[%s188] sm:$0xff]
      %v205 = vld [vmem:[%s188 + $0x8] sm:$0xff]
      %v206 = vld [vmem:[%s188 + $0x10] sm:$0xff]
      %v207 = vld [vmem:[%s188 + $0x18] sm:$0xff]
      %s208 = scalar_lea.vmem %s193, 256
      %v209 = vld [vmem:[%s208] sm:$0xff]
      %v210 = vld [vmem:[%s208 + $0x8] sm:$0xff]
      %v211 = vld [vmem:[%s208 + $0x10] sm:$0xff]
      %v212 = vld [vmem:[%s208 + $0x18] sm:$0xff]
      %v213 = vadd.f32 %v204, -0.06422333
      %v214 = vadd.f32 %v205, -0.06422333
      %v215 = vadd.f32 %v206, -0.06422333
      %v216 = vadd.f32 %v207, -0.06422333
      %v217 = vmul.f32 %v213, 3.1415927
      %v218 = vmul.f32 %v214, 3.1415927
      %v219 = vmul.f32 %v215, 3.1415927
      %v220 = vmul.f32 %v216, 3.1415927
      %v221 = vand.u32 2147483647, %v217
      %vm222 = vcmp.le.f32.partialorder %v221, 0.7853982
      %vm223 = vcmp.lt.s32.totalorder %v217, 0
      %v224 = vand.u32 %v217, 2139095040
      %v225 = vshrl.u32 %v224, 23
      %v226 = vsub.s32 %v225, 127
      %v227 = vand.u32 2147483647, %v217
      %v228 = vand.u32 %v227, 8388607
      %v229 = vor.u32 %v228, 8388608
      %v230 = vsub.s32 0, %v229
      %v231 = vadd.s32 %v226, 1
      %vm232 = vcmp.gt.s32.totalorder %v231, 0
      %v233 = vsel %vm232, %v231, 0
      %v234 = vshrl.u32 %v233, 5
      %v235 = vand.u32 %v233, 31
      %v236 = vsub.s32 32, %v235
      %v237 = vshrl.u32 683565275, %v236
      %v238 = vshll.u32 683565275, %v235
      %v239 = vshrl.u32 2475754826, %v236
      %v240 = vor.u32 %v238, %v239
      %v241 = vshll.u32 2475754826, %v235
      %v242 = vshrl.u32 2131351028, %v236
      %v243 = vor.u32 %v241, %v242
      %v244 = vshll.u32 2131351028, %v235
      %v245 = vshrl.u32 2102212464, %v236
      %v246 = vor.u32 %v244, %v245
      %v247 = vshll.u32 2102212464, %v235
      %v248 = vshrl.u32 920167782, %v236
      %v249 = vor.u32 %v247, %v248
      %v250 = vshll.u32 920167782, %v235
      %v251 = vshrl.u32 1326507024, %v236
      %v252 = vor.u32 %v250, %v251
      %vm253 = vcmp.lt.s32.totalorder %v234, 1
      %vm254 = vcmp.lt.s32.totalorder %v234, 2
      %vm255 = vcmp.lt.s32.totalorder %v234, 3
      %vm256 = vcmp.lt.s32.totalorder %v234, 4
      %v257 = vsel %vm253, %v237, %v240
      %v258 = vsel %vm256, %v246, 2102212464
      %v259 = vsel %vm255, %v243, %v258
      %v260 = vsel %vm254, %v257, %v259
      %v261 = vsel %vm253, %v240, %v243
      %v262 = vsel %vm256, %v249, 920167782
      %v263 = vsel %vm255, %v246, %v262
      %v264 = vsel %vm254, %v261, %v263
      %v265 = vsel %vm253, %v243, %v246
      %v266 = vsel %vm256, %v252, 1326507024
      %v267 = vsel %vm255, %v249, %v266
      %v268 = vsel %vm254, %v265, %v267
      %v269 = vshll.u32 %v229, 8
      %v270 = vmul.u32.u64.compose %v269, %v268
      %v271 = vextract.low.u32 %v270
      %v272 = vextract.high.u32 %v270
      %v273 = vmul.u32.u64.compose %v269, %v264
      %v274 = vextract.low.u32 %v273
      %v275 = vextract.high.u32 %v273
      %v276 = vmul.u32 %v269, %v260
      %v277 = vadd.s32 %v272, %v274
      %vm278 = vc.u32 %v272, %v274
      %v279 = vadd.s32 %v275, 1
      %v280 = vsel %vm278, %v279, %v275
      %v281 = vadd.s32 %v276, %v280
      %v282 = vadd.s32 %v281, 536870912
      %v283 = vshrl.u32 %v282, 30
      %v284 = vshll.u32 %v283, 30
      %v285 = vsub.s32 %v281, %v284
      %vm286 = vcmp.lt.s32.totalorder %v285, 0
      %v287 = vsub.s32 0, %v285
      %v288 = vsel %vm286, %v287, %v285
      %v289 = vclz %v288
      %v290 = vsub.s32 %v289, 2
      %vm291 = vcmp.gt.s32.totalorder 0, %v290
      %v292 = vsel %vm291, 0, %v290
      %v293 = vsub.s32 32, %v292
      %v294 = vshll.u32 %v285, %v292
      %v295 = vshrl.u32 %v277, %v293
      %v296 = vor.u32 %v294, %v295
      %v297 = vsub.s32 4294967266, %v292
      %v298 = vadd.s32 %v297, 127
      %v299 = vshll.u32 %v298, 23
      %v300 = vor.u32 4788187, %v299
      %v301 = vand.u32 2147483647, %v300
      %v303 = vcvt.s32.f32 %v296
      %v304 = vmul.f32 %v303, %v301
      %v305 = vxor.u32 %v304, 2147483648
      %v306 = vsel %vm223, %v305, %v304
      %v307 = vsub.s32 4, %v283
      %v308 = vsel %vm223, %v307, %v283
      %v309 = vsel %vm222, %v217, %v306
      %v310 = vsel %vm222, 0, %v308
      %v311 = vcosq.f32.pop %v309
      %v312 = vsinq.f32.pop %v309
      %vm313 = vweird.f32 %v217
      %v314 = vand.u32 %v310, 3
      %vm315 = vcmp.lt.s32.totalorder %v314, 2
      %vm316 = vcmp.eq.s32.totalorder %v314, 0
      %v317 = vxor.u32 %v312, 2147483648
      %v318 = vsel %vm316, %v311, %v317
      %vm319 = vcmp.eq.s32.totalorder %v314, 2
      %v320 = vxor.u32 %v311, 2147483648
      %v321 = vsel %vm319, %v320, %v312
      %v322 = vsel %vm315, %v318, %v321
      %v323 = vsel %vm313, nan, %v322
      %v324 = vand.u32 2147483647, %v218
      %vm325 = vcmp.le.f32.partialorder %v324, 0.7853982
      %vm326 = vcmp.lt.s32.totalorder %v218, 0
      %v327 = vand.u32 %v218, 2139095040
      %v328 = vshrl.u32 %v327, 23
      %v329 = vsub.s32 %v328, 127
      %v330 = vand.u32 2147483647, %v218
      %v331 = vand.u32 %v330, 8388607
      %v332 = vor.u32 %v331, 8388608
      %v333 = vsub.s32 0, %v332
      %v334 = vadd.s32 %v329, 1
      %vm335 = vcmp.gt.s32.totalorder %v334, 0
      %v336 = vsel %vm335, %v334, 0
      %v337 = vshrl.u32 %v336, 5
      %v338 = vand.u32 %v336, 31
      %v339 = vsub.s32 32, %v338
      %v340 = vshrl.u32 683565275, %v339
      %v341 = vshll.u32 683565275, %v338
      %v342 = vshrl.u32 2475754826, %v339
      %v343 = vor.u32 %v341, %v342
      %v344 = vshll.u32 2475754826, %v338
      %v345 = vshrl.u32 2131351028, %v339
      %v346 = vor.u32 %v344, %v345
      %v347 = vshll.u32 2131351028, %v338
      %v348 = vshrl.u32 2102212464, %v339
      %v349 = vor.u32 %v347, %v348
      %v350 = vshll.u32 2102212464, %v338
      %v351 = vshrl.u32 920167782, %v339
      %v352 = vor.u32 %v350, %v351
      %v353 = vshll.u32 920167782, %v338
      %v354 = vshrl.u32 1326507024, %v339
      %v355 = vor.u32 %v353, %v354
      %vm356 = vcmp.lt.s32.totalorder %v337, 1
      %vm357 = vcmp.lt.s32.totalorder %v337, 2
      %vm358 = vcmp.lt.s32.totalorder %v337, 3
      %vm359 = vcmp.lt.s32.totalorder %v337, 4
      %v360 = vsel %vm356, %v340, %v343
      %v361 = vsel %vm359, %v349, 2102212464
      %v362 = vsel %vm358, %v346, %v361
      %v363 = vsel %vm357, %v360, %v362
      %v364 = vsel %vm356, %v343, %v346
      %v365 = vsel %vm359, %v352, 920167782
      %v366 = vsel %vm358, %v349, %v365
      %v367 = vsel %vm357, %v364, %v366
      %v368 = vsel %vm356, %v346, %v349
      %v369 = vsel %vm359, %v355, 1326507024
      %v370 = vsel %vm358, %v352, %v369
      %v371 = vsel %vm357, %v368, %v370
      %v372 = vshll.u32 %v332, 8
      %v373 = vmul.u32.u64.compose %v372, %v371
      %v374 = vextract.low.u32 %v373
      %v375 = vextract.high.u32 %v373
      %v376 = vmul.u32.u64.compose %v372, %v367
      %v377 = vextract.low.u32 %v376
      %v378 = vextract.high.u32 %v376
      %v379 = vmul.u32 %v372, %v363
      %v380 = vadd.s32 %v375, %v377
      %vm381 = vc.u32 %v375, %v377
      %v382 = vadd.s32 %v378, 1
      %v383 = vsel %vm381, %v382, %v378
      %v384 = vadd.s32 %v379, %v383
      %v385 = vadd.s32 %v384, 536870912
      %v386 = vshrl.u32 %v385, 30
      %v387 = vshll.u32 %v386, 30
      %v388 = vsub.s32 %v384, %v387
      %vm389 = vcmp.lt.s32.totalorder %v388, 0
      %v390 = vsub.s32 0, %v388
      %v391 = vsel %vm389, %v390, %v388
      %v392 = vclz %v391
      %v393 = vsub.s32 %v392, 2
      %vm394 = vcmp.gt.s32.totalorder 0, %v393
      %v395 = vsel %vm394, 0, %v393
      %v396 = vsub.s32 32, %v395
      %v397 = vshll.u32 %v388, %v395
      %v398 = vshrl.u32 %v380, %v396
      %v399 = vor.u32 %v397, %v398
      %v400 = vsub.s32 4294967266, %v395
      %v401 = vadd.s32 %v400, 127
      %v402 = vshll.u32 %v401, 23
      %v403 = vor.u32 4788187, %v402
      %v404 = vand.u32 2147483647, %v403
      %v406 = vcvt.s32.f32 %v399
      %v407 = vmul.f32 %v406, %v404
      %v408 = vxor.u32 %v407, 2147483648
      %v409 = vsel %vm326, %v408, %v407
      %v410 = vsub.s32 4, %v386
      %v411 = vsel %vm326, %v410, %v386
      %v412 = vsel %vm325, %v218, %v409
      %v413 = vsel %vm325, 0, %v411
      %v414 = vcosq.f32.pop %v412
      %v415 = vsinq.f32.pop %v412
      %vm416 = vweird.f32 %v218
      %v417 = vand.u32 %v413, 3
      %vm418 = vcmp.lt.s32.totalorder %v417, 2
      %vm419 = vcmp.eq.s32.totalorder %v417, 0
      %v420 = vxor.u32 %v415, 2147483648
      %v421 = vsel %vm419, %v414, %v420
      %vm422 = vcmp.eq.s32.totalorder %v417, 2
      %v423 = vxor.u32 %v414, 2147483648
      %v424 = vsel %vm422, %v423, %v415
      %v425 = vsel %vm418, %v421, %v424
      %v426 = vsel %vm416, nan, %v425
      %v427 = vand.u32 2147483647, %v219
      %vm428 = vcmp.le.f32.partialorder %v427, 0.7853982
      %vm429 = vcmp.lt.s32.totalorder %v219, 0
      %v430 = vand.u32 %v219, 2139095040
      %v431 = vshrl.u32 %v430, 23
      %v432 = vsub.s32 %v431, 127
      %v433 = vand.u32 2147483647, %v219
      %v434 = vand.u32 %v433, 8388607
      %v435 = vor.u32 %v434, 8388608
      %v436 = vsub.s32 0, %v435
      %v437 = vadd.s32 %v432, 1
      %vm438 = vcmp.gt.s32.totalorder %v437, 0
      %v439 = vsel %vm438, %v437, 0
      %v440 = vshrl.u32 %v439, 5
      %v441 = vand.u32 %v439, 31
      %v442 = vsub.s32 32, %v441
      %v443 = vshrl.u32 683565275, %v442
      %v444 = vshll.u32 683565275, %v441
      %v445 = vshrl.u32 2475754826, %v442
      %v446 = vor.u32 %v444, %v445
      %v447 = vshll.u32 2475754826, %v441
      %v448 = vshrl.u32 2131351028, %v442
      %v449 = vor.u32 %v447, %v448
      %v450 = vshll.u32 2131351028, %v441
      %v451 = vshrl.u32 2102212464, %v442
      %v452 = vor.u32 %v450, %v451
      %v453 = vshll.u32 2102212464, %v441
      %v454 = vshrl.u32 920167782, %v442
      %v455 = vor.u32 %v453, %v454
      %v456 = vshll.u32 920167782, %v441
      %v457 = vshrl.u32 1326507024, %v442
      %v458 = vor.u32 %v456, %v457
      %vm459 = vcmp.lt.s32.totalorder %v440, 1
      %vm460 = vcmp.lt.s32.totalorder %v440, 2
      %vm461 = vcmp.lt.s32.totalorder %v440, 3
      %vm462 = vcmp.lt.s32.totalorder %v440, 4
      %v463 = vsel %vm459, %v443, %v446
      %v464 = vsel %vm462, %v452, 2102212464
      %v465 = vsel %vm461, %v449, %v464
      %v466 = vsel %vm460, %v463, %v465
      %v467 = vsel %vm459, %v446, %v449
      %v468 = vsel %vm462, %v455, 920167782
      %v469 = vsel %vm461, %v452, %v468
      %v470 = vsel %vm460, %v467, %v469
      %v471 = vsel %vm459, %v449, %v452
      %v472 = vsel %vm462, %v458, 1326507024
      %v473 = vsel %vm461, %v455, %v472
      %v474 = vsel %vm460, %v471, %v473
      %v475 = vshll.u32 %v435, 8
      %v476 = vmul.u32.u64.compose %v475, %v474
      %v477 = vextract.low.u32 %v476
      %v478 = vextract.high.u32 %v476
      %v479 = vmul.u32.u64.compose %v475, %v470
      %v480 = vextract.low.u32 %v479
      %v481 = vextract.high.u32 %v479
      %v482 = vmul.u32 %v475, %v466
      %v483 = vadd.s32 %v478, %v480
      %vm484 = vc.u32 %v478, %v480
      %v485 = vadd.s32 %v481, 1
      %v486 = vsel %vm484, %v485, %v481
      %v487 = vadd.s32 %v482, %v486
      %v488 = vadd.s32 %v487, 536870912
      %v489 = vshrl.u32 %v488, 30
      %v490 = vshll.u32 %v489, 30
      %v491 = vsub.s32 %v487, %v490
      %vm492 = vcmp.lt.s32.totalorder %v491, 0
      %v493 = vsub.s32 0, %v491
      %v494 = vsel %vm492, %v493, %v491
      %v495 = vclz %v494
      %v496 = vsub.s32 %v495, 2
      %vm497 = vcmp.gt.s32.totalorder 0, %v496
      %v498 = vsel %vm497, 0, %v496
      %v499 = vsub.s32 32, %v498
      %v500 = vshll.u32 %v491, %v498
      %v501 = vshrl.u32 %v483, %v499
      %v502 = vor.u32 %v500, %v501
      %v503 = vsub.s32 4294967266, %v498
      %v504 = vadd.s32 %v503, 127
      %v505 = vshll.u32 %v504, 23
      %v506 = vor.u32 4788187, %v505
      %v507 = vand.u32 2147483647, %v506
      %v509 = vcvt.s32.f32 %v502
      %v510 = vmul.f32 %v509, %v507
      %v511 = vxor.u32 %v510, 2147483648
      %v512 = vsel %vm429, %v511, %v510
      %v513 = vsub.s32 4, %v489
      %v514 = vsel %vm429, %v513, %v489
      %v515 = vsel %vm428, %v219, %v512
      %v516 = vsel %vm428, 0, %v514
      %v517 = vcosq.f32.pop %v515
      %v518 = vsinq.f32.pop %v515
      %vm519 = vweird.f32 %v219
      %v520 = vand.u32 %v516, 3
      %vm521 = vcmp.lt.s32.totalorder %v520, 2
      %vm522 = vcmp.eq.s32.totalorder %v520, 0
      %v523 = vxor.u32 %v518, 2147483648
      %v524 = vsel %vm522, %v517, %v523
      %vm525 = vcmp.eq.s32.totalorder %v520, 2
      %v526 = vxor.u32 %v517, 2147483648
      %v527 = vsel %vm525, %v526, %v518
      %v528 = vsel %vm521, %v524, %v527
      %v529 = vsel %vm519, nan, %v528
      %v530 = vand.u32 2147483647, %v220
      %vm531 = vcmp.le.f32.partialorder %v530, 0.7853982
      %vm532 = vcmp.lt.s32.totalorder %v220, 0
      %v533 = vand.u32 %v220, 2139095040
      %v534 = vshrl.u32 %v533, 23
      %v535 = vsub.s32 %v534, 127
      %v536 = vand.u32 2147483647, %v220
      %v537 = vand.u32 %v536, 8388607
      %v538 = vor.u32 %v537, 8388608
      %v539 = vsub.s32 0, %v538
      %v540 = vadd.s32 %v535, 1
      %vm541 = vcmp.gt.s32.totalorder %v540, 0
      %v542 = vsel %vm541, %v540, 0
      %v543 = vshrl.u32 %v542, 5
      %v544 = vand.u32 %v542, 31
      %v545 = vsub.s32 32, %v544
      %v546 = vshrl.u32 683565275, %v545
      %v547 = vshll.u32 683565275, %v544
      %v548 = vshrl.u32 2475754826, %v545
      %v549 = vor.u32 %v547, %v548
      %v550 = vshll.u32 2475754826, %v544
      %v551 = vshrl.u32 2131351028, %v545
      %v552 = vor.u32 %v550, %v551
      %v553 = vshll.u32 2131351028, %v544
      %v554 = vshrl.u32 2102212464, %v545
      %v555 = vor.u32 %v553, %v554
      %v556 = vshll.u32 2102212464, %v544
      %v557 = vshrl.u32 920167782, %v545
      %v558 = vor.u32 %v556, %v557
      %v559 = vshll.u32 920167782, %v544
      %v560 = vshrl.u32 1326507024, %v545
      %v561 = vor.u32 %v559, %v560
      %vm562 = vcmp.lt.s32.totalorder %v543, 1
      %vm563 = vcmp.lt.s32.totalorder %v543, 2
      %vm564 = vcmp.lt.s32.totalorder %v543, 3
      %vm565 = vcmp.lt.s32.totalorder %v543, 4
      %v566 = vsel %vm562, %v546, %v549
      %v567 = vsel %vm565, %v555, 2102212464
      %v568 = vsel %vm564, %v552, %v567
      %v569 = vsel %vm563, %v566, %v568
      %v570 = vsel %vm562, %v549, %v552
      %v571 = vsel %vm565, %v558, 920167782
      %v572 = vsel %vm564, %v555, %v571
      %v573 = vsel %vm563, %v570, %v572
      %v574 = vsel %vm562, %v552, %v555
      %v575 = vsel %vm565, %v561, 1326507024
      %v576 = vsel %vm564, %v558, %v575
      %v577 = vsel %vm563, %v574, %v576
      %v578 = vshll.u32 %v538, 8
      %v579 = vmul.u32.u64.compose %v578, %v577
      %v580 = vextract.low.u32 %v579
      %v581 = vextract.high.u32 %v579
      %v582 = vmul.u32.u64.compose %v578, %v573
      %v583 = vextract.low.u32 %v582
      %v584 = vextract.high.u32 %v582
      %v585 = vmul.u32 %v578, %v569
      %v586 = vadd.s32 %v581, %v583
      %vm587 = vc.u32 %v581, %v583
      %v588 = vadd.s32 %v584, 1
      %v589 = vsel %vm587, %v588, %v584
      %v590 = vadd.s32 %v585, %v589
      %v591 = vadd.s32 %v590, 536870912
      %v592 = vshrl.u32 %v591, 30
      %v593 = vshll.u32 %v592, 30
      %v594 = vsub.s32 %v590, %v593
      %vm595 = vcmp.lt.s32.totalorder %v594, 0
      %v596 = vsub.s32 0, %v594
      %v597 = vsel %vm595, %v596, %v594
      %v598 = vclz %v597
      %v599 = vsub.s32 %v598, 2
      %vm600 = vcmp.gt.s32.totalorder 0, %v599
      %v601 = vsel %vm600, 0, %v599
      %v602 = vsub.s32 32, %v601
      %v603 = vshll.u32 %v594, %v601
      %v604 = vshrl.u32 %v586, %v602
      %v605 = vor.u32 %v603, %v604
      %v606 = vsub.s32 4294967266, %v601
      %v607 = vadd.s32 %v606, 127
      %v608 = vshll.u32 %v607, 23
      %v609 = vor.u32 4788187, %v608
      %v610 = vand.u32 2147483647, %v609
      %v612 = vcvt.s32.f32 %v605
      %v613 = vmul.f32 %v612, %v610
      %v614 = vxor.u32 %v613, 2147483648
      %v615 = vsel %vm532, %v614, %v613
      %v616 = vsub.s32 4, %v592
      %v617 = vsel %vm532, %v616, %v592
      %v618 = vsel %vm531, %v220, %v615
      %v619 = vsel %vm531, 0, %v617
      %v620 = vcosq.f32.pop %v618
      %v621 = vsinq.f32.pop %v618
      %vm622 = vweird.f32 %v220
      %v623 = vand.u32 %v619, 3
      %vm624 = vcmp.lt.s32.totalorder %v623, 2
      %vm625 = vcmp.eq.s32.totalorder %v623, 0
      %v626 = vxor.u32 %v621, 2147483648
      %v627 = vsel %vm625, %v620, %v626
      %vm628 = vcmp.eq.s32.totalorder %v623, 2
      %v629 = vxor.u32 %v620, 2147483648
      %v630 = vsel %vm628, %v629, %v621
      %v631 = vsel %vm624, %v627, %v630
      %v632 = vsel %vm622, nan, %v631
      %v633 = vand.u32 2147483647, %v217
      %vm634 = vcmp.le.f32.partialorder %v633, 0.7853982
      %vm635 = vcmp.lt.s32.totalorder %v217, 0
      %v636 = vand.u32 %v217, 2139095040
      %v637 = vshrl.u32 %v636, 23
      %v638 = vsub.s32 %v637, 127
      %v639 = vand.u32 2147483647, %v217
      %v640 = vand.u32 %v639, 8388607
      %v641 = vor.u32 %v640, 8388608
      %v642 = vsub.s32 0, %v641
      %v643 = vadd.s32 %v638, 1
      %vm644 = vcmp.gt.s32.totalorder %v643, 0
      %v645 = vsel %vm644, %v643, 0
      %v646 = vshrl.u32 %v645, 5
      %v647 = vand.u32 %v645, 31
      %v648 = vsub.s32 32, %v647
      %v649 = vshrl.u32 683565275, %v648
      %v650 = vshll.u32 683565275, %v647
      %v651 = vshrl.u32 2475754826, %v648
      %v652 = vor.u32 %v650, %v651
      %v653 = vshll.u32 2475754826, %v647
      %v654 = vshrl.u32 2131351028, %v648
      %v655 = vor.u32 %v653, %v654
      %v656 = vshll.u32 2131351028, %v647
      %v657 = vshrl.u32 2102212464, %v648
      %v658 = vor.u32 %v656, %v657
      %v659 = vshll.u32 2102212464, %v647
      %v660 = vshrl.u32 920167782, %v648
      %v661 = vor.u32 %v659, %v660
      %v662 = vshll.u32 920167782, %v647
      %v663 = vshrl.u32 1326507024, %v648
      %v664 = vor.u32 %v662, %v663
      %vm665 = vcmp.lt.s32.totalorder %v646, 1
      %vm666 = vcmp.lt.s32.totalorder %v646, 2
      %vm667 = vcmp.lt.s32.totalorder %v646, 3
      %vm668 = vcmp.lt.s32.totalorder %v646, 4
      %v669 = vsel %vm665, %v649, %v652
      %v670 = vsel %vm668, %v658, 2102212464
      %v671 = vsel %vm667, %v655, %v670
      %v672 = vsel %vm666, %v669, %v671
      %v673 = vsel %vm665, %v652, %v655
      %v674 = vsel %vm668, %v661, 920167782
      %v675 = vsel %vm667, %v658, %v674
      %v676 = vsel %vm666, %v673, %v675
      %v677 = vsel %vm665, %v655, %v658
      %v678 = vsel %vm668, %v664, 1326507024
      %v679 = vsel %vm667, %v661, %v678
      %v680 = vsel %vm666, %v677, %v679
      %v681 = vshll.u32 %v641, 8
      %v682 = vmul.u32.u64.compose %v681, %v680
      %v683 = vextract.low.u32 %v682
      %v684 = vextract.high.u32 %v682
      %v685 = vmul.u32.u64.compose %v681, %v676
      %v686 = vextract.low.u32 %v685
      %v687 = vextract.high.u32 %v685
      %v688 = vmul.u32 %v681, %v672
      %v689 = vadd.s32 %v684, %v686
      %vm690 = vc.u32 %v684, %v686
      %v691 = vadd.s32 %v687, 1
      %v692 = vsel %vm690, %v691, %v687
      %v693 = vadd.s32 %v688, %v692
      %v694 = vadd.s32 %v693, 536870912
      %v695 = vshrl.u32 %v694, 30
      %v696 = vshll.u32 %v695, 30
      %v697 = vsub.s32 %v693, %v696
      %vm698 = vcmp.lt.s32.totalorder %v697, 0
      %v699 = vsub.s32 0, %v697
      %v700 = vsel %vm698, %v699, %v697
      %v701 = vclz %v700
      %v702 = vsub.s32 %v701, 2
      %vm703 = vcmp.gt.s32.totalorder 0, %v702
      %v704 = vsel %vm703, 0, %v702
      %v705 = vsub.s32 32, %v704
      %v706 = vshll.u32 %v697, %v704
      %v707 = vshrl.u32 %v689, %v705
      %v708 = vor.u32 %v706, %v707
      %v709 = vsub.s32 4294967266, %v704
      %v710 = vadd.s32 %v709, 127
      %v711 = vshll.u32 %v710, 23
      %v712 = vor.u32 4788187, %v711
      %v713 = vand.u32 2147483647, %v712
      %v715 = vcvt.s32.f32 %v708
      %v716 = vmul.f32 %v715, %v713
      %v717 = vxor.u32 %v716, 2147483648
      %v718 = vsel %vm635, %v717, %v716
      %v719 = vsub.s32 4, %v695
      %v720 = vsel %vm635, %v719, %v695
      %v721 = vsel %vm634, %v217, %v718
      %v722 = vsel %vm634, 0, %v720
      %v723 = vcosq.f32.pop %v721
      %v724 = vsinq.f32.pop %v721
      %vm725 = vweird.f32 %v217
      %v726 = vadd.s32 %v722, 3
      %v727 = vand.u32 %v726, 3
      %vm728 = vcmp.lt.s32.totalorder %v727, 2
      %vm729 = vcmp.eq.s32.totalorder %v727, 0
      %v730 = vxor.u32 %v724, 2147483648
      %v731 = vsel %vm729, %v723, %v730
      %vm732 = vcmp.eq.s32.totalorder %v727, 2
      %v733 = vxor.u32 %v723, 2147483648
      %v734 = vsel %vm732, %v733, %v724
      %v735 = vsel %vm728, %v731, %v734
      %v736 = vsel %vm725, nan, %v735
      %v737 = vand.u32 2147483647, %v218
      %vm738 = vcmp.le.f32.partialorder %v737, 0.7853982
      %vm739 = vcmp.lt.s32.totalorder %v218, 0
      %v740 = vand.u32 %v218, 2139095040
      %v741 = vshrl.u32 %v740, 23
      %v742 = vsub.s32 %v741, 127
      %v743 = vand.u32 2147483647, %v218
      %v744 = vand.u32 %v743, 8388607
      %v745 = vor.u32 %v744, 8388608
      %v746 = vsub.s32 0, %v745
      %v747 = vadd.s32 %v742, 1
      %vm748 = vcmp.gt.s32.totalorder %v747, 0
      %v749 = vsel %vm748, %v747, 0
      %v750 = vshrl.u32 %v749, 5
      %v751 = vand.u32 %v749, 31
      %v752 = vsub.s32 32, %v751
      %v753 = vshrl.u32 683565275, %v752
      %v754 = vshll.u32 683565275, %v751
      %v755 = vshrl.u32 2475754826, %v752
      %v756 = vor.u32 %v754, %v755
      %v757 = vshll.u32 2475754826, %v751
      %v758 = vshrl.u32 2131351028, %v752
      %v759 = vor.u32 %v757, %v758
      %v760 = vshll.u32 2131351028, %v751
      %v761 = vshrl.u32 2102212464, %v752
      %v762 = vor.u32 %v760, %v761
      %v763 = vshll.u32 2102212464, %v751
      %v764 = vshrl.u32 920167782, %v752
      %v765 = vor.u32 %v763, %v764
      %v766 = vshll.u32 920167782, %v751
      %v767 = vshrl.u32 1326507024, %v752
      %v768 = vor.u32 %v766, %v767
      %vm769 = vcmp.lt.s32.totalorder %v750, 1
      %vm770 = vcmp.lt.s32.totalorder %v750, 2
      %vm771 = vcmp.lt.s32.totalorder %v750, 3
      %vm772 = vcmp.lt.s32.totalorder %v750, 4
      %v773 = vsel %vm769, %v753, %v756
      %v774 = vsel %vm772, %v762, 2102212464
      %v775 = vsel %vm771, %v759, %v774
      %v776 = vsel %vm770, %v773, %v775
      %v777 = vsel %vm769, %v756, %v759
      %v778 = vsel %vm772, %v765, 920167782
      %v779 = vsel %vm771, %v762, %v778
      %v780 = vsel %vm770, %v777, %v779
      %v781 = vsel %vm769, %v759, %v762
      %v782 = vsel %vm772, %v768, 1326507024
      %v783 = vsel %vm771, %v765, %v782
      %v784 = vsel %vm770, %v781, %v783
      %v785 = vshll.u32 %v745, 8
      %v786 = vmul.u32.u64.compose %v785, %v784
      %v787 = vextract.low.u32 %v786
      %v788 = vextract.high.u32 %v786
      %v789 = vmul.u32.u64.compose %v785, %v780
      %v790 = vextract.low.u32 %v789
      %v791 = vextract.high.u32 %v789
      %v792 = vmul.u32 %v785, %v776
      %v793 = vadd.s32 %v788, %v790
      %vm794 = vc.u32 %v788, %v790
      %v795 = vadd.s32 %v791, 1
      %v796 = vsel %vm794, %v795, %v791
      %v797 = vadd.s32 %v792, %v796
      %v798 = vadd.s32 %v797, 536870912
      %v799 = vshrl.u32 %v798, 30
      %v800 = vshll.u32 %v799, 30
      %v801 = vsub.s32 %v797, %v800
      %vm802 = vcmp.lt.s32.totalorder %v801, 0
      %v803 = vsub.s32 0, %v801
      %v804 = vsel %vm802, %v803, %v801
      %v805 = vclz %v804
      %v806 = vsub.s32 %v805, 2
      %vm807 = vcmp.gt.s32.totalorder 0, %v806
      %v808 = vsel %vm807, 0, %v806
      %v809 = vsub.s32 32, %v808
      %v810 = vshll.u32 %v801, %v808
      %v811 = vshrl.u32 %v793, %v809
      %v812 = vor.u32 %v810, %v811
      %v813 = vsub.s32 4294967266, %v808
      %v814 = vadd.s32 %v813, 127
      %v815 = vshll.u32 %v814, 23
      %v816 = vor.u32 4788187, %v815
      %v817 = vand.u32 2147483647, %v816
      %v819 = vcvt.s32.f32 %v812
      %v820 = vmul.f32 %v819, %v817
      %v821 = vxor.u32 %v820, 2147483648
      %v822 = vsel %vm739, %v821, %v820
      %v823 = vsub.s32 4, %v799
      %v824 = vsel %vm739, %v823, %v799
      %v825 = vsel %vm738, %v218, %v822
      %v826 = vsel %vm738, 0, %v824
      %v827 = vcosq.f32.pop %v825
      %v828 = vsinq.f32.pop %v825
      %vm829 = vweird.f32 %v218
      %v830 = vadd.s32 %v826, 3
      %v831 = vand.u32 %v830, 3
      %vm832 = vcmp.lt.s32.totalorder %v831, 2
      %vm833 = vcmp.eq.s32.totalorder %v831, 0
      %v834 = vxor.u32 %v828, 2147483648
      %v835 = vsel %vm833, %v827, %v834
      %vm836 = vcmp.eq.s32.totalorder %v831, 2
      %v837 = vxor.u32 %v827, 2147483648
      %v838 = vsel %vm836, %v837, %v828
      %v839 = vsel %vm832, %v835, %v838
      %v840 = vsel %vm829, nan, %v839
      %v841 = vand.u32 2147483647, %v219
      %vm842 = vcmp.le.f32.partialorder %v841, 0.7853982
      %vm843 = vcmp.lt.s32.totalorder %v219, 0
      %v844 = vand.u32 %v219, 2139095040
      %v845 = vshrl.u32 %v844, 23
      %v846 = vsub.s32 %v845, 127
      %v847 = vand.u32 2147483647, %v219
      %v848 = vand.u32 %v847, 8388607
      %v849 = vor.u32 %v848, 8388608
      %v850 = vsub.s32 0, %v849
      %v851 = vadd.s32 %v846, 1
      %vm852 = vcmp.gt.s32.totalorder %v851, 0
      %v853 = vsel %vm852, %v851, 0
      %v854 = vshrl.u32 %v853, 5
      %v855 = vand.u32 %v853, 31
      %v856 = vsub.s32 32, %v855
      %v857 = vshrl.u32 683565275, %v856
      %v858 = vshll.u32 683565275, %v855
      %v859 = vshrl.u32 2475754826, %v856
      %v860 = vor.u32 %v858, %v859
      %v861 = vshll.u32 2475754826, %v855
      %v862 = vshrl.u32 2131351028, %v856
      %v863 = vor.u32 %v861, %v862
      %v864 = vshll.u32 2131351028, %v855
      %v865 = vshrl.u32 2102212464, %v856
      %v866 = vor.u32 %v864, %v865
      %v867 = vshll.u32 2102212464, %v855
      %v868 = vshrl.u32 920167782, %v856
      %v869 = vor.u32 %v867, %v868
      %v870 = vshll.u32 920167782, %v855
      %v871 = vshrl.u32 1326507024, %v856
      %v872 = vor.u32 %v870, %v871
      %vm873 = vcmp.lt.s32.totalorder %v854, 1
      %vm874 = vcmp.lt.s32.totalorder %v854, 2
      %vm875 = vcmp.lt.s32.totalorder %v854, 3
      %vm876 = vcmp.lt.s32.totalorder %v854, 4
      %v877 = vsel %vm873, %v857, %v860
      %v878 = vsel %vm876, %v866, 2102212464
      %v879 = vsel %vm875, %v863, %v878
      %v880 = vsel %vm874, %v877, %v879
      %v881 = vsel %vm873, %v860, %v863
      %v882 = vsel %vm876, %v869, 920167782
      %v883 = vsel %vm875, %v866, %v882
      %v884 = vsel %vm874, %v881, %v883
      %v885 = vsel %vm873, %v863, %v866
      %v886 = vsel %vm876, %v872, 1326507024
      %v887 = vsel %vm875, %v869, %v886
      %v888 = vsel %vm874, %v885, %v887
      %v889 = vshll.u32 %v849, 8
      %v890 = vmul.u32.u64.compose %v889, %v888
      %v891 = vextract.low.u32 %v890
      %v892 = vextract.high.u32 %v890
      %v893 = vmul.u32.u64.compose %v889, %v884
      %v894 = vextract.low.u32 %v893
      %v895 = vextract.high.u32 %v893
      %v896 = vmul.u32 %v889, %v880
      %v897 = vadd.s32 %v892, %v894
      %vm898 = vc.u32 %v892, %v894
      %v899 = vadd.s32 %v895, 1
      %v900 = vsel %vm898, %v899, %v895
      %v901 = vadd.s32 %v896, %v900
      %v902 = vadd.s32 %v901, 536870912
      %v903 = vshrl.u32 %v902, 30
      %v904 = vshll.u32 %v903, 30
      %v905 = vsub.s32 %v901, %v904
      %vm906 = vcmp.lt.s32.totalorder %v905, 0
      %v907 = vsub.s32 0, %v905
      %v908 = vsel %vm906, %v907, %v905
      %v909 = vclz %v908
      %v910 = vsub.s32 %v909, 2
      %vm911 = vcmp.gt.s32.totalorder 0, %v910
      %v912 = vsel %vm911, 0, %v910
      %v913 = vsub.s32 32, %v912
      %v914 = vshll.u32 %v905, %v912
      %v915 = vshrl.u32 %v897, %v913
      %v916 = vor.u32 %v914, %v915
      %v917 = vsub.s32 4294967266, %v912
      %v918 = vadd.s32 %v917, 127
      %v919 = vshll.u32 %v918, 23
      %v920 = vor.u32 4788187, %v919
      %v921 = vand.u32 2147483647, %v920
      %v923 = vcvt.s32.f32 %v916
      %v924 = vmul.f32 %v923, %v921
      %v925 = vxor.u32 %v924, 2147483648
      %v926 = vsel %vm843, %v925, %v924
      %v927 = vsub.s32 4, %v903
      %v928 = vsel %vm843, %v927, %v903
      %v929 = vsel %vm842, %v219, %v926
      %v930 = vsel %vm842, 0, %v928
      %v931 = vcosq.f32.pop %v929
      %v932 = vsinq.f32.pop %v929
      %vm933 = vweird.f32 %v219
      %v934 = vadd.s32 %v930, 3
      %v935 = vand.u32 %v934, 3
      %vm936 = vcmp.lt.s32.totalorder %v935, 2
      %vm937 = vcmp.eq.s32.totalorder %v935, 0
      %v938 = vxor.u32 %v932, 2147483648
      %v939 = vsel %vm937, %v931, %v938
      %vm940 = vcmp.eq.s32.totalorder %v935, 2
      %v941 = vxor.u32 %v931, 2147483648
      %v942 = vsel %vm940, %v941, %v932
      %v943 = vsel %vm936, %v939, %v942
      %v944 = vsel %vm933, nan, %v943
      %v945 = vand.u32 2147483647, %v220
      %vm946 = vcmp.le.f32.partialorder %v945, 0.7853982
      %vm947 = vcmp.lt.s32.totalorder %v220, 0
      %v948 = vand.u32 %v220, 2139095040
      %v949 = vshrl.u32 %v948, 23
      %v950 = vsub.s32 %v949, 127
      %v951 = vand.u32 2147483647, %v220
      %v952 = vand.u32 %v951, 8388607
      %v953 = vor.u32 %v952, 8388608
      %v954 = vsub.s32 0, %v953
      %v955 = vadd.s32 %v950, 1
      %vm956 = vcmp.gt.s32.totalorder %v955, 0
      %v957 = vsel %vm956, %v955, 0
      %v958 = vshrl.u32 %v957, 5
      %v959 = vand.u32 %v957, 31
      %v960 = vsub.s32 32, %v959
      %v961 = vshrl.u32 683565275, %v960
      %v962 = vshll.u32 683565275, %v959
      %v963 = vshrl.u32 2475754826, %v960
      %v964 = vor.u32 %v962, %v963
      %v965 = vshll.u32 2475754826, %v959
      %v966 = vshrl.u32 2131351028, %v960
      %v967 = vor.u32 %v965, %v966
      %v968 = vshll.u32 2131351028, %v959
      %v969 = vshrl.u32 2102212464, %v960
      %v970 = vor.u32 %v968, %v969
      %v971 = vshll.u32 2102212464, %v959
      %v972 = vshrl.u32 920167782, %v960
      %v973 = vor.u32 %v971, %v972
      %v974 = vshll.u32 920167782, %v959
      %v975 = vshrl.u32 1326507024, %v960
      %v976 = vor.u32 %v974, %v975
      %vm977 = vcmp.lt.s32.totalorder %v958, 1
      %vm978 = vcmp.lt.s32.totalorder %v958, 2
      %vm979 = vcmp.lt.s32.totalorder %v958, 3
      %vm980 = vcmp.lt.s32.totalorder %v958, 4
      %v981 = vsel %vm977, %v961, %v964
      %v982 = vsel %vm980, %v970, 2102212464
      %v983 = vsel %vm979, %v967, %v982
      %v984 = vsel %vm978, %v981, %v983
      %v985 = vsel %vm977, %v964, %v967
      %v986 = vsel %vm980, %v973, 920167782
      %v987 = vsel %vm979, %v970, %v986
      %v988 = vsel %vm978, %v985, %v987
      %v989 = vsel %vm977, %v967, %v970
      %v990 = vsel %vm980, %v976, 1326507024
      %v991 = vsel %vm979, %v973, %v990
      %v992 = vsel %vm978, %v989, %v991
      %v993 = vshll.u32 %v953, 8
      %v994 = vmul.u32.u64.compose %v993, %v992
      %v995 = vextract.low.u32 %v994
      %v996 = vextract.high.u32 %v994
      %v997 = vmul.u32.u64.compose %v993, %v988
      %v998 = vextract.low.u32 %v997
      %v999 = vextract.high.u32 %v997
      %v1000 = vmul.u32 %v993, %v984
      %v1001 = vadd.s32 %v996, %v998
      %vm1002 = vc.u32 %v996, %v998
      %v1003 = vadd.s32 %v999, 1
      %v1004 = vsel %vm1002, %v1003, %v999
      %v1005 = vadd.s32 %v1000, %v1004
      %v1006 = vadd.s32 %v1005, 536870912
      %v1007 = vshrl.u32 %v1006, 30
      %v1008 = vshll.u32 %v1007, 30
      %v1009 = vsub.s32 %v1005, %v1008
      %vm1010 = vcmp.lt.s32.totalorder %v1009, 0
      %v1011 = vsub.s32 0, %v1009
      %v1012 = vsel %vm1010, %v1011, %v1009
      %v1013 = vclz %v1012
      %v1014 = vsub.s32 %v1013, 2
      %vm1015 = vcmp.gt.s32.totalorder 0, %v1014
      %v1016 = vsel %vm1015, 0, %v1014
      %v1017 = vsub.s32 32, %v1016
      %v1018 = vshll.u32 %v1009, %v1016
      %v1019 = vshrl.u32 %v1001, %v1017
      %v1020 = vor.u32 %v1018, %v1019
      %v1021 = vsub.s32 4294967266, %v1016
      %v1022 = vadd.s32 %v1021, 127
      %v1023 = vshll.u32 %v1022, 23
      %v1024 = vor.u32 4788187, %v1023
      %v1025 = vand.u32 2147483647, %v1024
      %v1027 = vcvt.s32.f32 %v1020
      %v1028 = vmul.f32 %v1027, %v1025
      %v1029 = vxor.u32 %v1028, 2147483648
      %v1030 = vsel %vm947, %v1029, %v1028
      %v1031 = vsub.s32 4, %v1007
      %v1032 = vsel %vm947, %v1031, %v1007
      %v1033 = vsel %vm946, %v220, %v1030
      %v1034 = vsel %vm946, 0, %v1032
      %v1035 = vcosq.f32.pop %v1033
      %v1036 = vsinq.f32.pop %v1033
      %vm1037 = vweird.f32 %v220
      %v1038 = vadd.s32 %v1034, 3
      %v1039 = vand.u32 %v1038, 3
      %vm1040 = vcmp.lt.s32.totalorder %v1039, 2
      %vm1041 = vcmp.eq.s32.totalorder %v1039, 0
      %v1042 = vxor.u32 %v1036, 2147483648
      %v1043 = vsel %vm1041, %v1035, %v1042
      %vm1044 = vcmp.eq.s32.totalorder %v1039, 2
      %v1045 = vxor.u32 %v1035, 2147483648
      %v1046 = vsel %vm1044, %v1045, %v1036
      %v1047 = vsel %vm1040, %v1043, %v1046
      %v1048 = vsel %vm1037, nan, %v1047
      %v1049 = vmul.f32 %v323, 2.0
      %v1050 = vmul.f32 %v426, 2.0
      %v1051 = vmul.f32 %v529, 2.0
      %v1052 = vmul.f32 %v632, 2.0
      %v1053 = vmul.f32 %v1049, %v323
      %v1054 = vmul.f32 %v1050, %v426
      %v1055 = vmul.f32 %v1051, %v529
      %v1056 = vmul.f32 %v1052, %v632
      %v1057 = vsub.f32 %v1053, 1.0
      %v1058 = vsub.f32 %v1054, 1.0
      %v1059 = vsub.f32 %v1055, 1.0
      %v1060 = vsub.f32 %v1056, 1.0
      %v1061 = vmul.f32 %v736, 2.0
      %v1062 = vmul.f32 %v840, 2.0
      %v1063 = vmul.f32 %v944, 2.0
      %v1064 = vmul.f32 %v1048, 2.0
      %v1065 = vmul.f32 %v1061, %v323
      %v1066 = vmul.f32 %v1062, %v426
      %v1067 = vmul.f32 %v1063, %v529
      %v1068 = vmul.f32 %v1064, %v632
      %v1069 = vmul.f32 %v736, -0.63661975
      %v1070 = vmul.f32 %v840, -0.63661975
      %v1071 = vmul.f32 %v944, -0.63661975
      %v1072 = vmul.f32 %v1048, -0.63661975
      %v1073 = vld [vmem:[%s193] sm:$0xff]
      %v1074 = vld [vmem:[%s193 + $0x8] sm:$0xff]
      %v1075 = vld [vmem:[%s193 + $0x10] sm:$0xff]
      %v1076 = vld [vmem:[%s193 + $0x18] sm:$0xff]
      %v1077 = vmul.f32 %v1069, %v1073
      %v1078 = vmul.f32 %v1070, %v1074
      %v1079 = vmul.f32 %v1071, %v1075
      %v1080 = vmul.f32 %v1072, %v1076
      %v1081 = vadd.f32 %v1077, 0.0
      %v1082 = vadd.f32 %v1078, 0.0
      %v1083 = vadd.f32 %v1079, 0.0
      %v1084 = vadd.f32 %v1080, 0.0
      %v1085 = vmul.f32 %v323, 0.63661975
      %v1086 = vmul.f32 %v426, 0.63661975
      %v1087 = vmul.f32 %v529, 0.63661975
      %v1088 = vmul.f32 %v632, 0.63661975
      %s1089 = scalar_lea.vmem %s193, 32
      %v1090 = vld [vmem:[%s1089] sm:$0xff]
      %v1091 = vld [vmem:[%s1089 + $0x8] sm:$0xff]
      %v1092 = vld [vmem:[%s1089 + $0x10] sm:$0xff]
      %v1093 = vld [vmem:[%s1089 + $0x18] sm:$0xff]
      %v1094 = vmul.f32 %v1085, %v1090
      %v1095 = vmul.f32 %v1086, %v1091
      %v1096 = vmul.f32 %v1087, %v1092
      %v1097 = vmul.f32 %v1088, %v1093
      %v1098 = vadd.f32 %v1081, %v1094
      %v1099 = vadd.f32 %v1082, %v1095
      %v1100 = vadd.f32 %v1083, %v1096
      %v1101 = vadd.f32 %v1084, %v1097
      %v1102 = vmul.f32 %v323, %v1057
      %v1103 = vmul.f32 %v426, %v1058
      %v1104 = vmul.f32 %v529, %v1059
      %v1105 = vmul.f32 %v632, %v1060
      %v1106 = vmul.f32 %v736, %v1065
      %v1107 = vmul.f32 %v840, %v1066
      %v1108 = vmul.f32 %v944, %v1067
      %v1109 = vmul.f32 %v1048, %v1068
      %v1110 = vsub.f32 %v1102, %v1106
      %v1111 = vsub.f32 %v1103, %v1107
      %v1112 = vsub.f32 %v1104, %v1108
      %v1113 = vsub.f32 %v1105, %v1109
      %v1114 = vmul.f32 %v736, %v1057
      %v1115 = vmul.f32 %v840, %v1058
      %v1116 = vmul.f32 %v944, %v1059
      %v1117 = vmul.f32 %v1048, %v1060
      %v1118 = vmul.f32 %v323, %v1065
      %v1119 = vmul.f32 %v426, %v1066
      %v1120 = vmul.f32 %v529, %v1067
      %v1121 = vmul.f32 %v632, %v1068
      %v1122 = vadd.f32 %v1114, %v1118
      %v1123 = vadd.f32 %v1115, %v1119
      %v1124 = vadd.f32 %v1116, %v1120
      %v1125 = vadd.f32 %v1117, %v1121
      %v1126 = vmul.f32 %v1122, -0.21220659
      %v1127 = vmul.f32 %v1123, -0.21220659
      %v1128 = vmul.f32 %v1124, -0.21220659
      %v1129 = vmul.f32 %v1125, -0.21220659
      %s1130 = scalar_lea.vmem %s193, 64
      %v1131 = vld [vmem:[%s1130] sm:$0xff]
      %v1132 = vld [vmem:[%s1130 + $0x8] sm:$0xff]
      %v1133 = vld [vmem:[%s1130 + $0x10] sm:$0xff]
      %v1134 = vld [vmem:[%s1130 + $0x18] sm:$0xff]
      %v1135 = vmul.f32 %v1126, %v1131
      %v1136 = vmul.f32 %v1127, %v1132
      %v1137 = vmul.f32 %v1128, %v1133
      %v1138 = vmul.f32 %v1129, %v1134
      %v1139 = vadd.f32 %v1098, %v1135
      %v1140 = vadd.f32 %v1099, %v1136
      %v1141 = vadd.f32 %v1100, %v1137
      %v1142 = vadd.f32 %v1101, %v1138
      %v1143 = vmul.f32 %v1110, 0.21220659
      %v1144 = vmul.f32 %v1111, 0.21220659
      %v1145 = vmul.f32 %v1112, 0.21220659
      %v1146 = vmul.f32 %v1113, 0.21220659
      %s1147 = scalar_lea.vmem %s193, 96
      %v1148 = vld [vmem:[%s1147] sm:$0xff]
      %v1149 = vld [vmem:[%s1147 + $0x8] sm:$0xff]
      %v1150 = vld [vmem:[%s1147 + $0x10] sm:$0xff]
      %v1151 = vld [vmem:[%s1147 + $0x18] sm:$0xff]
      %v1152 = vmul.f32 %v1143, %v1148
      %v1153 = vmul.f32 %v1144, %v1149
      %v1154 = vmul.f32 %v1145, %v1150
      %v1155 = vmul.f32 %v1146, %v1151
      %v1156 = vadd.f32 %v1139, %v1152
      %v1157 = vadd.f32 %v1140, %v1153
      %v1158 = vadd.f32 %v1141, %v1154
      %v1159 = vadd.f32 %v1142, %v1155
      %v1160 = vmul.f32 %v1110, %v1057
      %v1161 = vmul.f32 %v1111, %v1058
      %v1162 = vmul.f32 %v1112, %v1059
      %v1163 = vmul.f32 %v1113, %v1060
      %v1164 = vmul.f32 %v1122, %v1065
      %v1165 = vmul.f32 %v1123, %v1066
      %v1166 = vmul.f32 %v1124, %v1067
      %v1167 = vmul.f32 %v1125, %v1068
      %v1168 = vsub.f32 %v1160, %v1164
      %v1169 = vsub.f32 %v1161, %v1165
      %v1170 = vsub.f32 %v1162, %v1166
      %v1171 = vsub.f32 %v1163, %v1167
      %v1172 = vmul.f32 %v1122, %v1057
      %v1173 = vmul.f32 %v1123, %v1058
      %v1174 = vmul.f32 %v1124, %v1059
      %v1175 = vmul.f32 %v1125, %v1060
      %v1176 = vmul.f32 %v1110, %v1065
      %v1177 = vmul.f32 %v1111, %v1066
      %v1178 = vmul.f32 %v1112, %v1067
      %v1179 = vmul.f32 %v1113, %v1068
      %v1180 = vadd.f32 %v1172, %v1176
      %v1181 = vadd.f32 %v1173, %v1177
      %v1182 = vadd.f32 %v1174, %v1178
      %v1183 = vadd.f32 %v1175, %v1179
      %v1184 = vmul.f32 %v1180, -0.12732396
      %v1185 = vmul.f32 %v1181, -0.12732396
      %v1186 = vmul.f32 %v1182, -0.12732396
      %v1187 = vmul.f32 %v1183, -0.12732396
      %s1188 = scalar_lea.vmem %s193, 128
      %v1189 = vld [vmem:[%s1188] sm:$0xff]
      %v1190 = vld [vmem:[%s1188 + $0x8] sm:$0xff]
      %v1191 = vld [vmem:[%s1188 + $0x10] sm:$0xff]
      %v1192 = vld [vmem:[%s1188 + $0x18] sm:$0xff]
      %v1193 = vmul.f32 %v1184, %v1189
      %v1194 = vmul.f32 %v1185, %v1190
      %v1195 = vmul.f32 %v1186, %v1191
      %v1196 = vmul.f32 %v1187, %v1192
      %v1197 = vadd.f32 %v1156, %v1193
      %v1198 = vadd.f32 %v1157, %v1194
      %v1199 = vadd.f32 %v1158, %v1195
      %v1200 = vadd.f32 %v1159, %v1196
      %v1201 = vmul.f32 %v1168, 0.12732396
      %v1202 = vmul.f32 %v1169, 0.12732396
      %v1203 = vmul.f32 %v1170, 0.12732396
      %v1204 = vmul.f32 %v1171, 0.12732396
      %s1205 = scalar_lea.vmem %s193, 160
      %v1206 = vld [vmem:[%s1205] sm:$0xff]
      %v1207 = vld [vmem:[%s1205 + $0x8] sm:$0xff]
      %v1208 = vld [vmem:[%s1205 + $0x10] sm:$0xff]
      %v1209 = vld [vmem:[%s1205 + $0x18] sm:$0xff]
      %v1210 = vmul.f32 %v1201, %v1206
      %v1211 = vmul.f32 %v1202, %v1207
      %v1212 = vmul.f32 %v1203, %v1208
      %v1213 = vmul.f32 %v1204, %v1209
      %v1214 = vadd.f32 %v1197, %v1210
      %v1215 = vadd.f32 %v1198, %v1211
      %v1216 = vadd.f32 %v1199, %v1212
      %v1217 = vadd.f32 %v1200, %v1213
      %v1218 = vmul.f32 %v1168, %v1057
      %v1219 = vmul.f32 %v1169, %v1058
      %v1220 = vmul.f32 %v1170, %v1059
      %v1221 = vmul.f32 %v1171, %v1060
      %v1222 = vmul.f32 %v1180, %v1065
      %v1223 = vmul.f32 %v1181, %v1066
      %v1224 = vmul.f32 %v1182, %v1067
      %v1225 = vmul.f32 %v1183, %v1068
      %v1226 = vsub.f32 %v1218, %v1222
      %v1227 = vsub.f32 %v1219, %v1223
      %v1228 = vsub.f32 %v1220, %v1224
      %v1229 = vsub.f32 %v1221, %v1225
      %v1230 = vmul.f32 %v1180, %v1057
      %v1231 = vmul.f32 %v1181, %v1058
      %v1232 = vmul.f32 %v1182, %v1059
      %v1233 = vmul.f32 %v1183, %v1060
      %v1234 = vmul.f32 %v1168, %v1065
      %v1235 = vmul.f32 %v1169, %v1066
      %v1236 = vmul.f32 %v1170, %v1067
      %v1237 = vmul.f32 %v1171, %v1068
      %v1238 = vadd.f32 %v1230, %v1234
      %v1239 = vadd.f32 %v1231, %v1235
      %v1240 = vadd.f32 %v1232, %v1236
      %v1241 = vadd.f32 %v1233, %v1237
      %v1242 = vmul.f32 %v1238, -0.09094568
      %v1243 = vmul.f32 %v1239, -0.09094568
      %v1244 = vmul.f32 %v1240, -0.09094568
      %v1245 = vmul.f32 %v1241, -0.09094568
      %s1246 = scalar_lea.vmem %s193, 192
      %v1247 = vld [vmem:[%s1246] sm:$0xff]
      %v1248 = vld [vmem:[%s1246 + $0x8] sm:$0xff]
      %v1249 = vld [vmem:[%s1246 + $0x10] sm:$0xff]
      %v1250 = vld [vmem:[%s1246 + $0x18] sm:$0xff]
      %v1251 = vmul.f32 %v1242, %v1247
      %v1252 = vmul.f32 %v1243, %v1248
      %v1253 = vmul.f32 %v1244, %v1249
      %v1254 = vmul.f32 %v1245, %v1250
      %v1255 = vadd.f32 %v1214, %v1251
      %v1256 = vadd.f32 %v1215, %v1252
      %v1257 = vadd.f32 %v1216, %v1253
      %v1258 = vadd.f32 %v1217, %v1254
      %v1259 = vmul.f32 %v1226, 0.09094568
      %v1260 = vmul.f32 %v1227, 0.09094568
      %v1261 = vmul.f32 %v1228, 0.09094568
      %v1262 = vmul.f32 %v1229, 0.09094568
      %s1263 = scalar_lea.vmem %s193, 224
      %v1264 = vld [vmem:[%s1263] sm:$0xff]
      %v1265 = vld [vmem:[%s1263 + $0x8] sm:$0xff]
      %v1266 = vld [vmem:[%s1263 + $0x10] sm:$0xff]
      %v1267 = vld [vmem:[%s1263 + $0x18] sm:$0xff]
      %v1268 = vmul.f32 %v1259, %v1264
      %v1269 = vmul.f32 %v1260, %v1265
      %v1270 = vmul.f32 %v1261, %v1266
      %v1271 = vmul.f32 %v1262, %v1267
      %v1272 = vadd.f32 %v1255, %v1268
      %v1273 = vadd.f32 %v1256, %v1269
      %v1274 = vadd.f32 %v1257, %v1270
      %v1275 = vadd.f32 %v1258, %v1271
      %v1276 = vmax.f32 %v1272, -0.44587094
      %v1277 = vmax.f32 %v1273, -0.44587094
      %v1278 = vmax.f32 %v1274, -0.44587094
      %v1279 = vmax.f32 %v1275, -0.44587094
      %v1280 = vmin.f32 %v1276, 0.44587094
      %v1281 = vmin.f32 %v1277, 0.44587094
      %v1282 = vmin.f32 %v1278, 0.44587094
      %v1283 = vmin.f32 %v1279, 0.44587094
      %v1284 = vmul.f32 %v1280, 2.2428014
      %v1285 = vmul.f32 %v1281, 2.2428014
      %v1286 = vmul.f32 %v1282, 2.2428014
      %v1287 = vmul.f32 %v1283, 2.2428014
      %v1288 = vadd.f32 %v1284, 1.0
      %v1289 = vadd.f32 %v1285, 1.0
      %v1290 = vadd.f32 %v1286, 1.0
      %v1291 = vadd.f32 %v1287, 1.0
      %v1292 = vmul.f32 %v1288, 0.5
      %v1293 = vmul.f32 %v1289, 0.5
      %v1294 = vmul.f32 %v1290, 0.5
      %v1295 = vmul.f32 %v1291, 0.5
      %1296 = vst [vmem:[%s203] sm:$0xff] %v1292
      %1297 = vst [vmem:[%s203 + $0x8] sm:$0xff] %v1293
      %1298 = vst [vmem:[%s203 + $0x10] sm:$0xff] %v1294
      %1299 = vst [vmem:[%s203 + $0x18] sm:$0xff] %v1295
      %v1300 = vsub.f32 %v204, %v209
      %v1301 = vsub.f32 %v205, %v210
      %v1302 = vsub.f32 %v206, %v211
      %v1303 = vsub.f32 %v207, %v212
      %v1304 = vmax.f32 %v1300, 0.0
      %v1305 = vmax.f32 %v1301, 0.0
      %v1306 = vmax.f32 %v1302, 0.0
      %v1307 = vmax.f32 %v1303, 0.0
      %vm1308 = vcmp.gt.f32.partialorder %v1304, 0.001
      %vm1309 = vcmp.gt.f32.partialorder %v1305, 0.001
      %vm1310 = vcmp.gt.f32.partialorder %v1306, 0.001
      %vm1311 = vcmp.gt.f32.partialorder %v1307, 0.001
      %v1312 = vsel %vm1308, 0.0, 1.0
      %v1313 = vsel %vm1309, 0.0, 1.0
      %v1314 = vsel %vm1310, 0.0, 1.0
      %v1315 = vsel %vm1311, 0.0, 1.0
      %1316 = vst [vmem:[%s198] sm:$0xff] %v1312
      %1317 = vst [vmem:[%s198 + $0x8] sm:$0xff] %v1313
      %1318 = vst [vmem:[%s198 + $0x10] sm:$0xff] %v1314
      %1319 = vst [vmem:[%s198 + $0x18] sm:$0xff] %v1315
      %p1320 = scmp.lt.s32.totalorder %s15, 1
      %s1321 = scalar_select %p1320, %s15, 1
      %s1322 = smul.addr %s1321, 4
      %s1323 = smul.addr %s1322, 8
      %s1324 = scalar_lea.vmem %s2, %s1323
      %p1325 = scmp.lt.s32.totalorder %s15, 1
      %s1326 = scalar_select %p1325, %s15, 1
      %s1327 = smul.addr %s1326, 4
      %s1328 = smul.addr %s1327, 8
      %s1329 = scalar_lea.vmem %s3, %s1328
      // Predicated region
      $region29: #{_forward_impl.5} parent=27 // pred_check
        %p1330 = pneg %p85
      $region30: #{_forward_impl.5} parent=27 // pred_check_branch
        %1332 = sbr.rel (%p1330) target = $region32
      $region31: #{_forward_impl.5} parent=27 // pred_region
        _
      $region32: #{_forward_impl.5} parent=27 // pred_fallthru
        _
      // Predicated region
      $region33: #{_forward_impl.5} parent=27 // pred_check
        %p1333 = pneg %p111
      $region34: #{_forward_impl.5} parent=27 // pred_check_branch
        %1335 = sbr.rel (%p1333) target = $region36
      $region35: #{_forward_impl.5} parent=27 // pred_region
        _
      $region36: #{_forward_impl.5} parent=27 // pred_fallthru
        _
    $region28: #{_forward_impl.5} parent=5 // pred_fallthru
      _
    %p1336 = scmp.le.s32.totalorder 2, %s10
    // Predicated region
    $region37: #{_forward_impl.5} parent=5 // pred_check
      %p1337 = pneg %p1336
    $region38: #{_forward_impl.5} parent=5 // pred_check_branch
      %1339 = sbr.rel (%p1337) target = $region40
    $region39: #{_forward_impl.5} parent=5 // pred_region
      %s1340 = ssub.s32 %s10, 2
      // Predicated region
      $region41: #{_forward_impl.5} parent=39 // pred_check
        %p1341 = pneg %p91
      $region42: #{_forward_impl.5} parent=39 // pred_check_branch
        %1343 = sbr.rel (%p1341) target = $region44
      $region43: #{_forward_impl.5} parent=39 // pred_region
        %p1344 = scmp.lt.s32.totalorder %s16, 1
        %s1345 = scalar_select %p1344, %s16, 1
        %s1346 = smul.addr %s1345, 4
        %s1347 = smul.addr %s1346, 8
        %s1348 = scalar_lea.vmem %s2, %s1347
      $region44: #{_forward_impl.5} parent=39 // pred_fallthru
        _
      // Predicated region
      $region45: #{_forward_impl.5} parent=39 // pred_check
        %p1349 = pneg %p117
      $region46: #{_forward_impl.5} parent=39 // pred_check_branch
        %1351 = sbr.rel (%p1349) target = $region48
      $region47: #{_forward_impl.5} parent=39 // pred_region
        %p1352 = scmp.lt.s32.totalorder %s16, 1
        %s1353 = scalar_select %p1352, %s16, 1
        %s1354 = smul.addr %s1353, 4
        %s1355 = smul.addr %s1354, 8
        %s1356 = scalar_lea.vmem %s3, %s1355
      $region48: #{_forward_impl.5} parent=39 // pred_fallthru
        _
    $region40: #{_forward_impl.5} parent=5 // pred_fallthru
      _
  $region6: #{_forward_impl.5} parent=0 // loop_footer
    %s14 = sadd.s32 1, %s10
  $region7: #{_forward_impl.5} parent=0 // loop_footer_branch
    %9 = sbr.rel target = $region3
  $region8: #{_forward_impl.5} parent=0 // loop_exit
    _

</llo_original>
